<compile_context>
chip_gen: v6e
topology: v6e:2x2x1
jax: 0.10.0
libtpu: 0.0.40
codegen_flags: <defaults>
</compile_context>

<pallas_src>
import jax
import jax.numpy as jnp
from jax import lax
from jax.experimental import pallas as pl
from jax.experimental.pallas import tpu as pltpu

SK = 3                     # dynamic ("small") kernel size
LK = 13                    # lk_filter size (eval path hardcodes padding = 13 // 2)
PAD = LK // 2              # spatial halo of the 13x13 conv
DW_OFF = PAD - SK // 2     # dense tap (ky,kx) = (DW_OFF+dy, DW_OFF+dx) == depthwise tap (dy,dx)


def _make_conv_attn_kernel(H, W, pdim, sh):
    """Builds the kernel for static (H, W, pdim, strip_height)."""
    Wp = W + 2 * PAD              # padded width
    R = sh + 2 * PAD              # padded rows needed per output strip
    M = (sh - 1) * Wp + W         # wide-grid slab width (covers j = h*Wp + w)
    K = LK * LK * pdim            # contraction depth of the single fused dot

    def kernel(x_ref, w_ref, out_ref, xpad_s, slab_s):
        # x_ref  : (1, pdim, H + 2*PAD, W)   H-padded image (resident across the strip axis)
        # w_ref  : (1, pdim, K)              per-sample fused weights (13x13 + depthwise diag)
        # out_ref: (1, pdim, sh*W)           output strip, lane-dense (sh*W lanes)
        # xpad_s : VMEM (pdim, R*Wp)         flat fully padded strip
        # slab_s : VMEM (K, M)               im2col slab (rhs of the single MXU dot)
        s = pl.program_id(1)
        row0 = s * sh                         # first padded row of this strip in x_ref

        # Zero supplies the left/right W-halo lanes; interior lanes are overwritten below.
        # (Re-zeroed every step so the kernel is correct under megacore grid sharding.)
        xpad_s[...] = jnp.zeros_like(xpad_s)
        for r in range(R):                    # static unroll; dynamic sublane index only
            xpad_s[:, r * Wp + PAD: r * Wp + PAD + W] = x_ref[0, :, row0 + r, :]

        # im2col slab: the row block of tap (ky, kx) is the flat padded strip shifted by
        # ky*Wp + kx.  169 wide row-block copies (full lane width, sublane offsets only).
        for ky in range(LK):
            for kx in range(LK):
                off = ky * Wp + kx
                t = (ky * LK + kx) * pdim
                slab_s[t:t + pdim, :] = xpad_s[:, off:off + M]

        # Single deep MXU dot: (pdim, 169*pdim) x (169*pdim, M) -> (pdim, M), f32 accumulate.
        out_wide = jnp.dot(w_ref[0], slab_s[...], preferred_element_type=jnp.float32)

        # Drop the 2*PAD wrap columns of the wide grid; lane-dense stores into (pdim, sh*W).
        for h in range(sh):
            out_ref[0, :, h * W:(h + 1) * W] = (
                out_wide[:, h * Wp: h * Wp + W].astype(out_ref.dtype))

    return kernel


def conv_attention_pallas(x1p, w_eff, *, H, W, pdim, strip_h, out_dtype):
    """x1p: (B, pdim, H+2*PAD, W) H-padded activations; w_eff: (B, pdim, 169*pdim)."""
    B = x1p.shape[0]
    assert H % strip_h == 0  # TODO(synk): ragged H strips
    n_strips = H // strip_h
    Wp = W + 2 * PAD
    R = strip_h + 2 * PAD
    M = (strip_h - 1) * Wp + W
    K = LK * LK * pdim
    mxu_dtype = x1p.dtype

    # Conservative scoped-VMEM request (raised vs the 16 MiB v5e default, capped well under
    # v7x's 64 MiB physical VMEM).
    isz = jnp.dtype(mxu_dtype).itemsize
    scratch_bytes = (pdim * R * Wp + K * M) * isz
    io_bytes = 2 * (pdim * (H + 2 * PAD) * W * isz + pdim * K * isz
                    + pdim * strip_h * W * jnp.dtype(out_dtype).itemsize)
    vmem_limit = int(min(48 * 2**20, max(16 * 2**20, 4 * (scratch_bytes + io_bytes))))

    kernel = _make_conv_attn_kernel(H, W, pdim, strip_h)
    out_flat = pl.pallas_call(
        kernel,
        out_shape=jax.ShapeDtypeStruct((B, pdim, H * W), out_dtype),
        grid=(B, n_strips),
        in_specs=[
            # Full (small) image; index_map constant along the strip axis -> DMA'd once per
            # batch element and kept resident while its strips execute.
            pl.BlockSpec((1, pdim, H + 2 * PAD, W), lambda b, s: (b, 0, 0, 0)),
            # Per-sample fused weights (constant along the strip axis).
            # TODO(synk): pipeline_mode=pl.Buffered(1) to single-buffer this constant.
            pl.BlockSpec((1, pdim, K), lambda b, s: (b, 0, 0)),
        ],
        out_specs=pl.BlockSpec((1, pdim, strip_h * W), lambda b, s: (b, 0, s)),
        scratch_shapes=[
            pltpu.VMEM((pdim, R * Wp), mxu_dtype),   # flat padded strip
            pltpu.VMEM((K, M), mxu_dtype),           # im2col slab
        ],
        # Batch elements and H-strips are independent -> both shardable across v7x's 2 TCs.
        compiler_params=pltpu.CompilerParams(
            dimension_semantics=("parallel", "parallel"),
            vmem_limit_bytes=vmem_limit,
        ),
    )(x1p, w_eff)
    return out_flat


def _pick_strip(H, target):
    sh = min(target, H)
    while H % sh:
        sh -= 1
    return sh


def convolutional_attention_forward(x, lk_filter, params, pdim, *,
                                    mxu_dtype=jnp.float32, strip_h=8):
    """x: (B, C, H, W) NCHW; lk_filter: (pdim, pdim, LK, LK); returns (B, C, H, W)."""
    B, C, H, W = x.shape
    w1, b1, w2, b2 = params
    x1 = x[:, :pdim]
    x2 = x[:, pdim:]

    # dwc_proj: AdaptiveAvgPool2d(1) -> 1x1 conv -> GELU(exact) -> 1x1 conv (tiny JAX glue).
    pooled = jnp.mean(x1, axis=(2, 3))                                # (B, pdim)
    hid = jax.nn.gelu(pooled @ w1.T + b1, approximate=False)          # (B, pdim//2)
    dk = (hid @ w2.T + b2).reshape(B, pdim, SK, SK)                   # [b, c, dy, dx]

    # Fold the dense 13x13 filter and the per-sample depthwise 3x3 into ONE per-sample
    # weight matrix (pdim, 13*13*pdim): the depthwise taps sit on the ci==co diagonal of
    # the central 3x3 of the 13x13 support (same alignment as the PyTorch two-conv sum),
    # so the kernel needs exactly one MXU dot and no extra VPU pass.
    lk_t = jnp.transpose(lk_filter, (0, 2, 3, 1))                     # (co, ky, kx, ci)
    eye = jnp.eye(pdim, dtype=dk.dtype)
    dyn = dk[:, :, :, :, None] * eye[None, :, None, None, :]          # (B, co, 3, 3, ci)
    pad_lo, pad_hi = DW_OFF, LK - SK - DW_OFF
    dyn = jnp.pad(dyn, ((0, 0), (0, 0), (pad_lo, pad_hi), (pad_lo, pad_hi), (0, 0)))
    w_eff = (lk_t[None] + dyn).reshape(B, pdim, LK * LK * pdim).astype(mxu_dtype)

    # Pad H once in the wrapper (zero rows); W padding is done inside the kernel so no
    # W-padded copy of the activations exists in HBM.
    x1p = jnp.pad(x1, ((0, 0), (0, 0), (PAD, PAD), (0, 0))).astype(mxu_dtype)

    sh = _pick_strip(H, strip_h)
    out_flat = conv_attention_pallas(x1p, w_eff, H=H, W=W, pdim=pdim,
                                     strip_h=sh, out_dtype=x.dtype)
    out_x1 = out_flat.reshape(B, pdim, H, W)
    return jnp.concatenate([out_x1, x2], axis=1)


def reference_forward(x, lk_filter, params, pdim):
    """Pure-JAX reference (lax.conv) reproducing the PyTorch forward."""
    B, C, H, W = x.shape
    w1, b1, w2, b2 = params
    x1 = x[:, :pdim]
    x2 = x[:, pdim:]
    pooled = jnp.mean(x1, axis=(2, 3))
    hid = jax.nn.gelu(pooled @ w1.T + b1, approximate=False)
    dk_flat = hid @ w2.T + b2
    dyn_w = dk_flat.reshape(B * pdim, 1, SK, SK)

    lk_out = lax.conv_general_dilated(
        x1, lk_filter, window_strides=(1, 1),
        padding=[(PAD, PAD), (PAD, PAD)],
        dimension_numbers=("NCHW", "OIHW", "NCHW"))

    dyn_out = lax.conv_general_dilated(
        x1.reshape(1, B * pdim, H, W), dyn_w, window_strides=(1, 1),
        padding=[(SK // 2, SK // 2), (SK // 2, SK // 2)],
        dimension_numbers=("NCHW", "OIHW", "NCHW"),
        feature_group_count=B * pdim).reshape(B, pdim, H, W)

    return jnp.concatenate([lk_out + dyn_out, x2], axis=1)


if __name__ == "__main__":
    key = jax.random.PRNGKey(0)
    B, C, H, W = 2, 8, 16, 16
    pdim = 4
    k_x, k_lk, k_w1, k_b1, k_w2, k_b2 = jax.random.split(key, 6)

    x = jax.random.normal(k_x, (B, C, H, W), jnp.float32)
    lk_filter = jax.random.normal(k_lk, (pdim, pdim, LK, LK), jnp.float32) * 0.05

    # dwc_proj parameter shapes follow the module __init__:
    #   Conv2d(pdim, pdim//2, 1) ; Conv2d(pdim//2, pdim*3*3, 1)
    # NOTE: the module zero-inits the last conv (dynamic path == 0 at init); here we use
    # small deterministic random values so the dynamic-kernel path is actually exercised.
    w1 = jax.random.normal(k_w1, (pdim // 2, pdim), jnp.float32) * 0.2
    b1 = jax.random.normal(k_b1, (pdim // 2,), jnp.float32) * 0.1
    w2 = jax.random.normal(k_w2, (pdim * SK * SK, pdim // 2), jnp.float32) * 0.2
    b2 = jax.random.normal(k_b2, (pdim * SK * SK,), jnp.float32) * 0.1
    params = (w1, b1, w2, b2)

    ref = reference_forward(x, lk_filter, params, pdim)

    # f32 MXU path: strict check.
    out = convolutional_attention_forward(x, lk_filter, params, pdim,
                                          mxu_dtype=jnp.float32, strip_h=8)
    out = jax.block_until_ready(out)
    assert out.shape == ref.shape == (B, C, H, W)
    assert bool(jnp.allclose(out, ref, rtol=2e-4, atol=2e-4)), (
        "f32 max abs err = %f" % float(jnp.max(jnp.abs(out - ref))))

    # bf16 slab/weights on the MXU (f32 accumulate), as recommended for v6e/v7x: loose check.
    out_bf16 = convolutional_attention_forward(x, lk_filter, params, pdim,
                                               mxu_dtype=jnp.bfloat16, strip_h=8)
    out_bf16 = jax.block_until_ready(out_bf16)
    assert bool(jnp.allclose(out_bf16, ref, rtol=5e-2, atol=5e-2)), (
        "bf16 max abs err = %f" % float(jnp.max(jnp.abs(out_bf16 - ref))))

    print("KERNEL_OK")
</pallas_src>

<mosaic_0001>
module attributes {stable_mosaic.version = 11 : i64} {
  func.func @kernel(%arg0: i32, %arg1: i32, %arg2: memref<1x4x28x16xf32, #tpu.memory_space<vmem>>, %arg3: memref<1x4x676xf32, #tpu.memory_space<vmem>>, %arg4: memref<1x4x128xf32, #tpu.memory_space<vmem>>, %arg5: memref<4x560xf32, #tpu.memory_space<vmem>>, %arg6: memref<676x212xf32, #tpu.memory_space<vmem>>) attributes {dimension_semantics = [#tpu.dimension_semantics<parallel>, #tpu.dimension_semantics<parallel>], iteration_bounds = array<i64: 2, 2>, scalar_prefetch = 0 : i64, scratch_operands = 2 : i64, tpu.core_type = #tpu.core_type<tc>, window_params = [{transform_indices = @transform_0, window_bounds = array<i64: 1, 4, 28, 16>}, {transform_indices = @transform_1, window_bounds = array<i64: 1, 4, 676>}, {transform_indices = @transform_2, window_bounds = array<i64: 1, 4, 128>}]} {
    %c8_i32 = arith.constant 8 : i32
    %0 = arith.muli %arg1, %c8_i32 : i32
    %cst = arith.constant 0.000000e+00 : f32
    %1 = vector.broadcast %cst : f32 to vector<4x560xf32>
    %c0 = arith.constant 0 : index
    %c0_0 = arith.constant 0 : index
    %2 = vector.load %arg5[%c0, %c0_0] : memref<4x560xf32, #tpu.memory_space<vmem>>, vector<4x560xf32>
    tpu.vector_store %arg5[%c0, %c0_0], %1 {strides = array<i32>} : memref<4x560xf32, #tpu.memory_space<vmem>>, vector<4x560xf32>,
    %c0_i32 = arith.constant 0 : i32
    %3 = arith.addi %0, %c0_i32 : i32
    %c0_1 = arith.constant 0 : index
    %c0_2 = arith.constant 0 : index
    %4 = arith.index_cast %3 : i32 to index
    %c0_3 = arith.constant 0 : index
    %5 = vector.load %arg2[%c0_1, %c0_2, %4, %c0_3] : memref<1x4x28x16xf32, #tpu.memory_space<vmem>>, vector<1x4x1x16xf32>
    %6 = vector.shape_cast %5 : vector<1x4x1x16xf32> to vector<4x16xf32>
    %c0_4 = arith.constant 0 : index
    %c6 = arith.constant 6 : index
    %7 = vector.load %arg5[%c0_4, %c6] : memref<4x560xf32, #tpu.memory_space<vmem>>, vector<4x16xf32>
    tpu.vector_store %arg5[%c0_4, %c6], %6 {strides = array<i32>} : memref<4x560xf32, #tpu.memory_space<vmem>>, vector<4x16xf32>,
    %c1_i32 = arith.constant 1 : i32
    %8 = arith.addi %0, %c1_i32 : i32
    %c0_5 = arith.constant 0 : index
    %c0_6 = arith.constant 0 : index
    %9 = arith.index_cast %8 : i32 to index
    %c0_7 = arith.constant 0 : index
    %10 = vector.load %arg2[%c0_5, %c0_6, %9, %c0_7] : memref<1x4x28x16xf32, #tpu.memory_space<vmem>>, vector<1x4x1x16xf32>
    %11 = vector.shape_cast %10 : vector<1x4x1x16xf32> to vector<4x16xf32>
    %c0_8 = arith.constant 0 : index
    %c34 = arith.constant 34 : index
    %12 = vector.load %arg5[%c0_8, %c34] : memref<4x560xf32, #tpu.memory_space<vmem>>, vector<4x16xf32>
    tpu.vector_store %arg5[%c0_8, %c34], %11 {strides = array<i32>} : memref<4x560xf32, #tpu.memory_space<vmem>>, vector<4x16xf32>,
    %c2_i32 = arith.constant 2 : i32
    %13 = arith.addi %0, %c2_i32 : i32
    %c0_9 = arith.constant 0 : index
    %c0_10 = arith.constant 0 : index
    %14 = arith.index_cast %13 : i32 to index
    %c0_11 = arith.constant 0 : index
    %15 = vector.load %arg2[%c0_9, %c0_10, %14, %c0_11] : memref<1x4x28x16xf32, #tpu.memory_space<vmem>>, vector<1x4x1x16xf32>
    %16 = vector.shape_cast %15 : vector<1x4x1x16xf32> to vector<4x16xf32>
    %c0_12 = arith.constant 0 : index
    %c62 = arith.constant 62 : index
    %17 = vector.load %arg5[%c0_12, %c62] : memref<4x560xf32, #tpu.memory_space<vmem>>, vector<4x16xf32>
    tpu.vector_store %arg5[%c0_12, %c62], %16 {strides = array<i32>} : memref<4x560xf32, #tpu.memory_space<vmem>>, vector<4x16xf32>,
    %c3_i32 = arith.constant 3 : i32
    %18 = arith.addi %0, %c3_i32 : i32
    %c0_13 = arith.constant 0 : index
    %c0_14 = arith.constant 0 : index
    %19 = arith.index_cast %18 : i32 to index
    %c0_15 = arith.constant 0 : index
    %20 = vector.load %arg2[%c0_13, %c0_14, %19, %c0_15] : memref<1x4x28x16xf32, #tpu.memory_space<vmem>>, vector<1x4x1x16xf32>
    %21 = vector.shape_cast %20 : vector<1x4x1x16xf32> to vector<4x16xf32>
    %c0_16 = arith.constant 0 : index
    %c90 = arith.constant 90 : index
    %22 = vector.load %arg5[%c0_16, %c90] : memref<4x560xf32, #tpu.memory_space<vmem>>, vector<4x16xf32>
    tpu.vector_store %arg5[%c0_16, %c90], %21 {strides = array<i32>} : memref<4x560xf32, #tpu.memory_space<vmem>>, vector<4x16xf32>,
    %c4_i32 = arith.constant 4 : i32
    %23 = arith.addi %0, %c4_i32 : i32
    %c0_17 = arith.constant 0 : index
    %c0_18 = arith.constant 0 : index
    %24 = arith.index_cast %23 : i32 to index
    %c0_19 = arith.constant 0 : index
    %25 = vector.load %arg2[%c0_17, %c0_18, %24, %c0_19] : memref<1x4x28x16xf32, #tpu.memory_space<vmem>>, vector<1x4x1x16xf32>
    %26 = vector.shape_cast %25 : vector<1x4x1x16xf32> to vector<4x16xf32>
    %c0_20 = arith.constant 0 : index
    %c118 = arith.constant 118 : index
    %27 = vector.load %arg5[%c0_20, %c118] : memref<4x560xf32, #tpu.memory_space<vmem>>, vector<4x16xf32>
    tpu.vector_store %arg5[%c0_20, %c118], %26 {strides = array<i32>} : memref<4x560xf32, #tpu.memory_space<vmem>>, vector<4x16xf32>,
    %c5_i32 = arith.constant 5 : i32
    %28 = arith.addi %0, %c5_i32 : i32
    %c0_21 = arith.constant 0 : index
    %c0_22 = arith.constant 0 : index
    %29 = arith.index_cast %28 : i32 to index
    %c0_23 = arith.constant 0 : index
    %30 = vector.load %arg2[%c0_21, %c0_22, %29, %c0_23] : memref<1x4x28x16xf32, #tpu.memory_space<vmem>>, vector<1x4x1x16xf32>
    %31 = vector.shape_cast %30 : vector<1x4x1x16xf32> to vector<4x16xf32>
    %c0_24 = arith.constant 0 : index
    %c146 = arith.constant 146 : index
    %32 = vector.load %arg5[%c0_24, %c146] : memref<4x560xf32, #tpu.memory_space<vmem>>, vector<4x16xf32>
    tpu.vector_store %arg5[%c0_24, %c146], %31 {strides = array<i32>} : memref<4x560xf32, #tpu.memory_space<vmem>>, vector<4x16xf32>,
    %c6_i32 = arith.constant 6 : i32
    %33 = arith.addi %0, %c6_i32 : i32
    %c0_25 = arith.constant 0 : index
    %c0_26 = arith.constant 0 : index
    %34 = arith.index_cast %33 : i32 to index
    %c0_27 = arith.constant 0 : index
    %35 = vector.load %arg2[%c0_25, %c0_26, %34, %c0_27] : memref<1x4x28x16xf32, #tpu.memory_space<vmem>>, vector<1x4x1x16xf32>
    %36 = vector.shape_cast %35 : vector<1x4x1x16xf32> to vector<4x16xf32>
    %c0_28 = arith.constant 0 : index
    %c174 = arith.constant 174 : index
    %37 = vector.load %arg5[%c0_28, %c174] : memref<4x560xf32, #tpu.memory_space<vmem>>, vector<4x16xf32>
    tpu.vector_store %arg5[%c0_28, %c174], %36 {strides = array<i32>} : memref<4x560xf32, #tpu.memory_space<vmem>>, vector<4x16xf32>,
    %c7_i32 = arith.constant 7 : i32
    %38 = arith.addi %0, %c7_i32 : i32
    %c0_29 = arith.constant 0 : index
    %c0_30 = arith.constant 0 : index
    %39 = arith.index_cast %38 : i32 to index
    %c0_31 = arith.constant 0 : index
    %40 = vector.load %arg2[%c0_29, %c0_30, %39, %c0_31] : memref<1x4x28x16xf32, #tpu.memory_space<vmem>>, vector<1x4x1x16xf32>
    %41 = vector.shape_cast %40 : vector<1x4x1x16xf32> to vector<4x16xf32>
    %c0_32 = arith.constant 0 : index
    %c202 = arith.constant 202 : index
    %42 = vector.load %arg5[%c0_32, %c202] : memref<4x560xf32, #tpu.memory_space<vmem>>, vector<4x16xf32>
    tpu.vector_store %arg5[%c0_32, %c202], %41 {strides = array<i32>} : memref<4x560xf32, #tpu.memory_space<vmem>>, vector<4x16xf32>,
    %c8_i32_33 = arith.constant 8 : i32
    %43 = arith.addi %0, %c8_i32_33 : i32
    %c0_34 = arith.constant 0 : index
    %c0_35 = arith.constant 0 : index
    %44 = arith.index_cast %43 : i32 to index
    %c0_36 = arith.constant 0 : index
    %45 = vector.load %arg2[%c0_34, %c0_35, %44, %c0_36] : memref<1x4x28x16xf32, #tpu.memory_space<vmem>>, vector<1x4x1x16xf32>
    %46 = vector.shape_cast %45 : vector<1x4x1x16xf32> to vector<4x16xf32>
    %c0_37 = arith.constant 0 : index
    %c230 = arith.constant 230 : index
    %47 = vector.load %arg5[%c0_37, %c230] : memref<4x560xf32, #tpu.memory_space<vmem>>, vector<4x16xf32>
    tpu.vector_store %arg5[%c0_37, %c230], %46 {strides = array<i32>} : memref<4x560xf32, #tpu.memory_space<vmem>>, vector<4x16xf32>,
    %c9_i32 = arith.constant 9 : i32
    %48 = arith.addi %0, %c9_i32 : i32
    %c0_38 = arith.constant 0 : index
    %c0_39 = arith.constant 0 : index
    %49 = arith.index_cast %48 : i32 to index
    %c0_40 = arith.constant 0 : index
    %50 = vector.load %arg2[%c0_38, %c0_39, %49, %c0_40] : memref<1x4x28x16xf32, #tpu.memory_space<vmem>>, vector<1x4x1x16xf32>
    %51 = vector.shape_cast %50 : vector<1x4x1x16xf32> to vector<4x16xf32>
    %c0_41 = arith.constant 0 : index
    %c258 = arith.constant 258 : index
    %52 = vector.load %arg5[%c0_41, %c258] : memref<4x560xf32, #tpu.memory_space<vmem>>, vector<4x16xf32>
    tpu.vector_store %arg5[%c0_41, %c258], %51 {strides = array<i32>} : memref<4x560xf32, #tpu.memory_space<vmem>>, vector<4x16xf32>,
    %c10_i32 = arith.constant 10 : i32
    %53 = arith.addi %0, %c10_i32 : i32
    %c0_42 = arith.constant 0 : index
    %c0_43 = arith.constant 0 : index
    %54 = arith.index_cast %53 : i32 to index
    %c0_44 = arith.constant 0 : index
    %55 = vector.load %arg2[%c0_42, %c0_43, %54, %c0_44] : memref<1x4x28x16xf32, #tpu.memory_space<vmem>>, vector<1x4x1x16xf32>
    %56 = vector.shape_cast %55 : vector<1x4x1x16xf32> to vector<4x16xf32>
    %c0_45 = arith.constant 0 : index
    %c286 = arith.constant 286 : index
    %57 = vector.load %arg5[%c0_45, %c286] : memref<4x560xf32, #tpu.memory_space<vmem>>, vector<4x16xf32>
    tpu.vector_store %arg5[%c0_45, %c286], %56 {strides = array<i32>} : memref<4x560xf32, #tpu.memory_space<vmem>>, vector<4x16xf32>,
    %c11_i32 = arith.constant 11 : i32
    %58 = arith.addi %0, %c11_i32 : i32
    %c0_46 = arith.constant 0 : index
    %c0_47 = arith.constant 0 : index
    %59 = arith.index_cast %58 : i32 to index
    %c0_48 = arith.constant 0 : index
    %60 = vector.load %arg2[%c0_46, %c0_47, %59, %c0_48] : memref<1x4x28x16xf32, #tpu.memory_space<vmem>>, vector<1x4x1x16xf32>
    %61 = vector.shape_cast %60 : vector<1x4x1x16xf32> to vector<4x16xf32>
    %c0_49 = arith.constant 0 : index
    %c314 = arith.constant 314 : index
    %62 = vector.load %arg5[%c0_49, %c314] : memref<4x560xf32, #tpu.memory_space<vmem>>, vector<4x16xf32>
    tpu.vector_store %arg5[%c0_49, %c314], %61 {strides = array<i32>} : memref<4x560xf32, #tpu.memory_space<vmem>>, vector<4x16xf32>,
    %c12_i32 = arith.constant 12 : i32
    %63 = arith.addi %0, %c12_i32 : i32
    %c0_50 = arith.constant 0 : index
    %c0_51 = arith.constant 0 : index
    %64 = arith.index_cast %63 : i32 to index
    %c0_52 = arith.constant 0 : index
    %65 = vector.load %arg2[%c0_50, %c0_51, %64, %c0_52] : memref<1x4x28x16xf32, #tpu.memory_space<vmem>>, vector<1x4x1x16xf32>
    %66 = vector.shape_cast %65 : vector<1x4x1x16xf32> to vector<4x16xf32>
    %c0_53 = arith.constant 0 : index
    %c342 = arith.constant 342 : index
    %67 = vector.load %arg5[%c0_53, %c342] : memref<4x560xf32, #tpu.memory_space<vmem>>, vector<4x16xf32>
    tpu.vector_store %arg5[%c0_53, %c342], %66 {strides = array<i32>} : memref<4x560xf32, #tpu.memory_space<vmem>>, vector<4x16xf32>,
    %c13_i32 = arith.constant 13 : i32
    %68 = arith.addi %0, %c13_i32 : i32
    %c0_54 = arith.constant 0 : index
    %c0_55 = arith.constant 0 : index
    %69 = arith.index_cast %68 : i32 to index
    %c0_56 = arith.constant 0 : index
    %70 = vector.load %arg2[%c0_54, %c0_55, %69, %c0_56] : memref<1x4x28x16xf32, #tpu.memory_space<vmem>>, vector<1x4x1x16xf32>
    %71 = vector.shape_cast %70 : vector<1x4x1x16xf32> to vector<4x16xf32>
    %c0_57 = arith.constant 0 : index
    %c370 = arith.constant 370 : index
    %72 = vector.load %arg5[%c0_57, %c370] : memref<4x560xf32, #tpu.memory_space<vmem>>, vector<4x16xf32>
    tpu.vector_store %arg5[%c0_57, %c370], %71 {strides = array<i32>} : memref<4x560xf32, #tpu.memory_space<vmem>>, vector<4x16xf32>,
    %c14_i32 = arith.constant 14 : i32
    %73 = arith.addi %0, %c14_i32 : i32
    %c0_58 = arith.constant 0 : index
    %c0_59 = arith.constant 0 : index
    %74 = arith.index_cast %73 : i32 to index
    %c0_60 = arith.constant 0 : index
    %75 = vector.load %arg2[%c0_58, %c0_59, %74, %c0_60] : memref<1x4x28x16xf32, #tpu.memory_space<vmem>>, vector<1x4x1x16xf32>
    %76 = vector.shape_cast %75 : vector<1x4x1x16xf32> to vector<4x16xf32>
    %c0_61 = arith.constant 0 : index
    %c398 = arith.constant 398 : index
    %77 = vector.load %arg5[%c0_61, %c398] : memref<4x560xf32, #tpu.memory_space<vmem>>, vector<4x16xf32>
    tpu.vector_store %arg5[%c0_61, %c398], %76 {strides = array<i32>} : memref<4x560xf32, #tpu.memory_space<vmem>>, vector<4x16xf32>,
    %c15_i32 = arith.constant 15 : i32
    %78 = arith.addi %0, %c15_i32 : i32
    %c0_62 = arith.constant 0 : index
    %c0_63 = arith.constant 0 : index
    %79 = arith.index_cast %78 : i32 to index
    %c0_64 = arith.constant 0 : index
    %80 = vector.load %arg2[%c0_62, %c0_63, %79, %c0_64] : memref<1x4x28x16xf32, #tpu.memory_space<vmem>>, vector<1x4x1x16xf32>
    %81 = vector.shape_cast %80 : vector<1x4x1x16xf32> to vector<4x16xf32>
    %c0_65 = arith.constant 0 : index
    %c426 = arith.constant 426 : index
    %82 = vector.load %arg5[%c0_65, %c426] : memref<4x560xf32, #tpu.memory_space<vmem>>, vector<4x16xf32>
    tpu.vector_store %arg5[%c0_65, %c426], %81 {strides = array<i32>} : memref<4x560xf32, #tpu.memory_space<vmem>>, vector<4x16xf32>,
    %c16_i32 = arith.constant 16 : i32
    %83 = arith.addi %0, %c16_i32 : i32
    %c0_66 = arith.constant 0 : index
    %c0_67 = arith.constant 0 : index
    %84 = arith.index_cast %83 : i32 to index
    %c0_68 = arith.constant 0 : index
    %85 = vector.load %arg2[%c0_66, %c0_67, %84, %c0_68] : memref<1x4x28x16xf32, #tpu.memory_space<vmem>>, vector<1x4x1x16xf32>
    %86 = vector.shape_cast %85 : vector<1x4x1x16xf32> to vector<4x16xf32>
    %c0_69 = arith.constant 0 : index
    %c454 = arith.constant 454 : index
    %87 = vector.load %arg5[%c0_69, %c454] : memref<4x560xf32, #tpu.memory_space<vmem>>, vector<4x16xf32>
    tpu.vector_store %arg5[%c0_69, %c454], %86 {strides = array<i32>} : memref<4x560xf32, #tpu.memory_space<vmem>>, vector<4x16xf32>,
    %c17_i32 = arith.constant 17 : i32
    %88 = arith.addi %0, %c17_i32 : i32
    %c0_70 = arith.constant 0 : index
    %c0_71 = arith.constant 0 : index
    %89 = arith.index_cast %88 : i32 to index
    %c0_72 = arith.constant 0 : index
    %90 = vector.load %arg2[%c0_70, %c0_71, %89, %c0_72] : memref<1x4x28x16xf32, #tpu.memory_space<vmem>>, vector<1x4x1x16xf32>
    %91 = vector.shape_cast %90 : vector<1x4x1x16xf32> to vector<4x16xf32>
    %c0_73 = arith.constant 0 : index
    %c482 = arith.constant 482 : index
    %92 = vector.load %arg5[%c0_73, %c482] : memref<4x560xf32, #tpu.memory_space<vmem>>, vector<4x16xf32>
    tpu.vector_store %arg5[%c0_73, %c482], %91 {strides = array<i32>} : memref<4x560xf32, #tpu.memory_space<vmem>>, vector<4x16xf32>,
    %c18_i32 = arith.constant 18 : i32
    %93 = arith.addi %0, %c18_i32 : i32
    %c0_74 = arith.constant 0 : index
    %c0_75 = arith.constant 0 : index
    %94 = arith.index_cast %93 : i32 to index
    %c0_76 = arith.constant 0 : index
    %95 = vector.load %arg2[%c0_74, %c0_75, %94, %c0_76] : memref<1x4x28x16xf32, #tpu.memory_space<vmem>>, vector<1x4x1x16xf32>
    %96 = vector.shape_cast %95 : vector<1x4x1x16xf32> to vector<4x16xf32>
    %c0_77 = arith.constant 0 : index
    %c510 = arith.constant 510 : index
    %97 = vector.load %arg5[%c0_77, %c510] : memref<4x560xf32, #tpu.memory_space<vmem>>, vector<4x16xf32>
    tpu.vector_store %arg5[%c0_77, %c510], %96 {strides = array<i32>} : memref<4x560xf32, #tpu.memory_space<vmem>>, vector<4x16xf32>,
    %c19_i32 = arith.constant 19 : i32
    %98 = arith.addi %0, %c19_i32 : i32
    %c0_78 = arith.constant 0 : index
    %c0_79 = arith.constant 0 : index
    %99 = arith.index_cast %98 : i32 to index
    %c0_80 = arith.constant 0 : index
    %100 = vector.load %arg2[%c0_78, %c0_79, %99, %c0_80] : memref<1x4x28x16xf32, #tpu.memory_space<vmem>>, vector<1x4x1x16xf32>
    %101 = vector.shape_cast %100 : vector<1x4x1x16xf32> to vector<4x16xf32>
    %c0_81 = arith.constant 0 : index
    %c538 = arith.constant 538 : index
    %102 = vector.load %arg5[%c0_81, %c538] : memref<4x560xf32, #tpu.memory_space<vmem>>, vector<4x16xf32>
    tpu.vector_store %arg5[%c0_81, %c538], %101 {strides = array<i32>} : memref<4x560xf32, #tpu.memory_space<vmem>>, vector<4x16xf32>,
    %c0_82 = arith.constant 0 : index
    %c0_83 = arith.constant 0 : index
    %103 = vector.load %arg5[%c0_82, %c0_83] : memref<4x560xf32, #tpu.memory_space<vmem>>, vector<4x212xf32>
    %c0_84 = arith.constant 0 : index
    %c0_85 = arith.constant 0 : index
    %104 = vector.load %arg6[%c0_84, %c0_85] : memref<676x212xf32, #tpu.memory_space<vmem>>, vector<4x212xf32>
    tpu.vector_store %arg6[%c0_84, %c0_85], %103 {strides = array<i32>} : memref<676x212xf32, #tpu.memory_space<vmem>>, vector<4x212xf32>,
    %c0_86 = arith.constant 0 : index
    %c1 = arith.constant 1 : index
    %105 = vector.load %arg5[%c0_86, %c1] : memref<4x560xf32, #tpu.memory_space<vmem>>, vector<4x212xf32>
    %c4 = arith.constant 4 : index
    %c0_87 = arith.constant 0 : index
    %106 = vector.load %arg6[%c4, %c0_87] : memref<676x212xf32, #tpu.memory_space<vmem>>, vector<4x212xf32>
    tpu.vector_store %arg6[%c4, %c0_87], %105 {strides = array<i32>} : memref<676x212xf32, #tpu.memory_space<vmem>>, vector<4x212xf32>,
    %c0_88 = arith.constant 0 : index
    %c2 = arith.constant 2 : index
    %107 = vector.load %arg5[%c0_88, %c2] : memref<4x560xf32, #tpu.memory_space<vmem>>, vector<4x212xf32>
    %c8 = arith.constant 8 : index
    %c0_89 = arith.constant 0 : index
    %108 = vector.load %arg6[%c8, %c0_89] : memref<676x212xf32, #tpu.memory_space<vmem>>, vector<4x212xf32>
    tpu.vector_store %arg6[%c8, %c0_89], %107 {strides = array<i32>} : memref<676x212xf32, #tpu.memory_space<vmem>>, vector<4x212xf32>,
    %c0_90 = arith.constant 0 : index
    %c3 = arith.constant 3 : index
    %109 = vector.load %arg5[%c0_90, %c3] : memref<4x560xf32, #tpu.memory_space<vmem>>, vector<4x212xf32>
    %c12 = arith.constant 12 : index
    %c0_91 = arith.constant 0 : index
    %110 = vector.load %arg6[%c12, %c0_91] : memref<676x212xf32, #tpu.memory_space<vmem>>, vector<4x212xf32>
    tpu.vector_store %arg6[%c12, %c0_91], %109 {strides = array<i32>} : memref<676x212xf32, #tpu.memory_space<vmem>>, vector<4x212xf32>,
    %c0_92 = arith.constant 0 : index
    %c4_93 = arith.constant 4 : index
    %111 = vector.load %arg5[%c0_92, %c4_93] : memref<4x560xf32, #tpu.memory_space<vmem>>, vector<4x212xf32>
    %c16 = arith.constant 16 : index
    %c0_94 = arith.constant 0 : index
    %112 = vector.load %arg6[%c16, %c0_94] : memref<676x212xf32, #tpu.memory_space<vmem>>, vector<4x212xf32>
    tpu.vector_store %arg6[%c16, %c0_94], %111 {strides = array<i32>} : memref<676x212xf32, #tpu.memory_space<vmem>>, vector<4x212xf32>,
    %c0_95 = arith.constant 0 : index
    %c5 = arith.constant 5 : index
    %113 = vector.load %arg5[%c0_95, %c5] : memref<4x560xf32, #tpu.memory_space<vmem>>, vector<4x212xf32>
    %c20 = arith.constant 20 : index
    %c0_96 = arith.constant 0 : index
    %114 = vector.load %arg6[%c20, %c0_96] : memref<676x212xf32, #tpu.memory_space<vmem>>, vector<4x212xf32>
    tpu.vector_store %arg6[%c20, %c0_96], %113 {strides = array<i32>} : memref<676x212xf32, #tpu.memory_space<vmem>>, vector<4x212xf32>,
    %c0_97 = arith.constant 0 : index
    %c6_98 = arith.constant 6 : index
    %115 = vector.load %arg5[%c0_97, %c6_98] : memref<4x560xf32, #tpu.memory_space<vmem>>, vector<4x212xf32>
    %c24 = arith.constant 24 : index
    %c0_99 = arith.constant 0 : index
    %116 = vector.load %arg6[%c24, %c0_99] : memref<676x212xf32, #tpu.memory_space<vmem>>, vector<4x212xf32>
    tpu.vector_store %arg6[%c24, %c0_99], %115 {strides = array<i32>} : memref<676x212xf32, #tpu.memory_space<vmem>>, vector<4x212xf32>,
    %c0_100 = arith.constant 0 : index
    %c7 = arith.constant 7 : index
    %117 = vector.load %arg5[%c0_100, %c7] : memref<4x560xf32, #tpu.memory_space<vmem>>, vector<4x212xf32>
    %c28 = arith.constant 28 : index
    %c0_101 = arith.constant 0 : index
    %118 = vector.load %arg6[%c28, %c0_101] : memref<676x212xf32, #tpu.memory_space<vmem>>, vector<4x212xf32>
    tpu.vector_store %arg6[%c28, %c0_101], %117 {strides = array<i32>} : memref<676x212xf32, #tpu.memory_space<vmem>>, vector<4x212xf32>,
    %c0_102 = arith.constant 0 : index
    %c8_103 = arith.constant 8 : index
    %119 = vector.load %arg5[%c0_102, %c8_103] : memref<4x560xf32, #tpu.memory_space<vmem>>, vector<4x212xf32>
    %c32 = arith.constant 32 : index
    %c0_104 = arith.constant 0 : index
    %120 = vector.load %arg6[%c32, %c0_104] : memref<676x212xf32, #tpu.memory_space<vmem>>, vector<4x212xf32>
    tpu.vector_store %arg6[%c32, %c0_104], %119 {strides = array<i32>} : memref<676x212xf32, #tpu.memory_space<vmem>>, vector<4x212xf32>,
    %c0_105 = arith.constant 0 : index
    %c9 = arith.constant 9 : index
    %121 = vector.load %arg5[%c0_105, %c9] : memref<4x560xf32, #tpu.memory_space<vmem>>, vector<4x212xf32>
    %c36 = arith.constant 36 : index
    %c0_106 = arith.constant 0 : index
    %122 = vector.load %arg6[%c36, %c0_106] : memref<676x212xf32, #tpu.memory_space<vmem>>, vector<4x212xf32>
    tpu.vector_store %arg6[%c36, %c0_106], %121 {strides = array<i32>} : memref<676x212xf32, #tpu.memory_space<vmem>>, vector<4x212xf32>,
    %c0_107 = arith.constant 0 : index
    %c10 = arith.constant 10 : index
    %123 = vector.load %arg5[%c0_107, %c10] : memref<4x560xf32, #tpu.memory_space<vmem>>, vector<4x212xf32>
    %c40 = arith.constant 40 : index
    %c0_108 = arith.constant 0 : index
    %124 = vector.load %arg6[%c40, %c0_108] : memref<676x212xf32, #tpu.memory_space<vmem>>, vector<4x212xf32>
    tpu.vector_store %arg6[%c40, %c0_108], %123 {strides = array<i32>} : memref<676x212xf32, #tpu.memory_space<vmem>>, vector<4x212xf32>,
    %c0_109 = arith.constant 0 : index
    %c11 = arith.constant 11 : index
    %125 = vector.load %arg5[%c0_109, %c11] : memref<4x560xf32, #tpu.memory_space<vmem>>, vector<4x212xf32>
    %c44 = arith.constant 44 : index
    %c0_110 = arith.constant 0 : index
    %126 = vector.load %arg6[%c44, %c0_110] : memref<676x212xf32, #tpu.memory_space<vmem>>, vector<4x212xf32>
    tpu.vector_store %arg6[%c44, %c0_110], %125 {strides = array<i32>} : memref<676x212xf32, #tpu.memory_space<vmem>>, vector<4x212xf32>,
    %c0_111 = arith.constant 0 : index
    %c12_112 = arith.constant 12 : index
    %127 = vector.load %arg5[%c0_111, %c12_112] : memref<4x560xf32, #tpu.memory_space<vmem>>, vector<4x212xf32>
    %c48 = arith.constant 48 : index
    %c0_113 = arith.constant 0 : index
    %128 = vector.load %arg6[%c48, %c0_113] : memref<676x212xf32, #tpu.memory_space<vmem>>, vector<4x212xf32>
    tpu.vector_store %arg6[%c48, %c0_113], %127 {strides = array<i32>} : memref<676x212xf32, #tpu.memory_space<vmem>>, vector<4x212xf32>,
    %c0_114 = arith.constant 0 : index
    %c28_115 = arith.constant 28 : index
    %129 = vector.load %arg5[%c0_114, %c28_115] : memref<4x560xf32, #tpu.memory_space<vmem>>, vector<4x212xf32>
    %c52 = arith.constant 52 : index
    %c0_116 = arith.constant 0 : index
    %130 = vector.load %arg6[%c52, %c0_116] : memref<676x212xf32, #tpu.memory_space<vmem>>, vector<4x212xf32>
    tpu.vector_store %arg6[%c52, %c0_116], %129 {strides = array<i32>} : memref<676x212xf32, #tpu.memory_space<vmem>>, vector<4x212xf32>,
    %c0_117 = arith.constant 0 : index
    %c29 = arith.constant 29 : index
    %131 = vector.load %arg5[%c0_117, %c29] : memref<4x560xf32, #tpu.memory_space<vmem>>, vector<4x212xf32>
    %c56 = arith.constant 56 : index
    %c0_118 = arith.constant 0 : index
    %132 = vector.load %arg6[%c56, %c0_118] : memref<676x212xf32, #tpu.memory_space<vmem>>, vector<4x212xf32>
    tpu.vector_store %arg6[%c56, %c0_118], %131 {strides = array<i32>} : memref<676x212xf32, #tpu.memory_space<vmem>>, vector<4x212xf32>,
    %c0_119 = arith.constant 0 : index
    %c30 = arith.constant 30 : index
    %133 = vector.load %arg5[%c0_119, %c30] : memref<4x560xf32, #tpu.memory_space<vmem>>, vector<4x212xf32>
    %c60 = arith.constant 60 : index
    %c0_120 = arith.constant 0 : index
    %134 = vector.load %arg6[%c60, %c0_120] : memref<676x212xf32, #tpu.memory_space<vmem>>, vector<4x212xf32>
    tpu.vector_store %arg6[%c60, %c0_120], %133 {strides = array<i32>} : memref<676x212xf32, #tpu.memory_space<vmem>>, vector<4x212xf32>,
    %c0_121 = arith.constant 0 : index
    %c31 = arith.constant 31 : index
    %135 = vector.load %arg5[%c0_121, %c31] : memref<4x560xf32, #tpu.memory_space<vmem>>, vector<4x212xf32>
    %c64 = arith.constant 64 : index
    %c0_122 = arith.constant 0 : index
    %136 = vector.load %arg6[%c64, %c0_122] : memref<676x212xf32, #tpu.memory_space<vmem>>, vector<4x212xf32>
    tpu.vector_store %arg6[%c64, %c0_122], %135 {strides = array<i32>} : memref<676x212xf32, #tpu.memory_space<vmem>>, vector<4x212xf32>,
    %c0_123 = arith.constant 0 : index
    %c32_124 = arith.constant 32 : index
    %137 = vector.load %arg5[%c0_123, %c32_124] : memref<4x560xf32, #tpu.memory_space<vmem>>, vector<4x212xf32>
    %c68 = arith.constant 68 : index
    %c0_125 = arith.constant 0 : index
    %138 = vector.load %arg6[%c68, %c0_125] : memref<676x212xf32, #tpu.memory_space<vmem>>, vector<4x212xf32>
    tpu.vector_store %arg6[%c68, %c0_125], %137 {strides = array<i32>} : memref<676x212xf32, #tpu.memory_space<vmem>>, vector<4x212xf32>,
    %c0_126 = arith.constant 0 : index
    %c33 = arith.constant 33 : index
    %139 = vector.load %arg5[%c0_126, %c33] : memref<4x560xf32, #tpu.memory_space<vmem>>, vector<4x212xf32>
    %c72 = arith.constant 72 : index
    %c0_127 = arith.constant 0 : index
    %140 = vector.load %arg6[%c72, %c0_127] : memref<676x212xf32, #tpu.memory_space<vmem>>, vector<4x212xf32>
    tpu.vector_store %arg6[%c72, %c0_127], %139 {strides = array<i32>} : memref<676x212xf32, #tpu.memory_space<vmem>>, vector<4x212xf32>,
    %c0_128 = arith.constant 0 : index
    %c34_129 = arith.constant 34 : index
    %141 = vector.load %arg5[%c0_128, %c34_129] : memref<4x560xf32, #tpu.memory_space<vmem>>, vector<4x212xf32>
    %c76 = arith.constant 76 : index
    %c0_130 = arith.constant 0 : index
    %142 = vector.load %arg6[%c76, %c0_130] : memref<676x212xf32, #tpu.memory_space<vmem>>, vector<4x212xf32>
    tpu.vector_store %arg6[%c76, %c0_130], %141 {strides = array<i32>} : memref<676x212xf32, #tpu.memory_space<vmem>>, vector<4x212xf32>,
    %c0_131 = arith.constant 0 : index
    %c35 = arith.constant 35 : index
    %143 = vector.load %arg5[%c0_131, %c35] : memref<4x560xf32, #tpu.memory_space<vmem>>, vector<4x212xf32>
    %c80 = arith.constant 80 : index
    %c0_132 = arith.constant 0 : index
    %144 = vector.load %arg6[%c80, %c0_132] : memref<676x212xf32, #tpu.memory_space<vmem>>, vector<4x212xf32>
    tpu.vector_store %arg6[%c80, %c0_132], %143 {strides = array<i32>} : memref<676x212xf32, #tpu.memory_space<vmem>>, vector<4x212xf32>,
    %c0_133 = arith.constant 0 : index
    %c36_134 = arith.constant 36 : index
    %145 = vector.load %arg5[%c0_133, %c36_134] : memref<4x560xf32, #tpu.memory_space<vmem>>, vector<4x212xf32>
    %c84 = arith.constant 84 : index
    %c0_135 = arith.constant 0 : index
    %146 = vector.load %arg6[%c84, %c0_135] : memref<676x212xf32, #tpu.memory_space<vmem>>, vector<4x212xf32>
    tpu.vector_store %arg6[%c84, %c0_135], %145 {strides = array<i32>} : memref<676x212xf32, #tpu.memory_space<vmem>>, vector<4x212xf32>,
    %c0_136 = arith.constant 0 : index
    %c37 = arith.constant 37 : index
    %147 = vector.load %arg5[%c0_136, %c37] : memref<4x560xf32, #tpu.memory_space<vmem>>, vector<4x212xf32>
    %c88 = arith.constant 88 : index
    %c0_137 = arith.constant 0 : index
    %148 = vector.load %arg6[%c88, %c0_137] : memref<676x212xf32, #tpu.memory_space<vmem>>, vector<4x212xf32>
    tpu.vector_store %arg6[%c88, %c0_137], %147 {strides = array<i32>} : memref<676x212xf32, #tpu.memory_space<vmem>>, vector<4x212xf32>,
    %c0_138 = arith.constant 0 : index
    %c38 = arith.constant 38 : index
    %149 = vector.load %arg5[%c0_138, %c38] : memref<4x560xf32, #tpu.memory_space<vmem>>, vector<4x212xf32>
    %c92 = arith.constant 92 : index
    %c0_139 = arith.constant 0 : index
    %150 = vector.load %arg6[%c92, %c0_139] : memref<676x212xf32, #tpu.memory_space<vmem>>, vector<4x212xf32>
    tpu.vector_store %arg6[%c92, %c0_139], %149 {strides = array<i32>} : memref<676x212xf32, #tpu.memory_space<vmem>>, vector<4x212xf32>,
    %c0_140 = arith.constant 0 : index
    %c39 = arith.constant 39 : index
    %151 = vector.load %arg5[%c0_140, %c39] : memref<4x560xf32, #tpu.memory_space<vmem>>, vector<4x212xf32>
    %c96 = arith.constant 96 : index
    %c0_141 = arith.constant 0 : index
    %152 = vector.load %arg6[%c96, %c0_141] : memref<676x212xf32, #tpu.memory_space<vmem>>, vector<4x212xf32>
    tpu.vector_store %arg6[%c96, %c0_141], %151 {strides = array<i32>} : memref<676x212xf32, #tpu.memory_space<vmem>>, vector<4x212xf32>,
    %c0_142 = arith.constant 0 : index
    %c40_143 = arith.constant 40 : index
    %153 = vector.load %arg5[%c0_142, %c40_143] : memref<4x560xf32, #tpu.memory_space<vmem>>, vector<4x212xf32>
    %c100 = arith.constant 100 : index
    %c0_144 = arith.constant 0 : index
    %154 = vector.load %arg6[%c100, %c0_144] : memref<676x212xf32, #tpu.memory_space<vmem>>, vector<4x212xf32>
    tpu.vector_store %arg6[%c100, %c0_144], %153 {strides = array<i32>} : memref<676x212xf32, #tpu.memory_space<vmem>>, vector<4x212xf32>,
    %c0_145 = arith.constant 0 : index
    %c56_146 = arith.constant 56 : index
    %155 = vector.load %arg5[%c0_145, %c56_146] : memref<4x560xf32, #tpu.memory_space<vmem>>, vector<4x212xf32>
    %c104 = arith.constant 104 : index
    %c0_147 = arith.constant 0 : index
    %156 = vector.load %arg6[%c104, %c0_147] : memref<676x212xf32, #tpu.memory_space<vmem>>, vector<4x212xf32>
    tpu.vector_store %arg6[%c104, %c0_147], %155 {strides = array<i32>} : memref<676x212xf32, #tpu.memory_space<vmem>>, vector<4x212xf32>,
    %c0_148 = arith.constant 0 : index
    %c57 = arith.constant 57 : index
    %157 = vector.load %arg5[%c0_148, %c57] : memref<4x560xf32, #tpu.memory_space<vmem>>, vector<4x212xf32>
    %c108 = arith.constant 108 : index
    %c0_149 = arith.constant 0 : index
    %158 = vector.load %arg6[%c108, %c0_149] : memref<676x212xf32, #tpu.memory_space<vmem>>, vector<4x212xf32>
    tpu.vector_store %arg6[%c108, %c0_149], %157 {strides = array<i32>} : memref<676x212xf32, #tpu.memory_space<vmem>>, vector<4x212xf32>,
    %c0_150 = arith.constant 0 : index
    %c58 = arith.constant 58 : index
    %159 = vector.load %arg5[%c0_150, %c58] : memref<4x560xf32, #tpu.memory_space<vmem>>, vector<4x212xf32>
    %c112 = arith.constant 112 : index
    %c0_151 = arith.constant 0 : index
    %160 = vector.load %arg6[%c112, %c0_151] : memref<676x212xf32, #tpu.memory_space<vmem>>, vector<4x212xf32>
    tpu.vector_store %arg6[%c112, %c0_151], %159 {strides = array<i32>} : memref<676x212xf32, #tpu.memory_space<vmem>>, vector<4x212xf32>,
    %c0_152 = arith.constant 0 : index
    %c59 = arith.constant 59 : index
    %161 = vector.load %arg5[%c0_152, %c59] : memref<4x560xf32, #tpu.memory_space<vmem>>, vector<4x212xf32>
    %c116 = arith.constant 116 : index
    %c0_153 = arith.constant 0 : index
    %162 = vector.load %arg6[%c116, %c0_153] : memref<676x212xf32, #tpu.memory_space<vmem>>, vector<4x212xf32>
    tpu.vector_store %arg6[%c116, %c0_153], %161 {strides = array<i32>} : memref<676x212xf32, #tpu.memory_space<vmem>>, vector<4x212xf32>,
    %c0_154 = arith.constant 0 : index
    %c60_155 = arith.constant 60 : index
    %163 = vector.load %arg5[%c0_154, %c60_155] : memref<4x560xf32, #tpu.memory_space<vmem>>, vector<4x212xf32>
    %c120 = arith.constant 120 : index
    %c0_156 = arith.constant 0 : index
    %164 = vector.load %arg6[%c120, %c0_156] : memref<676x212xf32, #tpu.memory_space<vmem>>, vector<4x212xf32>
    tpu.vector_store %arg6[%c120, %c0_156], %163 {strides = array<i32>} : memref<676x212xf32, #tpu.memory_space<vmem>>, vector<4x212xf32>,
    %c0_157 = arith.constant 0 : index
    %c61 = arith.constant 61 : index
    %165 = vector.load %arg5[%c0_157, %c61] : memref<4x560xf32, #tpu.memory_space<vmem>>, vector<4x212xf32>
    %c124 = arith.constant 124 : index
    %c0_158 = arith.constant 0 : index
    %166 = vector.load %arg6[%c124, %c0_158] : memref<676x212xf32, #tpu.memory_space<vmem>>, vector<4x212xf32>
    tpu.vector_store %arg6[%c124, %c0_158], %165 {strides = array<i32>} : memref<676x212xf32, #tpu.memory_space<vmem>>, vector<4x212xf32>,
    %c0_159 = arith.constant 0 : index
    %c62_160 = arith.constant 62 : index
    %167 = vector.load %arg5[%c0_159, %c62_160] : memref<4x560xf32, #tpu.memory_space<vmem>>, vector<4x212xf32>
    %c128 = arith.constant 128 : index
    %c0_161 = arith.constant 0 : index
    %168 = vector.load %arg6[%c128, %c0_161] : memref<676x212xf32, #tpu.memory_space<vmem>>, vector<4x212xf32>
    tpu.vector_store %arg6[%c128, %c0_161], %167 {strides = array<i32>} : memref<676x212xf32, #tpu.memory_space<vmem>>, vector<4x212xf32>,
    %c0_162 = arith.constant 0 : index
    %c63 = arith.constant 63 : index
    %169 = vector.load %arg5[%c0_162, %c63] : memref<4x560xf32, #tpu.memory_space<vmem>>, vector<4x212xf32>
    %c132 = arith.constant 132 : index
    %c0_163 = arith.constant 0 : index
    %170 = vector.load %arg6[%c132, %c0_163] : memref<676x212xf32, #tpu.memory_space<vmem>>, vector<4x212xf32>
    tpu.vector_store %arg6[%c132, %c0_163], %169 {strides = array<i32>} : memref<676x212xf32, #tpu.memory_space<vmem>>, vector<4x212xf32>,
    %c0_164 = arith.constant 0 : index
    %c64_165 = arith.constant 64 : index
    %171 = vector.load %arg5[%c0_164, %c64_165] : memref<4x560xf32, #tpu.memory_space<vmem>>, vector<4x212xf32>
    %c136 = arith.constant 136 : index
    %c0_166 = arith.constant 0 : index
    %172 = vector.load %arg6[%c136, %c0_166] : memref<676x212xf32, #tpu.memory_space<vmem>>, vector<4x212xf32>
    tpu.vector_store %arg6[%c136, %c0_166], %171 {strides = array<i32>} : memref<676x212xf32, #tpu.memory_space<vmem>>, vector<4x212xf32>,
    %c0_167 = arith.constant 0 : index
    %c65 = arith.constant 65 : index
    %173 = vector.load %arg5[%c0_167, %c65] : memref<4x560xf32, #tpu.memory_space<vmem>>, vector<4x212xf32>
    %c140 = arith.constant 140 : index
    %c0_168 = arith.constant 0 : index
    %174 = vector.load %arg6[%c140, %c0_168] : memref<676x212xf32, #tpu.memory_space<vmem>>, vector<4x212xf32>
    tpu.vector_store %arg6[%c140, %c0_168], %173 {strides = array<i32>} : memref<676x212xf32, #tpu.memory_space<vmem>>, vector<4x212xf32>,
    %c0_169 = arith.constant 0 : index
    %c66 = arith.constant 66 : index
    %175 = vector.load %arg5[%c0_169, %c66] : memref<4x560xf32, #tpu.memory_space<vmem>>, vector<4x212xf32>
    %c144 = arith.constant 144 : index
    %c0_170 = arith.constant 0 : index
    %176 = vector.load %arg6[%c144, %c0_170] : memref<676x212xf32, #tpu.memory_space<vmem>>, vector<4x212xf32>
    tpu.vector_store %arg6[%c144, %c0_170], %175 {strides = array<i32>} : memref<676x212xf32, #tpu.memory_space<vmem>>, vector<4x212xf32>,
    %c0_171 = arith.constant 0 : index
    %c67 = arith.constant 67 : index
    %177 = vector.load %arg5[%c0_171, %c67] : memref<4x560xf32, #tpu.memory_space<vmem>>, vector<4x212xf32>
    %c148 = arith.constant 148 : index
    %c0_172 = arith.constant 0 : index
    %178 = vector.load %arg6[%c148, %c0_172] : memref<676x212xf32, #tpu.memory_space<vmem>>, vector<4x212xf32>
    tpu.vector_store %arg6[%c148, %c0_172], %177 {strides = array<i32>} : memref<676x212xf32, #tpu.memory_space<vmem>>, vector<4x212xf32>,
    %c0_173 = arith.constant 0 : index
    %c68_174 = arith.constant 68 : index
    %179 = vector.load %arg5[%c0_173, %c68_174] : memref<4x560xf32, #tpu.memory_space<vmem>>, vector<4x212xf32>
    %c152 = arith.constant 152 : index
    %c0_175 = arith.constant 0 : index
    %180 = vector.load %arg6[%c152, %c0_175] : memref<676x212xf32, #tpu.memory_space<vmem>>, vector<4x212xf32>
    tpu.vector_store %arg6[%c152, %c0_175], %179 {strides = array<i32>} : memref<676x212xf32, #tpu.memory_space<vmem>>, vector<4x212xf32>,
    %c0_176 = arith.constant 0 : index
    %c84_177 = arith.constant 84 : index
    %181 = vector.load %arg5[%c0_176, %c84_177] : memref<4x560xf32, #tpu.memory_space<vmem>>, vector<4x212xf32>
    %c156 = arith.constant 156 : index
    %c0_178 = arith.constant 0 : index
    %182 = vector.load %arg6[%c156, %c0_178] : memref<676x212xf32, #tpu.memory_space<vmem>>, vector<4x212xf32>
    tpu.vector_store %arg6[%c156, %c0_178], %181 {strides = array<i32>} : memref<676x212xf32, #tpu.memory_space<vmem>>, vector<4x212xf32>,
    %c0_179 = arith.constant 0 : index
    %c85 = arith.constant 85 : index
    %183 = vector.load %arg5[%c0_179, %c85] : memref<4x560xf32, #tpu.memory_space<vmem>>, vector<4x212xf32>
    %c160 = arith.constant 160 : index
    %c0_180 = arith.constant 0 : index
    %184 = vector.load %arg6[%c160, %c0_180] : memref<676x212xf32, #tpu.memory_space<vmem>>, vector<4x212xf32>
    tpu.vector_store %arg6[%c160, %c0_180], %183 {strides = array<i32>} : memref<676x212xf32, #tpu.memory_space<vmem>>, vector<4x212xf32>,
    %c0_181 = arith.constant 0 : index
    %c86 = arith.constant 86 : index
    %185 = vector.load %arg5[%c0_181, %c86] : memref<4x560xf32, #tpu.memory_space<vmem>>, vector<4x212xf32>
    %c164 = arith.constant 164 : index
    %c0_182 = arith.constant 0 : index
    %186 = vector.load %arg6[%c164, %c0_182] : memref<676x212xf32, #tpu.memory_space<vmem>>, vector<4x212xf32>
    tpu.vector_store %arg6[%c164, %c0_182], %185 {strides = array<i32>} : memref<676x212xf32, #tpu.memory_space<vmem>>, vector<4x212xf32>,
    %c0_183 = arith.constant 0 : index
    %c87 = arith.constant 87 : index
    %187 = vector.load %arg5[%c0_183, %c87] : memref<4x560xf32, #tpu.memory_space<vmem>>, vector<4x212xf32>
    %c168 = arith.constant 168 : index
    %c0_184 = arith.constant 0 : index
    %188 = vector.load %arg6[%c168, %c0_184] : memref<676x212xf32, #tpu.memory_space<vmem>>, vector<4x212xf32>
    tpu.vector_store %arg6[%c168, %c0_184], %187 {strides = array<i32>} : memref<676x212xf32, #tpu.memory_space<vmem>>, vector<4x212xf32>,
    %c0_185 = arith.constant 0 : index
    %c88_186 = arith.constant 88 : index
    %189 = vector.load %arg5[%c0_185, %c88_186] : memref<4x560xf32, #tpu.memory_space<vmem>>, vector<4x212xf32>
    %c172 = arith.constant 172 : index
    %c0_187 = arith.constant 0 : index
    %190 = vector.load %arg6[%c172, %c0_187] : memref<676x212xf32, #tpu.memory_space<vmem>>, vector<4x212xf32>
    tpu.vector_store %arg6[%c172, %c0_187], %189 {strides = array<i32>} : memref<676x212xf32, #tpu.memory_space<vmem>>, vector<4x212xf32>,
    %c0_188 = arith.constant 0 : index
    %c89 = arith.constant 89 : index
    %191 = vector.load %arg5[%c0_188, %c89] : memref<4x560xf32, #tpu.memory_space<vmem>>, vector<4x212xf32>
    %c176 = arith.constant 176 : index
    %c0_189 = arith.constant 0 : index
    %192 = vector.load %arg6[%c176, %c0_189] : memref<676x212xf32, #tpu.memory_space<vmem>>, vector<4x212xf32>
    tpu.vector_store %arg6[%c176, %c0_189], %191 {strides = array<i32>} : memref<676x212xf32, #tpu.memory_space<vmem>>, vector<4x212xf32>,
    %c0_190 = arith.constant 0 : index
    %c90_191 = arith.constant 90 : index
    %193 = vector.load %arg5[%c0_190, %c90_191] : memref<4x560xf32, #tpu.memory_space<vmem>>, vector<4x212xf32>
    %c180 = arith.constant 180 : index
    %c0_192 = arith.constant 0 : index
    %194 = vector.load %arg6[%c180, %c0_192] : memref<676x212xf32, #tpu.memory_space<vmem>>, vector<4x212xf32>
    tpu.vector_store %arg6[%c180, %c0_192], %193 {strides = array<i32>} : memref<676x212xf32, #tpu.memory_space<vmem>>, vector<4x212xf32>,
    %c0_193 = arith.constant 0 : index
    %c91 = arith.constant 91 : index
    %195 = vector.load %arg5[%c0_193, %c91] : memref<4x560xf32, #tpu.memory_space<vmem>>, vector<4x212xf32>
    %c184 = arith.constant 184 : index
    %c0_194 = arith.constant 0 : index
    %196 = vector.load %arg6[%c184, %c0_194] : memref<676x212xf32, #tpu.memory_space<vmem>>, vector<4x212xf32>
    tpu.vector_store %arg6[%c184, %c0_194], %195 {strides = array<i32>} : memref<676x212xf32, #tpu.memory_space<vmem>>, vector<4x212xf32>,
    %c0_195 = arith.constant 0 : index
    %c92_196 = arith.constant 92 : index
    %197 = vector.load %arg5[%c0_195, %c92_196] : memref<4x560xf32, #tpu.memory_space<vmem>>, vector<4x212xf32>
    %c188 = arith.constant 188 : index
    %c0_197 = arith.constant 0 : index
    %198 = vector.load %arg6[%c188, %c0_197] : memref<676x212xf32, #tpu.memory_space<vmem>>, vector<4x212xf32>
    tpu.vector_store %arg6[%c188, %c0_197], %197 {strides = array<i32>} : memref<676x212xf32, #tpu.memory_space<vmem>>, vector<4x212xf32>,
    %c0_198 = arith.constant 0 : index
    %c93 = arith.constant 93 : index
    %199 = vector.load %arg5[%c0_198, %c93] : memref<4x560xf32, #tpu.memory_space<vmem>>, vector<4x212xf32>
    %c192 = arith.constant 192 : index
    %c0_199 = arith.constant 0 : index
    %200 = vector.load %arg6[%c192, %c0_199] : memref<676x212xf32, #tpu.memory_space<vmem>>, vector<4x212xf32>
    tpu.vector_store %arg6[%c192, %c0_199], %199 {strides = array<i32>} : memref<676x212xf32, #tpu.memory_space<vmem>>, vector<4x212xf32>,
    %c0_200 = arith.constant 0 : index
    %c94 = arith.constant 94 : index
    %201 = vector.load %arg5[%c0_200, %c94] : memref<4x560xf32, #tpu.memory_space<vmem>>, vector<4x212xf32>
    %c196 = arith.constant 196 : index
    %c0_201 = arith.constant 0 : index
    %202 = vector.load %arg6[%c196, %c0_201] : memref<676x212xf32, #tpu.memory_space<vmem>>, vector<4x212xf32>
    tpu.vector_store %arg6[%c196, %c0_201], %201 {strides = array<i32>} : memref<676x212xf32, #tpu.memory_space<vmem>>, vector<4x212xf32>,
    %c0_202 = arith.constant 0 : index
    %c95 = arith.constant 95 : index
    %203 = vector.load %arg5[%c0_202, %c95] : memref<4x560xf32, #tpu.memory_space<vmem>>, vector<4x212xf32>
    %c200 = arith.constant 200 : index
    %c0_203 = arith.constant 0 : index
    %204 = vector.load %arg6[%c200, %c0_203] : memref<676x212xf32, #tpu.memory_space<vmem>>, vector<4x212xf32>
    tpu.vector_store %arg6[%c200, %c0_203], %203 {strides = array<i32>} : memref<676x212xf32, #tpu.memory_space<vmem>>, vector<4x212xf32>,
    %c0_204 = arith.constant 0 : index
    %c96_205 = arith.constant 96 : index
    %205 = vector.load %arg5[%c0_204, %c96_205] : memref<4x560xf32, #tpu.memory_space<vmem>>, vector<4x212xf32>
    %c204 = arith.constant 204 : index
    %c0_206 = arith.constant 0 : index
    %206 = vector.load %arg6[%c204, %c0_206] : memref<676x212xf32, #tpu.memory_space<vmem>>, vector<4x212xf32>
    tpu.vector_store %arg6[%c204, %c0_206], %205 {strides = array<i32>} : memref<676x212xf32, #tpu.memory_space<vmem>>, vector<4x212xf32>,
    %c0_207 = arith.constant 0 : index
    %c112_208 = arith.constant 112 : index
    %207 = vector.load %arg5[%c0_207, %c112_208] : memref<4x560xf32, #tpu.memory_space<vmem>>, vector<4x212xf32>
    %c208 = arith.constant 208 : index
    %c0_209 = arith.constant 0 : index
    %208 = vector.load %arg6[%c208, %c0_209] : memref<676x212xf32, #tpu.memory_space<vmem>>, vector<4x212xf32>
    tpu.vector_store %arg6[%c208, %c0_209], %207 {strides = array<i32>} : memref<676x212xf32, #tpu.memory_space<vmem>>, vector<4x212xf32>,
    %c0_210 = arith.constant 0 : index
    %c113 = arith.constant 113 : index
    %209 = vector.load %arg5[%c0_210, %c113] : memref<4x560xf32, #tpu.memory_space<vmem>>, vector<4x212xf32>
    %c212 = arith.constant 212 : index
    %c0_211 = arith.constant 0 : index
    %210 = vector.load %arg6[%c212, %c0_211] : memref<676x212xf32, #tpu.memory_space<vmem>>, vector<4x212xf32>
    tpu.vector_store %arg6[%c212, %c0_211], %209 {strides = array<i32>} : memref<676x212xf32, #tpu.memory_space<vmem>>, vector<4x212xf32>,
    %c0_212 = arith.constant 0 : index
    %c114 = arith.constant 114 : index
    %211 = vector.load %arg5[%c0_212, %c114] : memref<4x560xf32, #tpu.memory_space<vmem>>, vector<4x212xf32>
    %c216 = arith.constant 216 : index
    %c0_213 = arith.constant 0 : index
    %212 = vector.load %arg6[%c216, %c0_213] : memref<676x212xf32, #tpu.memory_space<vmem>>, vector<4x212xf32>
    tpu.vector_store %arg6[%c216, %c0_213], %211 {strides = array<i32>} : memref<676x212xf32, #tpu.memory_space<vmem>>, vector<4x212xf32>,
    %c0_214 = arith.constant 0 : index
    %c115 = arith.constant 115 : index
    %213 = vector.load %arg5[%c0_214, %c115] : memref<4x560xf32, #tpu.memory_space<vmem>>, vector<4x212xf32>
    %c220 = arith.constant 220 : index
    %c0_215 = arith.constant 0 : index
    %214 = vector.load %arg6[%c220, %c0_215] : memref<676x212xf32, #tpu.memory_space<vmem>>, vector<4x212xf32>
    tpu.vector_store %arg6[%c220, %c0_215], %213 {strides = array<i32>} : memref<676x212xf32, #tpu.memory_space<vmem>>, vector<4x212xf32>,
    %c0_216 = arith.constant 0 : index
    %c116_217 = arith.constant 116 : index
    %215 = vector.load %arg5[%c0_216, %c116_217] : memref<4x560xf32, #tpu.memory_space<vmem>>, vector<4x212xf32>
    %c224 = arith.constant 224 : index
    %c0_218 = arith.constant 0 : index
    %216 = vector.load %arg6[%c224, %c0_218] : memref<676x212xf32, #tpu.memory_space<vmem>>, vector<4x212xf32>
    tpu.vector_store %arg6[%c224, %c0_218], %215 {strides = array<i32>} : memref<676x212xf32, #tpu.memory_space<vmem>>, vector<4x212xf32>,
    %c0_219 = arith.constant 0 : index
    %c117 = arith.constant 117 : index
    %217 = vector.load %arg5[%c0_219, %c117] : memref<4x560xf32, #tpu.memory_space<vmem>>, vector<4x212xf32>
    %c228 = arith.constant 228 : index
    %c0_220 = arith.constant 0 : index
    %218 = vector.load %arg6[%c228, %c0_220] : memref<676x212xf32, #tpu.memory_space<vmem>>, vector<4x212xf32>
    tpu.vector_store %arg6[%c228, %c0_220], %217 {strides = array<i32>} : memref<676x212xf32, #tpu.memory_space<vmem>>, vector<4x212xf32>,
    %c0_221 = arith.constant 0 : index
    %c118_222 = arith.constant 118 : index
    %219 = vector.load %arg5[%c0_221, %c118_222] : memref<4x560xf32, #tpu.memory_space<vmem>>, vector<4x212xf32>
    %c232 = arith.constant 232 : index
    %c0_223 = arith.constant 0 : index
    %220 = vector.load %arg6[%c232, %c0_223] : memref<676x212xf32, #tpu.memory_space<vmem>>, vector<4x212xf32>
    tpu.vector_store %arg6[%c232, %c0_223], %219 {strides = array<i32>} : memref<676x212xf32, #tpu.memory_space<vmem>>, vector<4x212xf32>,
    %c0_224 = arith.constant 0 : index
    %c119 = arith.constant 119 : index
    %221 = vector.load %arg5[%c0_224, %c119] : memref<4x560xf32, #tpu.memory_space<vmem>>, vector<4x212xf32>
    %c236 = arith.constant 236 : index
    %c0_225 = arith.constant 0 : index
    %222 = vector.load %arg6[%c236, %c0_225] : memref<676x212xf32, #tpu.memory_space<vmem>>, vector<4x212xf32>
    tpu.vector_store %arg6[%c236, %c0_225], %221 {strides = array<i32>} : memref<676x212xf32, #tpu.memory_space<vmem>>, vector<4x212xf32>,
    %c0_226 = arith.constant 0 : index
    %c120_227 = arith.constant 120 : index
    %223 = vector.load %arg5[%c0_226, %c120_227] : memref<4x560xf32, #tpu.memory_space<vmem>>, vector<4x212xf32>
    %c240 = arith.constant 240 : index
    %c0_228 = arith.constant 0 : index
    %224 = vector.load %arg6[%c240, %c0_228] : memref<676x212xf32, #tpu.memory_space<vmem>>, vector<4x212xf32>
    tpu.vector_store %arg6[%c240, %c0_228], %223 {strides = array<i32>} : memref<676x212xf32, #tpu.memory_space<vmem>>, vector<4x212xf32>,
    %c0_229 = arith.constant 0 : index
    %c121 = arith.constant 121 : index
    %225 = vector.load %arg5[%c0_229, %c121] : memref<4x560xf32, #tpu.memory_space<vmem>>, vector<4x212xf32>
    %c244 = arith.constant 244 : index
    %c0_230 = arith.constant 0 : index
    %226 = vector.load %arg6[%c244, %c0_230] : memref<676x212xf32, #tpu.memory_space<vmem>>, vector<4x212xf32>
    tpu.vector_store %arg6[%c244, %c0_230], %225 {strides = array<i32>} : memref<676x212xf32, #tpu.memory_space<vmem>>, vector<4x212xf32>,
    %c0_231 = arith.constant 0 : index
    %c122 = arith.constant 122 : index
    %227 = vector.load %arg5[%c0_231, %c122] : memref<4x560xf32, #tpu.memory_space<vmem>>, vector<4x212xf32>
    %c248 = arith.constant 248 : index
    %c0_232 = arith.constant 0 : index
    %228 = vector.load %arg6[%c248, %c0_232] : memref<676x212xf32, #tpu.memory_space<vmem>>, vector<4x212xf32>
    tpu.vector_store %arg6[%c248, %c0_232], %227 {strides = array<i32>} : memref<676x212xf32, #tpu.memory_space<vmem>>, vector<4x212xf32>,
    %c0_233 = arith.constant 0 : index
    %c123 = arith.constant 123 : index
    %229 = vector.load %arg5[%c0_233, %c123] : memref<4x560xf32, #tpu.memory_space<vmem>>, vector<4x212xf32>
    %c252 = arith.constant 252 : index
    %c0_234 = arith.constant 0 : index
    %230 = vector.load %arg6[%c252, %c0_234] : memref<676x212xf32, #tpu.memory_space<vmem>>, vector<4x212xf32>
    tpu.vector_store %arg6[%c252, %c0_234], %229 {strides = array<i32>} : memref<676x212xf32, #tpu.memory_space<vmem>>, vector<4x212xf32>,
    %c0_235 = arith.constant 0 : index
    %c124_236 = arith.constant 124 : index
    %231 = vector.load %arg5[%c0_235, %c124_236] : memref<4x560xf32, #tpu.memory_space<vmem>>, vector<4x212xf32>
    %c256 = arith.constant 256 : index
    %c0_237 = arith.constant 0 : index
    %232 = vector.load %arg6[%c256, %c0_237] : memref<676x212xf32, #tpu.memory_space<vmem>>, vector<4x212xf32>
    tpu.vector_store %arg6[%c256, %c0_237], %231 {strides = array<i32>} : memref<676x212xf32, #tpu.memory_space<vmem>>, vector<4x212xf32>,
    %c0_238 = arith.constant 0 : index
    %c140_239 = arith.constant 140 : index
    %233 = vector.load %arg5[%c0_238, %c140_239] : memref<4x560xf32, #tpu.memory_space<vmem>>, vector<4x212xf32>
    %c260 = arith.constant 260 : index
    %c0_240 = arith.constant 0 : index
    %234 = vector.load %arg6[%c260, %c0_240] : memref<676x212xf32, #tpu.memory_space<vmem>>, vector<4x212xf32>
    tpu.vector_store %arg6[%c260, %c0_240], %233 {strides = array<i32>} : memref<676x212xf32, #tpu.memory_space<vmem>>, vector<4x212xf32>,
    %c0_241 = arith.constant 0 : index
    %c141 = arith.constant 141 : index
    %235 = vector.load %arg5[%c0_241, %c141] : memref<4x560xf32, #tpu.memory_space<vmem>>, vector<4x212xf32>
    %c264 = arith.constant 264 : index
    %c0_242 = arith.constant 0 : index
    %236 = vector.load %arg6[%c264, %c0_242] : memref<676x212xf32, #tpu.memory_space<vmem>>, vector<4x212xf32>
    tpu.vector_store %arg6[%c264, %c0_242], %235 {strides = array<i32>} : memref<676x212xf32, #tpu.memory_space<vmem>>, vector<4x212xf32>,
    %c0_243 = arith.constant 0 : index
    %c142 = arith.constant 142 : index
    %237 = vector.load %arg5[%c0_243, %c142] : memref<4x560xf32, #tpu.memory_space<vmem>>, vector<4x212xf32>
    %c268 = arith.constant 268 : index
    %c0_244 = arith.constant 0 : index
    %238 = vector.load %arg6[%c268, %c0_244] : memref<676x212xf32, #tpu.memory_space<vmem>>, vector<4x212xf32>
    tpu.vector_store %arg6[%c268, %c0_244], %237 {strides = array<i32>} : memref<676x212xf32, #tpu.memory_space<vmem>>, vector<4x212xf32>,
    %c0_245 = arith.constant 0 : index
    %c143 = arith.constant 143 : index
    %239 = vector.load %arg5[%c0_245, %c143] : memref<4x560xf32, #tpu.memory_space<vmem>>, vector<4x212xf32>
    %c272 = arith.constant 272 : index
    %c0_246 = arith.constant 0 : index
    %240 = vector.load %arg6[%c272, %c0_246] : memref<676x212xf32, #tpu.memory_space<vmem>>, vector<4x212xf32>
    tpu.vector_store %arg6[%c272, %c0_246], %239 {strides = array<i32>} : memref<676x212xf32, #tpu.memory_space<vmem>>, vector<4x212xf32>,
    %c0_247 = arith.constant 0 : index
    %c144_248 = arith.constant 144 : index
    %241 = vector.load %arg5[%c0_247, %c144_248] : memref<4x560xf32, #tpu.memory_space<vmem>>, vector<4x212xf32>
    %c276 = arith.constant 276 : index
    %c0_249 = arith.constant 0 : index
    %242 = vector.load %arg6[%c276, %c0_249] : memref<676x212xf32, #tpu.memory_space<vmem>>, vector<4x212xf32>
    tpu.vector_store %arg6[%c276, %c0_249], %241 {strides = array<i32>} : memref<676x212xf32, #tpu.memory_space<vmem>>, vector<4x212xf32>,
    %c0_250 = arith.constant 0 : index
    %c145 = arith.constant 145 : index
    %243 = vector.load %arg5[%c0_250, %c145] : memref<4x560xf32, #tpu.memory_space<vmem>>, vector<4x212xf32>
    %c280 = arith.constant 280 : index
    %c0_251 = arith.constant 0 : index
    %244 = vector.load %arg6[%c280, %c0_251] : memref<676x212xf32, #tpu.memory_space<vmem>>, vector<4x212xf32>
    tpu.vector_store %arg6[%c280, %c0_251], %243 {strides = array<i32>} : memref<676x212xf32, #tpu.memory_space<vmem>>, vector<4x212xf32>,
    %c0_252 = arith.constant 0 : index
    %c146_253 = arith.constant 146 : index
    %245 = vector.load %arg5[%c0_252, %c146_253] : memref<4x560xf32, #tpu.memory_space<vmem>>, vector<4x212xf32>
    %c284 = arith.constant 284 : index
    %c0_254 = arith.constant 0 : index
    %246 = vector.load %arg6[%c284, %c0_254] : memref<676x212xf32, #tpu.memory_space<vmem>>, vector<4x212xf32>
    tpu.vector_store %arg6[%c284, %c0_254], %245 {strides = array<i32>} : memref<676x212xf32, #tpu.memory_space<vmem>>, vector<4x212xf32>,
    %c0_255 = arith.constant 0 : index
    %c147 = arith.constant 147 : index
    %247 = vector.load %arg5[%c0_255, %c147] : memref<4x560xf32, #tpu.memory_space<vmem>>, vector<4x212xf32>
    %c288 = arith.constant 288 : index
    %c0_256 = arith.constant 0 : index
    %248 = vector.load %arg6[%c288, %c0_256] : memref<676x212xf32, #tpu.memory_space<vmem>>, vector<4x212xf32>
    tpu.vector_store %arg6[%c288, %c0_256], %247 {strides = array<i32>} : memref<676x212xf32, #tpu.memory_space<vmem>>, vector<4x212xf32>,
    %c0_257 = arith.constant 0 : index
    %c148_258 = arith.constant 148 : index
    %249 = vector.load %arg5[%c0_257, %c148_258] : memref<4x560xf32, #tpu.memory_space<vmem>>, vector<4x212xf32>
    %c292 = arith.constant 292 : index
    %c0_259 = arith.constant 0 : index
    %250 = vector.load %arg6[%c292, %c0_259] : memref<676x212xf32, #tpu.memory_space<vmem>>, vector<4x212xf32>
    tpu.vector_store %arg6[%c292, %c0_259], %249 {strides = array<i32>} : memref<676x212xf32, #tpu.memory_space<vmem>>, vector<4x212xf32>,
    %c0_260 = arith.constant 0 : index
    %c149 = arith.constant 149 : index
    %251 = vector.load %arg5[%c0_260, %c149] : memref<4x560xf32, #tpu.memory_space<vmem>>, vector<4x212xf32>
    %c296 = arith.constant 296 : index
    %c0_261 = arith.constant 0 : index
    %252 = vector.load %arg6[%c296, %c0_261] : memref<676x212xf32, #tpu.memory_space<vmem>>, vector<4x212xf32>
    tpu.vector_store %arg6[%c296, %c0_261], %251 {strides = array<i32>} : memref<676x212xf32, #tpu.memory_space<vmem>>, vector<4x212xf32>,
    %c0_262 = arith.constant 0 : index
    %c150 = arith.constant 150 : index
    %253 = vector.load %arg5[%c0_262, %c150] : memref<4x560xf32, #tpu.memory_space<vmem>>, vector<4x212xf32>
    %c300 = arith.constant 300 : index
    %c0_263 = arith.constant 0 : index
    %254 = vector.load %arg6[%c300, %c0_263] : memref<676x212xf32, #tpu.memory_space<vmem>>, vector<4x212xf32>
    tpu.vector_store %arg6[%c300, %c0_263], %253 {strides = array<i32>} : memref<676x212xf32, #tpu.memory_space<vmem>>, vector<4x212xf32>,
    %c0_264 = arith.constant 0 : index
    %c151 = arith.constant 151 : index
    %255 = vector.load %arg5[%c0_264, %c151] : memref<4x560xf32, #tpu.memory_space<vmem>>, vector<4x212xf32>
    %c304 = arith.constant 304 : index
    %c0_265 = arith.constant 0 : index
    %256 = vector.load %arg6[%c304, %c0_265] : memref<676x212xf32, #tpu.memory_space<vmem>>, vector<4x212xf32>
    tpu.vector_store %arg6[%c304, %c0_265], %255 {strides = array<i32>} : memref<676x212xf32, #tpu.memory_space<vmem>>, vector<4x212xf32>,
    %c0_266 = arith.constant 0 : index
    %c152_267 = arith.constant 152 : index
    %257 = vector.load %arg5[%c0_266, %c152_267] : memref<4x560xf32, #tpu.memory_space<vmem>>, vector<4x212xf32>
    %c308 = arith.constant 308 : index
    %c0_268 = arith.constant 0 : index
    %258 = vector.load %arg6[%c308, %c0_268] : memref<676x212xf32, #tpu.memory_space<vmem>>, vector<4x212xf32>
    tpu.vector_store %arg6[%c308, %c0_268], %257 {strides = array<i32>} : memref<676x212xf32, #tpu.memory_space<vmem>>, vector<4x212xf32>,
    %c0_269 = arith.constant 0 : index
    %c168_270 = arith.constant 168 : index
    %259 = vector.load %arg5[%c0_269, %c168_270] : memref<4x560xf32, #tpu.memory_space<vmem>>, vector<4x212xf32>
    %c312 = arith.constant 312 : index
    %c0_271 = arith.constant 0 : index
    %260 = vector.load %arg6[%c312, %c0_271] : memref<676x212xf32, #tpu.memory_space<vmem>>, vector<4x212xf32>
    tpu.vector_store %arg6[%c312, %c0_271], %259 {strides = array<i32>} : memref<676x212xf32, #tpu.memory_space<vmem>>, vector<4x212xf32>,
    %c0_272 = arith.constant 0 : index
    %c169 = arith.constant 169 : index
    %261 = vector.load %arg5[%c0_272, %c169] : memref<4x560xf32, #tpu.memory_space<vmem>>, vector<4x212xf32>
    %c316 = arith.constant 316 : index
    %c0_273 = arith.constant 0 : index
    %262 = vector.load %arg6[%c316, %c0_273] : memref<676x212xf32, #tpu.memory_space<vmem>>, vector<4x212xf32>
    tpu.vector_store %arg6[%c316, %c0_273], %261 {strides = array<i32>} : memref<676x212xf32, #tpu.memory_space<vmem>>, vector<4x212xf32>,
    %c0_274 = arith.constant 0 : index
    %c170 = arith.constant 170 : index
    %263 = vector.load %arg5[%c0_274, %c170] : memref<4x560xf32, #tpu.memory_space<vmem>>, vector<4x212xf32>
    %c320 = arith.constant 320 : index
    %c0_275 = arith.constant 0 : index
    %264 = vector.load %arg6[%c320, %c0_275] : memref<676x212xf32, #tpu.memory_space<vmem>>, vector<4x212xf32>
    tpu.vector_store %arg6[%c320, %c0_275], %263 {strides = array<i32>} : memref<676x212xf32, #tpu.memory_space<vmem>>, vector<4x212xf32>,
    %c0_276 = arith.constant 0 : index
    %c171 = arith.constant 171 : index
    %265 = vector.load %arg5[%c0_276, %c171] : memref<4x560xf32, #tpu.memory_space<vmem>>, vector<4x212xf32>
    %c324 = arith.constant 324 : index
    %c0_277 = arith.constant 0 : index
    %266 = vector.load %arg6[%c324, %c0_277] : memref<676x212xf32, #tpu.memory_space<vmem>>, vector<4x212xf32>
    tpu.vector_store %arg6[%c324, %c0_277], %265 {strides = array<i32>} : memref<676x212xf32, #tpu.memory_space<vmem>>, vector<4x212xf32>,
    %c0_278 = arith.constant 0 : index
    %c172_279 = arith.constant 172 : index
    %267 = vector.load %arg5[%c0_278, %c172_279] : memref<4x560xf32, #tpu.memory_space<vmem>>, vector<4x212xf32>
    %c328 = arith.constant 328 : index
    %c0_280 = arith.constant 0 : index
    %268 = vector.load %arg6[%c328, %c0_280] : memref<676x212xf32, #tpu.memory_space<vmem>>, vector<4x212xf32>
    tpu.vector_store %arg6[%c328, %c0_280], %267 {strides = array<i32>} : memref<676x212xf32, #tpu.memory_space<vmem>>, vector<4x212xf32>,
    %c0_281 = arith.constant 0 : index
    %c173 = arith.constant 173 : index
    %269 = vector.load %arg5[%c0_281, %c173] : memref<4x560xf32, #tpu.memory_space<vmem>>, vector<4x212xf32>
    %c332 = arith.constant 332 : index
    %c0_282 = arith.constant 0 : index
    %270 = vector.load %arg6[%c332, %c0_282] : memref<676x212xf32, #tpu.memory_space<vmem>>, vector<4x212xf32>
    tpu.vector_store %arg6[%c332, %c0_282], %269 {strides = array<i32>} : memref<676x212xf32, #tpu.memory_space<vmem>>, vector<4x212xf32>,
    %c0_283 = arith.constant 0 : index
    %c174_284 = arith.constant 174 : index
    %271 = vector.load %arg5[%c0_283, %c174_284] : memref<4x560xf32, #tpu.memory_space<vmem>>, vector<4x212xf32>
    %c336 = arith.constant 336 : index
    %c0_285 = arith.constant 0 : index
    %272 = vector.load %arg6[%c336, %c0_285] : memref<676x212xf32, #tpu.memory_space<vmem>>, vector<4x212xf32>
    tpu.vector_store %arg6[%c336, %c0_285], %271 {strides = array<i32>} : memref<676x212xf32, #tpu.memory_space<vmem>>, vector<4x212xf32>,
    %c0_286 = arith.constant 0 : index
    %c175 = arith.constant 175 : index
    %273 = vector.load %arg5[%c0_286, %c175] : memref<4x560xf32, #tpu.memory_space<vmem>>, vector<4x212xf32>
    %c340 = arith.constant 340 : index
    %c0_287 = arith.constant 0 : index
    %274 = vector.load %arg6[%c340, %c0_287] : memref<676x212xf32, #tpu.memory_space<vmem>>, vector<4x212xf32>
    tpu.vector_store %arg6[%c340, %c0_287], %273 {strides = array<i32>} : memref<676x212xf32, #tpu.memory_space<vmem>>, vector<4x212xf32>,
    %c0_288 = arith.constant 0 : index
    %c176_289 = arith.constant 176 : index
    %275 = vector.load %arg5[%c0_288, %c176_289] : memref<4x560xf32, #tpu.memory_space<vmem>>, vector<4x212xf32>
    %c344 = arith.constant 344 : index
    %c0_290 = arith.constant 0 : index
    %276 = vector.load %arg6[%c344, %c0_290] : memref<676x212xf32, #tpu.memory_space<vmem>>, vector<4x212xf32>
    tpu.vector_store %arg6[%c344, %c0_290], %275 {strides = array<i32>} : memref<676x212xf32, #tpu.memory_space<vmem>>, vector<4x212xf32>,
    %c0_291 = arith.constant 0 : index
    %c177 = arith.constant 177 : index
    %277 = vector.load %arg5[%c0_291, %c177] : memref<4x560xf32, #tpu.memory_space<vmem>>, vector<4x212xf32>
    %c348 = arith.constant 348 : index
    %c0_292 = arith.constant 0 : index
    %278 = vector.load %arg6[%c348, %c0_292] : memref<676x212xf32, #tpu.memory_space<vmem>>, vector<4x212xf32>
    tpu.vector_store %arg6[%c348, %c0_292], %277 {strides = array<i32>} : memref<676x212xf32, #tpu.memory_space<vmem>>, vector<4x212xf32>,
    %c0_293 = arith.constant 0 : index
    %c178 = arith.constant 178 : index
    %279 = vector.load %arg5[%c0_293, %c178] : memref<4x560xf32, #tpu.memory_space<vmem>>, vector<4x212xf32>
    %c352 = arith.constant 352 : index
    %c0_294 = arith.constant 0 : index
    %280 = vector.load %arg6[%c352, %c0_294] : memref<676x212xf32, #tpu.memory_space<vmem>>, vector<4x212xf32>
    tpu.vector_store %arg6[%c352, %c0_294], %279 {strides = array<i32>} : memref<676x212xf32, #tpu.memory_space<vmem>>, vector<4x212xf32>,
    %c0_295 = arith.constant 0 : index
    %c179 = arith.constant 179 : index
    %281 = vector.load %arg5[%c0_295, %c179] : memref<4x560xf32, #tpu.memory_space<vmem>>, vector<4x212xf32>
    %c356 = arith.constant 356 : index
    %c0_296 = arith.constant 0 : index
    %282 = vector.load %arg6[%c356, %c0_296] : memref<676x212xf32, #tpu.memory_space<vmem>>, vector<4x212xf32>
    tpu.vector_store %arg6[%c356, %c0_296], %281 {strides = array<i32>} : memref<676x212xf32, #tpu.memory_space<vmem>>, vector<4x212xf32>,
    %c0_297 = arith.constant 0 : index
    %c180_298 = arith.constant 180 : index
    %283 = vector.load %arg5[%c0_297, %c180_298] : memref<4x560xf32, #tpu.memory_space<vmem>>, vector<4x212xf32>
    %c360 = arith.constant 360 : index
    %c0_299 = arith.constant 0 : index
    %284 = vector.load %arg6[%c360, %c0_299] : memref<676x212xf32, #tpu.memory_space<vmem>>, vector<4x212xf32>
    tpu.vector_store %arg6[%c360, %c0_299], %283 {strides = array<i32>} : memref<676x212xf32, #tpu.memory_space<vmem>>, vector<4x212xf32>,
    %c0_300 = arith.constant 0 : index
    %c196_301 = arith.constant 196 : index
    %285 = vector.load %arg5[%c0_300, %c196_301] : memref<4x560xf32, #tpu.memory_space<vmem>>, vector<4x212xf32>
    %c364 = arith.constant 364 : index
    %c0_302 = arith.constant 0 : index
    %286 = vector.load %arg6[%c364, %c0_302] : memref<676x212xf32, #tpu.memory_space<vmem>>, vector<4x212xf32>
    tpu.vector_store %arg6[%c364, %c0_302], %285 {strides = array<i32>} : memref<676x212xf32, #tpu.memory_space<vmem>>, vector<4x212xf32>,
    %c0_303 = arith.constant 0 : index
    %c197 = arith.constant 197 : index
    %287 = vector.load %arg5[%c0_303, %c197] : memref<4x560xf32, #tpu.memory_space<vmem>>, vector<4x212xf32>
    %c368 = arith.constant 368 : index
    %c0_304 = arith.constant 0 : index
    %288 = vector.load %arg6[%c368, %c0_304] : memref<676x212xf32, #tpu.memory_space<vmem>>, vector<4x212xf32>
    tpu.vector_store %arg6[%c368, %c0_304], %287 {strides = array<i32>} : memref<676x212xf32, #tpu.memory_space<vmem>>, vector<4x212xf32>,
    %c0_305 = arith.constant 0 : index
    %c198 = arith.constant 198 : index
    %289 = vector.load %arg5[%c0_305, %c198] : memref<4x560xf32, #tpu.memory_space<vmem>>, vector<4x212xf32>
    %c372 = arith.constant 372 : index
    %c0_306 = arith.constant 0 : index
    %290 = vector.load %arg6[%c372, %c0_306] : memref<676x212xf32, #tpu.memory_space<vmem>>, vector<4x212xf32>
    tpu.vector_store %arg6[%c372, %c0_306], %289 {strides = array<i32>} : memref<676x212xf32, #tpu.memory_space<vmem>>, vector<4x212xf32>,
    %c0_307 = arith.constant 0 : index
    %c199 = arith.constant 199 : index
    %291 = vector.load %arg5[%c0_307, %c199] : memref<4x560xf32, #tpu.memory_space<vmem>>, vector<4x212xf32>
    %c376 = arith.constant 376 : index
    %c0_308 = arith.constant 0 : index
    %292 = vector.load %arg6[%c376, %c0_308] : memref<676x212xf32, #tpu.memory_space<vmem>>, vector<4x212xf32>
    tpu.vector_store %arg6[%c376, %c0_308], %291 {strides = array<i32>} : memref<676x212xf32, #tpu.memory_space<vmem>>, vector<4x212xf32>,
    %c0_309 = arith.constant 0 : index
    %c200_310 = arith.constant 200 : index
    %293 = vector.load %arg5[%c0_309, %c200_310] : memref<4x560xf32, #tpu.memory_space<vmem>>, vector<4x212xf32>
    %c380 = arith.constant 380 : index
    %c0_311 = arith.constant 0 : index
    %294 = vector.load %arg6[%c380, %c0_311] : memref<676x212xf32, #tpu.memory_space<vmem>>, vector<4x212xf32>
    tpu.vector_store %arg6[%c380, %c0_311], %293 {strides = array<i32>} : memref<676x212xf32, #tpu.memory_space<vmem>>, vector<4x212xf32>,
    %c0_312 = arith.constant 0 : index
    %c201 = arith.constant 201 : index
    %295 = vector.load %arg5[%c0_312, %c201] : memref<4x560xf32, #tpu.memory_space<vmem>>, vector<4x212xf32>
    %c384 = arith.constant 384 : index
    %c0_313 = arith.constant 0 : index
    %296 = vector.load %arg6[%c384, %c0_313] : memref<676x212xf32, #tpu.memory_space<vmem>>, vector<4x212xf32>
    tpu.vector_store %arg6[%c384, %c0_313], %295 {strides = array<i32>} : memref<676x212xf32, #tpu.memory_space<vmem>>, vector<4x212xf32>,
    %c0_314 = arith.constant 0 : index
    %c202_315 = arith.constant 202 : index
    %297 = vector.load %arg5[%c0_314, %c202_315] : memref<4x560xf32, #tpu.memory_space<vmem>>, vector<4x212xf32>
    %c388 = arith.constant 388 : index
    %c0_316 = arith.constant 0 : index
    %298 = vector.load %arg6[%c388, %c0_316] : memref<676x212xf32, #tpu.memory_space<vmem>>, vector<4x212xf32>
    tpu.vector_store %arg6[%c388, %c0_316], %297 {strides = array<i32>} : memref<676x212xf32, #tpu.memory_space<vmem>>, vector<4x212xf32>,
    %c0_317 = arith.constant 0 : index
    %c203 = arith.constant 203 : index
    %299 = vector.load %arg5[%c0_317, %c203] : memref<4x560xf32, #tpu.memory_space<vmem>>, vector<4x212xf32>
    %c392 = arith.constant 392 : index
    %c0_318 = arith.constant 0 : index
    %300 = vector.load %arg6[%c392, %c0_318] : memref<676x212xf32, #tpu.memory_space<vmem>>, vector<4x212xf32>
    tpu.vector_store %arg6[%c392, %c0_318], %299 {strides = array<i32>} : memref<676x212xf32, #tpu.memory_space<vmem>>, vector<4x212xf32>,
    %c0_319 = arith.constant 0 : index
    %c204_320 = arith.constant 204 : index
    %301 = vector.load %arg5[%c0_319, %c204_320] : memref<4x560xf32, #tpu.memory_space<vmem>>, vector<4x212xf32>
    %c396 = arith.constant 396 : index
    %c0_321 = arith.constant 0 : index
    %302 = vector.load %arg6[%c396, %c0_321] : memref<676x212xf32, #tpu.memory_space<vmem>>, vector<4x212xf32>
    tpu.vector_store %arg6[%c396, %c0_321], %301 {strides = array<i32>} : memref<676x212xf32, #tpu.memory_space<vmem>>, vector<4x212xf32>,
    %c0_322 = arith.constant 0 : index
    %c205 = arith.constant 205 : index
    %303 = vector.load %arg5[%c0_322, %c205] : memref<4x560xf32, #tpu.memory_space<vmem>>, vector<4x212xf32>
    %c400 = arith.constant 400 : index
    %c0_323 = arith.constant 0 : index
    %304 = vector.load %arg6[%c400, %c0_323] : memref<676x212xf32, #tpu.memory_space<vmem>>, vector<4x212xf32>
    tpu.vector_store %arg6[%c400, %c0_323], %303 {strides = array<i32>} : memref<676x212xf32, #tpu.memory_space<vmem>>, vector<4x212xf32>,
    %c0_324 = arith.constant 0 : index
    %c206 = arith.constant 206 : index
    %305 = vector.load %arg5[%c0_324, %c206] : memref<4x560xf32, #tpu.memory_space<vmem>>, vector<4x212xf32>
    %c404 = arith.constant 404 : index
    %c0_325 = arith.constant 0 : index
    %306 = vector.load %arg6[%c404, %c0_325] : memref<676x212xf32, #tpu.memory_space<vmem>>, vector<4x212xf32>
    tpu.vector_store %arg6[%c404, %c0_325], %305 {strides = array<i32>} : memref<676x212xf32, #tpu.memory_space<vmem>>, vector<4x212xf32>,
    %c0_326 = arith.constant 0 : index
    %c207 = arith.constant 207 : index
    %307 = vector.load %arg5[%c0_326, %c207] : memref<4x560xf32, #tpu.memory_space<vmem>>, vector<4x212xf32>
    %c408 = arith.constant 408 : index
    %c0_327 = arith.constant 0 : index
    %308 = vector.load %arg6[%c408, %c0_327] : memref<676x212xf32, #tpu.memory_space<vmem>>, vector<4x212xf32>
    tpu.vector_store %arg6[%c408, %c0_327], %307 {strides = array<i32>} : memref<676x212xf32, #tpu.memory_space<vmem>>, vector<4x212xf32>,
    %c0_328 = arith.constant 0 : index
    %c208_329 = arith.constant 208 : index
    %309 = vector.load %arg5[%c0_328, %c208_329] : memref<4x560xf32, #tpu.memory_space<vmem>>, vector<4x212xf32>
    %c412 = arith.constant 412 : index
    %c0_330 = arith.constant 0 : index
    %310 = vector.load %arg6[%c412, %c0_330] : memref<676x212xf32, #tpu.memory_space<vmem>>, vector<4x212xf32>
    tpu.vector_store %arg6[%c412, %c0_330], %309 {strides = array<i32>} : memref<676x212xf32, #tpu.memory_space<vmem>>, vector<4x212xf32>,
    %c0_331 = arith.constant 0 : index
    %c224_332 = arith.constant 224 : index
    %311 = vector.load %arg5[%c0_331, %c224_332] : memref<4x560xf32, #tpu.memory_space<vmem>>, vector<4x212xf32>
    %c416 = arith.constant 416 : index
    %c0_333 = arith.constant 0 : index
    %312 = vector.load %arg6[%c416, %c0_333] : memref<676x212xf32, #tpu.memory_space<vmem>>, vector<4x212xf32>
    tpu.vector_store %arg6[%c416, %c0_333], %311 {strides = array<i32>} : memref<676x212xf32, #tpu.memory_space<vmem>>, vector<4x212xf32>,
    %c0_334 = arith.constant 0 : index
    %c225 = arith.constant 225 : index
    %313 = vector.load %arg5[%c0_334, %c225] : memref<4x560xf32, #tpu.memory_space<vmem>>, vector<4x212xf32>
    %c420 = arith.constant 420 : index
    %c0_335 = arith.constant 0 : index
    %314 = vector.load %arg6[%c420, %c0_335] : memref<676x212xf32, #tpu.memory_space<vmem>>, vector<4x212xf32>
    tpu.vector_store %arg6[%c420, %c0_335], %313 {strides = array<i32>} : memref<676x212xf32, #tpu.memory_space<vmem>>, vector<4x212xf32>,
    %c0_336 = arith.constant 0 : index
    %c226 = arith.constant 226 : index
    %315 = vector.load %arg5[%c0_336, %c226] : memref<4x560xf32, #tpu.memory_space<vmem>>, vector<4x212xf32>
    %c424 = arith.constant 424 : index
    %c0_337 = arith.constant 0 : index
    %316 = vector.load %arg6[%c424, %c0_337] : memref<676x212xf32, #tpu.memory_space<vmem>>, vector<4x212xf32>
    tpu.vector_store %arg6[%c424, %c0_337], %315 {strides = array<i32>} : memref<676x212xf32, #tpu.memory_space<vmem>>, vector<4x212xf32>,
    %c0_338 = arith.constant 0 : index
    %c227 = arith.constant 227 : index
    %317 = vector.load %arg5[%c0_338, %c227] : memref<4x560xf32, #tpu.memory_space<vmem>>, vector<4x212xf32>
    %c428 = arith.constant 428 : index
    %c0_339 = arith.constant 0 : index
    %318 = vector.load %arg6[%c428, %c0_339] : memref<676x212xf32, #tpu.memory_space<vmem>>, vector<4x212xf32>
    tpu.vector_store %arg6[%c428, %c0_339], %317 {strides = array<i32>} : memref<676x212xf32, #tpu.memory_space<vmem>>, vector<4x212xf32>,
    %c0_340 = arith.constant 0 : index
    %c228_341 = arith.constant 228 : index
    %319 = vector.load %arg5[%c0_340, %c228_341] : memref<4x560xf32, #tpu.memory_space<vmem>>, vector<4x212xf32>
    %c432 = arith.constant 432 : index
    %c0_342 = arith.constant 0 : index
    %320 = vector.load %arg6[%c432, %c0_342] : memref<676x212xf32, #tpu.memory_space<vmem>>, vector<4x212xf32>
    tpu.vector_store %arg6[%c432, %c0_342], %319 {strides = array<i32>} : memref<676x212xf32, #tpu.memory_space<vmem>>, vector<4x212xf32>,
    %c0_343 = arith.constant 0 : index
    %c229 = arith.constant 229 : index
    %321 = vector.load %arg5[%c0_343, %c229] : memref<4x560xf32, #tpu.memory_space<vmem>>, vector<4x212xf32>
    %c436 = arith.constant 436 : index
    %c0_344 = arith.constant 0 : index
    %322 = vector.load %arg6[%c436, %c0_344] : memref<676x212xf32, #tpu.memory_space<vmem>>, vector<4x212xf32>
    tpu.vector_store %arg6[%c436, %c0_344], %321 {strides = array<i32>} : memref<676x212xf32, #tpu.memory_space<vmem>>, vector<4x212xf32>,
    %c0_345 = arith.constant 0 : index
    %c230_346 = arith.constant 230 : index
    %323 = vector.load %arg5[%c0_345, %c230_346] : memref<4x560xf32, #tpu.memory_space<vmem>>, vector<4x212xf32>
    %c440 = arith.constant 440 : index
    %c0_347 = arith.constant 0 : index
    %324 = vector.load %arg6[%c440, %c0_347] : memref<676x212xf32, #tpu.memory_space<vmem>>, vector<4x212xf32>
    tpu.vector_store %arg6[%c440, %c0_347], %323 {strides = array<i32>} : memref<676x212xf32, #tpu.memory_space<vmem>>, vector<4x212xf32>,
    %c0_348 = arith.constant 0 : index
    %c231 = arith.constant 231 : index
    %325 = vector.load %arg5[%c0_348, %c231] : memref<4x560xf32, #tpu.memory_space<vmem>>, vector<4x212xf32>
    %c444 = arith.constant 444 : index
    %c0_349 = arith.constant 0 : index
    %326 = vector.load %arg6[%c444, %c0_349] : memref<676x212xf32, #tpu.memory_space<vmem>>, vector<4x212xf32>
    tpu.vector_store %arg6[%c444, %c0_349], %325 {strides = array<i32>} : memref<676x212xf32, #tpu.memory_space<vmem>>, vector<4x212xf32>,
    %c0_350 = arith.constant 0 : index
    %c232_351 = arith.constant 232 : index
    %327 = vector.load %arg5[%c0_350, %c232_351] : memref<4x560xf32, #tpu.memory_space<vmem>>, vector<4x212xf32>
    %c448 = arith.constant 448 : index
    %c0_352 = arith.constant 0 : index
    %328 = vector.load %arg6[%c448, %c0_352] : memref<676x212xf32, #tpu.memory_space<vmem>>, vector<4x212xf32>
    tpu.vector_store %arg6[%c448, %c0_352], %327 {strides = array<i32>} : memref<676x212xf32, #tpu.memory_space<vmem>>, vector<4x212xf32>,
    %c0_353 = arith.constant 0 : index
    %c233 = arith.constant 233 : index
    %329 = vector.load %arg5[%c0_353, %c233] : memref<4x560xf32, #tpu.memory_space<vmem>>, vector<4x212xf32>
    %c452 = arith.constant 452 : index
    %c0_354 = arith.constant 0 : index
    %330 = vector.load %arg6[%c452, %c0_354] : memref<676x212xf32, #tpu.memory_space<vmem>>, vector<4x212xf32>
    tpu.vector_store %arg6[%c452, %c0_354], %329 {strides = array<i32>} : memref<676x212xf32, #tpu.memory_space<vmem>>, vector<4x212xf32>,
    %c0_355 = arith.constant 0 : index
    %c234 = arith.constant 234 : index
    %331 = vector.load %arg5[%c0_355, %c234] : memref<4x560xf32, #tpu.memory_space<vmem>>, vector<4x212xf32>
    %c456 = arith.constant 456 : index
    %c0_356 = arith.constant 0 : index
    %332 = vector.load %arg6[%c456, %c0_356] : memref<676x212xf32, #tpu.memory_space<vmem>>, vector<4x212xf32>
    tpu.vector_store %arg6[%c456, %c0_356], %331 {strides = array<i32>} : memref<676x212xf32, #tpu.memory_space<vmem>>, vector<4x212xf32>,
    %c0_357 = arith.constant 0 : index
    %c235 = arith.constant 235 : index
    %333 = vector.load %arg5[%c0_357, %c235] : memref<4x560xf32, #tpu.memory_space<vmem>>, vector<4x212xf32>
    %c460 = arith.constant 460 : index
    %c0_358 = arith.constant 0 : index
    %334 = vector.load %arg6[%c460, %c0_358] : memref<676x212xf32, #tpu.memory_space<vmem>>, vector<4x212xf32>
    tpu.vector_store %arg6[%c460, %c0_358], %333 {strides = array<i32>} : memref<676x212xf32, #tpu.memory_space<vmem>>, vector<4x212xf32>,
    %c0_359 = arith.constant 0 : index
    %c236_360 = arith.constant 236 : index
    %335 = vector.load %arg5[%c0_359, %c236_360] : memref<4x560xf32, #tpu.memory_space<vmem>>, vector<4x212xf32>
    %c464 = arith.constant 464 : index
    %c0_361 = arith.constant 0 : index
    %336 = vector.load %arg6[%c464, %c0_361] : memref<676x212xf32, #tpu.memory_space<vmem>>, vector<4x212xf32>
    tpu.vector_store %arg6[%c464, %c0_361], %335 {strides = array<i32>} : memref<676x212xf32, #tpu.memory_space<vmem>>, vector<4x212xf32>,
    %c0_362 = arith.constant 0 : index
    %c252_363 = arith.constant 252 : index
    %337 = vector.load %arg5[%c0_362, %c252_363] : memref<4x560xf32, #tpu.memory_space<vmem>>, vector<4x212xf32>
    %c468 = arith.constant 468 : index
    %c0_364 = arith.constant 0 : index
    %338 = vector.load %arg6[%c468, %c0_364] : memref<676x212xf32, #tpu.memory_space<vmem>>, vector<4x212xf32>
    tpu.vector_store %arg6[%c468, %c0_364], %337 {strides = array<i32>} : memref<676x212xf32, #tpu.memory_space<vmem>>, vector<4x212xf32>,
    %c0_365 = arith.constant 0 : index
    %c253 = arith.constant 253 : index
    %339 = vector.load %arg5[%c0_365, %c253] : memref<4x560xf32, #tpu.memory_space<vmem>>, vector<4x212xf32>
    %c472 = arith.constant 472 : index
    %c0_366 = arith.constant 0 : index
    %340 = vector.load %arg6[%c472, %c0_366] : memref<676x212xf32, #tpu.memory_space<vmem>>, vector<4x212xf32>
    tpu.vector_store %arg6[%c472, %c0_366], %339 {strides = array<i32>} : memref<676x212xf32, #tpu.memory_space<vmem>>, vector<4x212xf32>,
    %c0_367 = arith.constant 0 : index
    %c254 = arith.constant 254 : index
    %341 = vector.load %arg5[%c0_367, %c254] : memref<4x560xf32, #tpu.memory_space<vmem>>, vector<4x212xf32>
    %c476 = arith.constant 476 : index
    %c0_368 = arith.constant 0 : index
    %342 = vector.load %arg6[%c476, %c0_368] : memref<676x212xf32, #tpu.memory_space<vmem>>, vector<4x212xf32>
    tpu.vector_store %arg6[%c476, %c0_368], %341 {strides = array<i32>} : memref<676x212xf32, #tpu.memory_space<vmem>>, vector<4x212xf32>,
    %c0_369 = arith.constant 0 : index
    %c255 = arith.constant 255 : index
    %343 = vector.load %arg5[%c0_369, %c255] : memref<4x560xf32, #tpu.memory_space<vmem>>, vector<4x212xf32>
    %c480 = arith.constant 480 : index
    %c0_370 = arith.constant 0 : index
    %344 = vector.load %arg6[%c480, %c0_370] : memref<676x212xf32, #tpu.memory_space<vmem>>, vector<4x212xf32>
    tpu.vector_store %arg6[%c480, %c0_370], %343 {strides = array<i32>} : memref<676x212xf32, #tpu.memory_space<vmem>>, vector<4x212xf32>,
    %c0_371 = arith.constant 0 : index
    %c256_372 = arith.constant 256 : index
    %345 = vector.load %arg5[%c0_371, %c256_372] : memref<4x560xf32, #tpu.memory_space<vmem>>, vector<4x212xf32>
    %c484 = arith.constant 484 : index
    %c0_373 = arith.constant 0 : index
    %346 = vector.load %arg6[%c484, %c0_373] : memref<676x212xf32, #tpu.memory_space<vmem>>, vector<4x212xf32>
    tpu.vector_store %arg6[%c484, %c0_373], %345 {strides = array<i32>} : memref<676x212xf32, #tpu.memory_space<vmem>>, vector<4x212xf32>,
    %c0_374 = arith.constant 0 : index
    %c257 = arith.constant 257 : index
    %347 = vector.load %arg5[%c0_374, %c257] : memref<4x560xf32, #tpu.memory_space<vmem>>, vector<4x212xf32>
    %c488 = arith.constant 488 : index
    %c0_375 = arith.constant 0 : index
    %348 = vector.load %arg6[%c488, %c0_375] : memref<676x212xf32, #tpu.memory_space<vmem>>, vector<4x212xf32>
    tpu.vector_store %arg6[%c488, %c0_375], %347 {strides = array<i32>} : memref<676x212xf32, #tpu.memory_space<vmem>>, vector<4x212xf32>,
    %c0_376 = arith.constant 0 : index
    %c258_377 = arith.constant 258 : index
    %349 = vector.load %arg5[%c0_376, %c258_377] : memref<4x560xf32, #tpu.memory_space<vmem>>, vector<4x212xf32>
    %c492 = arith.constant 492 : index
    %c0_378 = arith.constant 0 : index
    %350 = vector.load %arg6[%c492, %c0_378] : memref<676x212xf32, #tpu.memory_space<vmem>>, vector<4x212xf32>
    tpu.vector_store %arg6[%c492, %c0_378], %349 {strides = array<i32>} : memref<676x212xf32, #tpu.memory_space<vmem>>, vector<4x212xf32>,
    %c0_379 = arith.constant 0 : index
    %c259 = arith.constant 259 : index
    %351 = vector.load %arg5[%c0_379, %c259] : memref<4x560xf32, #tpu.memory_space<vmem>>, vector<4x212xf32>
    %c496 = arith.constant 496 : index
    %c0_380 = arith.constant 0 : index
    %352 = vector.load %arg6[%c496, %c0_380] : memref<676x212xf32, #tpu.memory_space<vmem>>, vector<4x212xf32>
    tpu.vector_store %arg6[%c496, %c0_380], %351 {strides = array<i32>} : memref<676x212xf32, #tpu.memory_space<vmem>>, vector<4x212xf32>,
    %c0_381 = arith.constant 0 : index
    %c260_382 = arith.constant 260 : index
    %353 = vector.load %arg5[%c0_381, %c260_382] : memref<4x560xf32, #tpu.memory_space<vmem>>, vector<4x212xf32>
    %c500 = arith.constant 500 : index
    %c0_383 = arith.constant 0 : index
    %354 = vector.load %arg6[%c500, %c0_383] : memref<676x212xf32, #tpu.memory_space<vmem>>, vector<4x212xf32>
    tpu.vector_store %arg6[%c500, %c0_383], %353 {strides = array<i32>} : memref<676x212xf32, #tpu.memory_space<vmem>>, vector<4x212xf32>,
    %c0_384 = arith.constant 0 : index
    %c261 = arith.constant 261 : index
    %355 = vector.load %arg5[%c0_384, %c261] : memref<4x560xf32, #tpu.memory_space<vmem>>, vector<4x212xf32>
    %c504 = arith.constant 504 : index
    %c0_385 = arith.constant 0 : index
    %356 = vector.load %arg6[%c504, %c0_385] : memref<676x212xf32, #tpu.memory_space<vmem>>, vector<4x212xf32>
    tpu.vector_store %arg6[%c504, %c0_385], %355 {strides = array<i32>} : memref<676x212xf32, #tpu.memory_space<vmem>>, vector<4x212xf32>,
    %c0_386 = arith.constant 0 : index
    %c262 = arith.constant 262 : index
    %357 = vector.load %arg5[%c0_386, %c262] : memref<4x560xf32, #tpu.memory_space<vmem>>, vector<4x212xf32>
    %c508 = arith.constant 508 : index
    %c0_387 = arith.constant 0 : index
    %358 = vector.load %arg6[%c508, %c0_387] : memref<676x212xf32, #tpu.memory_space<vmem>>, vector<4x212xf32>
    tpu.vector_store %arg6[%c508, %c0_387], %357 {strides = array<i32>} : memref<676x212xf32, #tpu.memory_space<vmem>>, vector<4x212xf32>,
    %c0_388 = arith.constant 0 : index
    %c263 = arith.constant 263 : index
    %359 = vector.load %arg5[%c0_388, %c263] : memref<4x560xf32, #tpu.memory_space<vmem>>, vector<4x212xf32>
    %c512 = arith.constant 512 : index
    %c0_389 = arith.constant 0 : index
    %360 = vector.load %arg6[%c512, %c0_389] : memref<676x212xf32, #tpu.memory_space<vmem>>, vector<4x212xf32>
    tpu.vector_store %arg6[%c512, %c0_389], %359 {strides = array<i32>} : memref<676x212xf32, #tpu.memory_space<vmem>>, vector<4x212xf32>,
    %c0_390 = arith.constant 0 : index
    %c264_391 = arith.constant 264 : index
    %361 = vector.load %arg5[%c0_390, %c264_391] : memref<4x560xf32, #tpu.memory_space<vmem>>, vector<4x212xf32>
    %c516 = arith.constant 516 : index
    %c0_392 = arith.constant 0 : index
    %362 = vector.load %arg6[%c516, %c0_392] : memref<676x212xf32, #tpu.memory_space<vmem>>, vector<4x212xf32>
    tpu.vector_store %arg6[%c516, %c0_392], %361 {strides = array<i32>} : memref<676x212xf32, #tpu.memory_space<vmem>>, vector<4x212xf32>,
    %c0_393 = arith.constant 0 : index
    %c280_394 = arith.constant 280 : index
    %363 = vector.load %arg5[%c0_393, %c280_394] : memref<4x560xf32, #tpu.memory_space<vmem>>, vector<4x212xf32>
    %c520 = arith.constant 520 : index
    %c0_395 = arith.constant 0 : index
    %364 = vector.load %arg6[%c520, %c0_395] : memref<676x212xf32, #tpu.memory_space<vmem>>, vector<4x212xf32>
    tpu.vector_store %arg6[%c520, %c0_395], %363 {strides = array<i32>} : memref<676x212xf32, #tpu.memory_space<vmem>>, vector<4x212xf32>,
    %c0_396 = arith.constant 0 : index
    %c281 = arith.constant 281 : index
    %365 = vector.load %arg5[%c0_396, %c281] : memref<4x560xf32, #tpu.memory_space<vmem>>, vector<4x212xf32>
    %c524 = arith.constant 524 : index
    %c0_397 = arith.constant 0 : index
    %366 = vector.load %arg6[%c524, %c0_397] : memref<676x212xf32, #tpu.memory_space<vmem>>, vector<4x212xf32>
    tpu.vector_store %arg6[%c524, %c0_397], %365 {strides = array<i32>} : memref<676x212xf32, #tpu.memory_space<vmem>>, vector<4x212xf32>,
    %c0_398 = arith.constant 0 : index
    %c282 = arith.constant 282 : index
    %367 = vector.load %arg5[%c0_398, %c282] : memref<4x560xf32, #tpu.memory_space<vmem>>, vector<4x212xf32>
    %c528 = arith.constant 528 : index
    %c0_399 = arith.constant 0 : index
    %368 = vector.load %arg6[%c528, %c0_399] : memref<676x212xf32, #tpu.memory_space<vmem>>, vector<4x212xf32>
    tpu.vector_store %arg6[%c528, %c0_399], %367 {strides = array<i32>} : memref<676x212xf32, #tpu.memory_space<vmem>>, vector<4x212xf32>,
    %c0_400 = arith.constant 0 : index
    %c283 = arith.constant 283 : index
    %369 = vector.load %arg5[%c0_400, %c283] : memref<4x560xf32, #tpu.memory_space<vmem>>, vector<4x212xf32>
    %c532 = arith.constant 532 : index
    %c0_401 = arith.constant 0 : index
    %370 = vector.load %arg6[%c532, %c0_401] : memref<676x212xf32, #tpu.memory_space<vmem>>, vector<4x212xf32>
    tpu.vector_store %arg6[%c532, %c0_401], %369 {strides = array<i32>} : memref<676x212xf32, #tpu.memory_space<vmem>>, vector<4x212xf32>,
    %c0_402 = arith.constant 0 : index
    %c284_403 = arith.constant 284 : index
    %371 = vector.load %arg5[%c0_402, %c284_403] : memref<4x560xf32, #tpu.memory_space<vmem>>, vector<4x212xf32>
    %c536 = arith.constant 536 : index
    %c0_404 = arith.constant 0 : index
    %372 = vector.load %arg6[%c536, %c0_404] : memref<676x212xf32, #tpu.memory_space<vmem>>, vector<4x212xf32>
    tpu.vector_store %arg6[%c536, %c0_404], %371 {strides = array<i32>} : memref<676x212xf32, #tpu.memory_space<vmem>>, vector<4x212xf32>,
    %c0_405 = arith.constant 0 : index
    %c285 = arith.constant 285 : index
    %373 = vector.load %arg5[%c0_405, %c285] : memref<4x560xf32, #tpu.memory_space<vmem>>, vector<4x212xf32>
    %c540 = arith.constant 540 : index
    %c0_406 = arith.constant 0 : index
    %374 = vector.load %arg6[%c540, %c0_406] : memref<676x212xf32, #tpu.memory_space<vmem>>, vector<4x212xf32>
    tpu.vector_store %arg6[%c540, %c0_406], %373 {strides = array<i32>} : memref<676x212xf32, #tpu.memory_space<vmem>>, vector<4x212xf32>,
    %c0_407 = arith.constant 0 : index
    %c286_408 = arith.constant 286 : index
    %375 = vector.load %arg5[%c0_407, %c286_408] : memref<4x560xf32, #tpu.memory_space<vmem>>, vector<4x212xf32>
    %c544 = arith.constant 544 : index
    %c0_409 = arith.constant 0 : index
    %376 = vector.load %arg6[%c544, %c0_409] : memref<676x212xf32, #tpu.memory_space<vmem>>, vector<4x212xf32>
    tpu.vector_store %arg6[%c544, %c0_409], %375 {strides = array<i32>} : memref<676x212xf32, #tpu.memory_space<vmem>>, vector<4x212xf32>,
    %c0_410 = arith.constant 0 : index
    %c287 = arith.constant 287 : index
    %377 = vector.load %arg5[%c0_410, %c287] : memref<4x560xf32, #tpu.memory_space<vmem>>, vector<4x212xf32>
    %c548 = arith.constant 548 : index
    %c0_411 = arith.constant 0 : index
    %378 = vector.load %arg6[%c548, %c0_411] : memref<676x212xf32, #tpu.memory_space<vmem>>, vector<4x212xf32>
    tpu.vector_store %arg6[%c548, %c0_411], %377 {strides = array<i32>} : memref<676x212xf32, #tpu.memory_space<vmem>>, vector<4x212xf32>,
    %c0_412 = arith.constant 0 : index
    %c288_413 = arith.constant 288 : index
    %379 = vector.load %arg5[%c0_412, %c288_413] : memref<4x560xf32, #tpu.memory_space<vmem>>, vector<4x212xf32>
    %c552 = arith.constant 552 : index
    %c0_414 = arith.constant 0 : index
    %380 = vector.load %arg6[%c552, %c0_414] : memref<676x212xf32, #tpu.memory_space<vmem>>, vector<4x212xf32>
    tpu.vector_store %arg6[%c552, %c0_414], %379 {strides = array<i32>} : memref<676x212xf32, #tpu.memory_space<vmem>>, vector<4x212xf32>,
    %c0_415 = arith.constant 0 : index
    %c289 = arith.constant 289 : index
    %381 = vector.load %arg5[%c0_415, %c289] : memref<4x560xf32, #tpu.memory_space<vmem>>, vector<4x212xf32>
    %c556 = arith.constant 556 : index
    %c0_416 = arith.constant 0 : index
    %382 = vector.load %arg6[%c556, %c0_416] : memref<676x212xf32, #tpu.memory_space<vmem>>, vector<4x212xf32>
    tpu.vector_store %arg6[%c556, %c0_416], %381 {strides = array<i32>} : memref<676x212xf32, #tpu.memory_space<vmem>>, vector<4x212xf32>,
    %c0_417 = arith.constant 0 : index
    %c290 = arith.constant 290 : index
    %383 = vector.load %arg5[%c0_417, %c290] : memref<4x560xf32, #tpu.memory_space<vmem>>, vector<4x212xf32>
    %c560 = arith.constant 560 : index
    %c0_418 = arith.constant 0 : index
    %384 = vector.load %arg6[%c560, %c0_418] : memref<676x212xf32, #tpu.memory_space<vmem>>, vector<4x212xf32>
    tpu.vector_store %arg6[%c560, %c0_418], %383 {strides = array<i32>} : memref<676x212xf32, #tpu.memory_space<vmem>>, vector<4x212xf32>,
    %c0_419 = arith.constant 0 : index
    %c291 = arith.constant 291 : index
    %385 = vector.load %arg5[%c0_419, %c291] : memref<4x560xf32, #tpu.memory_space<vmem>>, vector<4x212xf32>
    %c564 = arith.constant 564 : index
    %c0_420 = arith.constant 0 : index
    %386 = vector.load %arg6[%c564, %c0_420] : memref<676x212xf32, #tpu.memory_space<vmem>>, vector<4x212xf32>
    tpu.vector_store %arg6[%c564, %c0_420], %385 {strides = array<i32>} : memref<676x212xf32, #tpu.memory_space<vmem>>, vector<4x212xf32>,
    %c0_421 = arith.constant 0 : index
    %c292_422 = arith.constant 292 : index
    %387 = vector.load %arg5[%c0_421, %c292_422] : memref<4x560xf32, #tpu.memory_space<vmem>>, vector<4x212xf32>
    %c568 = arith.constant 568 : index
    %c0_423 = arith.constant 0 : index
    %388 = vector.load %arg6[%c568, %c0_423] : memref<676x212xf32, #tpu.memory_space<vmem>>, vector<4x212xf32>
    tpu.vector_store %arg6[%c568, %c0_423], %387 {strides = array<i32>} : memref<676x212xf32, #tpu.memory_space<vmem>>, vector<4x212xf32>,
    %c0_424 = arith.constant 0 : index
    %c308_425 = arith.constant 308 : index
    %389 = vector.load %arg5[%c0_424, %c308_425] : memref<4x560xf32, #tpu.memory_space<vmem>>, vector<4x212xf32>
    %c572 = arith.constant 572 : index
    %c0_426 = arith.constant 0 : index
    %390 = vector.load %arg6[%c572, %c0_426] : memref<676x212xf32, #tpu.memory_space<vmem>>, vector<4x212xf32>
    tpu.vector_store %arg6[%c572, %c0_426], %389 {strides = array<i32>} : memref<676x212xf32, #tpu.memory_space<vmem>>, vector<4x212xf32>,
    %c0_427 = arith.constant 0 : index
    %c309 = arith.constant 309 : index
    %391 = vector.load %arg5[%c0_427, %c309] : memref<4x560xf32, #tpu.memory_space<vmem>>, vector<4x212xf32>
    %c576 = arith.constant 576 : index
    %c0_428 = arith.constant 0 : index
    %392 = vector.load %arg6[%c576, %c0_428] : memref<676x212xf32, #tpu.memory_space<vmem>>, vector<4x212xf32>
    tpu.vector_store %arg6[%c576, %c0_428], %391 {strides = array<i32>} : memref<676x212xf32, #tpu.memory_space<vmem>>, vector<4x212xf32>,
    %c0_429 = arith.constant 0 : index
    %c310 = arith.constant 310 : index
    %393 = vector.load %arg5[%c0_429, %c310] : memref<4x560xf32, #tpu.memory_space<vmem>>, vector<4x212xf32>
    %c580 = arith.constant 580 : index
    %c0_430 = arith.constant 0 : index
    %394 = vector.load %arg6[%c580, %c0_430] : memref<676x212xf32, #tpu.memory_space<vmem>>, vector<4x212xf32>
    tpu.vector_store %arg6[%c580, %c0_430], %393 {strides = array<i32>} : memref<676x212xf32, #tpu.memory_space<vmem>>, vector<4x212xf32>,
    %c0_431 = arith.constant 0 : index
    %c311 = arith.constant 311 : index
    %395 = vector.load %arg5[%c0_431, %c311] : memref<4x560xf32, #tpu.memory_space<vmem>>, vector<4x212xf32>
    %c584 = arith.constant 584 : index
    %c0_432 = arith.constant 0 : index
    %396 = vector.load %arg6[%c584, %c0_432] : memref<676x212xf32, #tpu.memory_space<vmem>>, vector<4x212xf32>
    tpu.vector_store %arg6[%c584, %c0_432], %395 {strides = array<i32>} : memref<676x212xf32, #tpu.memory_space<vmem>>, vector<4x212xf32>,
    %c0_433 = arith.constant 0 : index
    %c312_434 = arith.constant 312 : index
    %397 = vector.load %arg5[%c0_433, %c312_434] : memref<4x560xf32, #tpu.memory_space<vmem>>, vector<4x212xf32>
    %c588 = arith.constant 588 : index
    %c0_435 = arith.constant 0 : index
    %398 = vector.load %arg6[%c588, %c0_435] : memref<676x212xf32, #tpu.memory_space<vmem>>, vector<4x212xf32>
    tpu.vector_store %arg6[%c588, %c0_435], %397 {strides = array<i32>} : memref<676x212xf32, #tpu.memory_space<vmem>>, vector<4x212xf32>,
    %c0_436 = arith.constant 0 : index
    %c313 = arith.constant 313 : index
    %399 = vector.load %arg5[%c0_436, %c313] : memref<4x560xf32, #tpu.memory_space<vmem>>, vector<4x212xf32>
    %c592 = arith.constant 592 : index
    %c0_437 = arith.constant 0 : index
    %400 = vector.load %arg6[%c592, %c0_437] : memref<676x212xf32, #tpu.memory_space<vmem>>, vector<4x212xf32>
    tpu.vector_store %arg6[%c592, %c0_437], %399 {strides = array<i32>} : memref<676x212xf32, #tpu.memory_space<vmem>>, vector<4x212xf32>,
    %c0_438 = arith.constant 0 : index
    %c314_439 = arith.constant 314 : index
    %401 = vector.load %arg5[%c0_438, %c314_439] : memref<4x560xf32, #tpu.memory_space<vmem>>, vector<4x212xf32>
    %c596 = arith.constant 596 : index
    %c0_440 = arith.constant 0 : index
    %402 = vector.load %arg6[%c596, %c0_440] : memref<676x212xf32, #tpu.memory_space<vmem>>, vector<4x212xf32>
    tpu.vector_store %arg6[%c596, %c0_440], %401 {strides = array<i32>} : memref<676x212xf32, #tpu.memory_space<vmem>>, vector<4x212xf32>,
    %c0_441 = arith.constant 0 : index
    %c315 = arith.constant 315 : index
    %403 = vector.load %arg5[%c0_441, %c315] : memref<4x560xf32, #tpu.memory_space<vmem>>, vector<4x212xf32>
    %c600 = arith.constant 600 : index
    %c0_442 = arith.constant 0 : index
    %404 = vector.load %arg6[%c600, %c0_442] : memref<676x212xf32, #tpu.memory_space<vmem>>, vector<4x212xf32>
    tpu.vector_store %arg6[%c600, %c0_442], %403 {strides = array<i32>} : memref<676x212xf32, #tpu.memory_space<vmem>>, vector<4x212xf32>,
    %c0_443 = arith.constant 0 : index
    %c316_444 = arith.constant 316 : index
    %405 = vector.load %arg5[%c0_443, %c316_444] : memref<4x560xf32, #tpu.memory_space<vmem>>, vector<4x212xf32>
    %c604 = arith.constant 604 : index
    %c0_445 = arith.constant 0 : index
    %406 = vector.load %arg6[%c604, %c0_445] : memref<676x212xf32, #tpu.memory_space<vmem>>, vector<4x212xf32>
    tpu.vector_store %arg6[%c604, %c0_445], %405 {strides = array<i32>} : memref<676x212xf32, #tpu.memory_space<vmem>>, vector<4x212xf32>,
    %c0_446 = arith.constant 0 : index
    %c317 = arith.constant 317 : index
    %407 = vector.load %arg5[%c0_446, %c317] : memref<4x560xf32, #tpu.memory_space<vmem>>, vector<4x212xf32>
    %c608 = arith.constant 608 : index
    %c0_447 = arith.constant 0 : index
    %408 = vector.load %arg6[%c608, %c0_447] : memref<676x212xf32, #tpu.memory_space<vmem>>, vector<4x212xf32>
    tpu.vector_store %arg6[%c608, %c0_447], %407 {strides = array<i32>} : memref<676x212xf32, #tpu.memory_space<vmem>>, vector<4x212xf32>,
    %c0_448 = arith.constant 0 : index
    %c318 = arith.constant 318 : index
    %409 = vector.load %arg5[%c0_448, %c318] : memref<4x560xf32, #tpu.memory_space<vmem>>, vector<4x212xf32>
    %c612 = arith.constant 612 : index
    %c0_449 = arith.constant 0 : index
    %410 = vector.load %arg6[%c612, %c0_449] : memref<676x212xf32, #tpu.memory_space<vmem>>, vector<4x212xf32>
    tpu.vector_store %arg6[%c612, %c0_449], %409 {strides = array<i32>} : memref<676x212xf32, #tpu.memory_space<vmem>>, vector<4x212xf32>,
    %c0_450 = arith.constant 0 : index
    %c319 = arith.constant 319 : index
    %411 = vector.load %arg5[%c0_450, %c319] : memref<4x560xf32, #tpu.memory_space<vmem>>, vector<4x212xf32>
    %c616 = arith.constant 616 : index
    %c0_451 = arith.constant 0 : index
    %412 = vector.load %arg6[%c616, %c0_451] : memref<676x212xf32, #tpu.memory_space<vmem>>, vector<4x212xf32>
    tpu.vector_store %arg6[%c616, %c0_451], %411 {strides = array<i32>} : memref<676x212xf32, #tpu.memory_space<vmem>>, vector<4x212xf32>,
    %c0_452 = arith.constant 0 : index
    %c320_453 = arith.constant 320 : index
    %413 = vector.load %arg5[%c0_452, %c320_453] : memref<4x560xf32, #tpu.memory_space<vmem>>, vector<4x212xf32>
    %c620 = arith.constant 620 : index
    %c0_454 = arith.constant 0 : index
    %414 = vector.load %arg6[%c620, %c0_454] : memref<676x212xf32, #tpu.memory_space<vmem>>, vector<4x212xf32>
    tpu.vector_store %arg6[%c620, %c0_454], %413 {strides = array<i32>} : memref<676x212xf32, #tpu.memory_space<vmem>>, vector<4x212xf32>,
    %c0_455 = arith.constant 0 : index
    %c336_456 = arith.constant 336 : index
    %415 = vector.load %arg5[%c0_455, %c336_456] : memref<4x560xf32, #tpu.memory_space<vmem>>, vector<4x212xf32>
    %c624 = arith.constant 624 : index
    %c0_457 = arith.constant 0 : index
    %416 = vector.load %arg6[%c624, %c0_457] : memref<676x212xf32, #tpu.memory_space<vmem>>, vector<4x212xf32>
    tpu.vector_store %arg6[%c624, %c0_457], %415 {strides = array<i32>} : memref<676x212xf32, #tpu.memory_space<vmem>>, vector<4x212xf32>,
    %c0_458 = arith.constant 0 : index
    %c337 = arith.constant 337 : index
    %417 = vector.load %arg5[%c0_458, %c337] : memref<4x560xf32, #tpu.memory_space<vmem>>, vector<4x212xf32>
    %c628 = arith.constant 628 : index
    %c0_459 = arith.constant 0 : index
    %418 = vector.load %arg6[%c628, %c0_459] : memref<676x212xf32, #tpu.memory_space<vmem>>, vector<4x212xf32>
    tpu.vector_store %arg6[%c628, %c0_459], %417 {strides = array<i32>} : memref<676x212xf32, #tpu.memory_space<vmem>>, vector<4x212xf32>,
    %c0_460 = arith.constant 0 : index
    %c338 = arith.constant 338 : index
    %419 = vector.load %arg5[%c0_460, %c338] : memref<4x560xf32, #tpu.memory_space<vmem>>, vector<4x212xf32>
    %c632 = arith.constant 632 : index
    %c0_461 = arith.constant 0 : index
    %420 = vector.load %arg6[%c632, %c0_461] : memref<676x212xf32, #tpu.memory_space<vmem>>, vector<4x212xf32>
    tpu.vector_store %arg6[%c632, %c0_461], %419 {strides = array<i32>} : memref<676x212xf32, #tpu.memory_space<vmem>>, vector<4x212xf32>,
    %c0_462 = arith.constant 0 : index
    %c339 = arith.constant 339 : index
    %421 = vector.load %arg5[%c0_462, %c339] : memref<4x560xf32, #tpu.memory_space<vmem>>, vector<4x212xf32>
    %c636 = arith.constant 636 : index
    %c0_463 = arith.constant 0 : index
    %422 = vector.load %arg6[%c636, %c0_463] : memref<676x212xf32, #tpu.memory_space<vmem>>, vector<4x212xf32>
    tpu.vector_store %arg6[%c636, %c0_463], %421 {strides = array<i32>} : memref<676x212xf32, #tpu.memory_space<vmem>>, vector<4x212xf32>,
    %c0_464 = arith.constant 0 : index
    %c340_465 = arith.constant 340 : index
    %423 = vector.load %arg5[%c0_464, %c340_465] : memref<4x560xf32, #tpu.memory_space<vmem>>, vector<4x212xf32>
    %c640 = arith.constant 640 : index
    %c0_466 = arith.constant 0 : index
    %424 = vector.load %arg6[%c640, %c0_466] : memref<676x212xf32, #tpu.memory_space<vmem>>, vector<4x212xf32>
    tpu.vector_store %arg6[%c640, %c0_466], %423 {strides = array<i32>} : memref<676x212xf32, #tpu.memory_space<vmem>>, vector<4x212xf32>,
    %c0_467 = arith.constant 0 : index
    %c341 = arith.constant 341 : index
    %425 = vector.load %arg5[%c0_467, %c341] : memref<4x560xf32, #tpu.memory_space<vmem>>, vector<4x212xf32>
    %c644 = arith.constant 644 : index
    %c0_468 = arith.constant 0 : index
    %426 = vector.load %arg6[%c644, %c0_468] : memref<676x212xf32, #tpu.memory_space<vmem>>, vector<4x212xf32>
    tpu.vector_store %arg6[%c644, %c0_468], %425 {strides = array<i32>} : memref<676x212xf32, #tpu.memory_space<vmem>>, vector<4x212xf32>,
    %c0_469 = arith.constant 0 : index
    %c342_470 = arith.constant 342 : index
    %427 = vector.load %arg5[%c0_469, %c342_470] : memref<4x560xf32, #tpu.memory_space<vmem>>, vector<4x212xf32>
    %c648 = arith.constant 648 : index
    %c0_471 = arith.constant 0 : index
    %428 = vector.load %arg6[%c648, %c0_471] : memref<676x212xf32, #tpu.memory_space<vmem>>, vector<4x212xf32>
    tpu.vector_store %arg6[%c648, %c0_471], %427 {strides = array<i32>} : memref<676x212xf32, #tpu.memory_space<vmem>>, vector<4x212xf32>,
    %c0_472 = arith.constant 0 : index
    %c343 = arith.constant 343 : index
    %429 = vector.load %arg5[%c0_472, %c343] : memref<4x560xf32, #tpu.memory_space<vmem>>, vector<4x212xf32>
    %c652 = arith.constant 652 : index
    %c0_473 = arith.constant 0 : index
    %430 = vector.load %arg6[%c652, %c0_473] : memref<676x212xf32, #tpu.memory_space<vmem>>, vector<4x212xf32>
    tpu.vector_store %arg6[%c652, %c0_473], %429 {strides = array<i32>} : memref<676x212xf32, #tpu.memory_space<vmem>>, vector<4x212xf32>,
    %c0_474 = arith.constant 0 : index
    %c344_475 = arith.constant 344 : index
    %431 = vector.load %arg5[%c0_474, %c344_475] : memref<4x560xf32, #tpu.memory_space<vmem>>, vector<4x212xf32>
    %c656 = arith.constant 656 : index
    %c0_476 = arith.constant 0 : index
    %432 = vector.load %arg6[%c656, %c0_476] : memref<676x212xf32, #tpu.memory_space<vmem>>, vector<4x212xf32>
    tpu.vector_store %arg6[%c656, %c0_476], %431 {strides = array<i32>} : memref<676x212xf32, #tpu.memory_space<vmem>>, vector<4x212xf32>,
    %c0_477 = arith.constant 0 : index
    %c345 = arith.constant 345 : index
    %433 = vector.load %arg5[%c0_477, %c345] : memref<4x560xf32, #tpu.memory_space<vmem>>, vector<4x212xf32>
    %c660 = arith.constant 660 : index
    %c0_478 = arith.constant 0 : index
    %434 = vector.load %arg6[%c660, %c0_478] : memref<676x212xf32, #tpu.memory_space<vmem>>, vector<4x212xf32>
    tpu.vector_store %arg6[%c660, %c0_478], %433 {strides = array<i32>} : memref<676x212xf32, #tpu.memory_space<vmem>>, vector<4x212xf32>,
    %c0_479 = arith.constant 0 : index
    %c346 = arith.constant 346 : index
    %435 = vector.load %arg5[%c0_479, %c346] : memref<4x560xf32, #tpu.memory_space<vmem>>, vector<4x212xf32>
    %c664 = arith.constant 664 : index
    %c0_480 = arith.constant 0 : index
    %436 = vector.load %arg6[%c664, %c0_480] : memref<676x212xf32, #tpu.memory_space<vmem>>, vector<4x212xf32>
    tpu.vector_store %arg6[%c664, %c0_480], %435 {strides = array<i32>} : memref<676x212xf32, #tpu.memory_space<vmem>>, vector<4x212xf32>,
    %c0_481 = arith.constant 0 : index
    %c347 = arith.constant 347 : index
    %437 = vector.load %arg5[%c0_481, %c347] : memref<4x560xf32, #tpu.memory_space<vmem>>, vector<4x212xf32>
    %c668 = arith.constant 668 : index
    %c0_482 = arith.constant 0 : index
    %438 = vector.load %arg6[%c668, %c0_482] : memref<676x212xf32, #tpu.memory_space<vmem>>, vector<4x212xf32>
    tpu.vector_store %arg6[%c668, %c0_482], %437 {strides = array<i32>} : memref<676x212xf32, #tpu.memory_space<vmem>>, vector<4x212xf32>,
    %c0_483 = arith.constant 0 : index
    %c348_484 = arith.constant 348 : index
    %439 = vector.load %arg5[%c0_483, %c348_484] : memref<4x560xf32, #tpu.memory_space<vmem>>, vector<4x212xf32>
    %c672 = arith.constant 672 : index
    %c0_485 = arith.constant 0 : index
    %440 = vector.load %arg6[%c672, %c0_485] : memref<676x212xf32, #tpu.memory_space<vmem>>, vector<4x212xf32>
    tpu.vector_store %arg6[%c672, %c0_485], %439 {strides = array<i32>} : memref<676x212xf32, #tpu.memory_space<vmem>>, vector<4x212xf32>,
    %c0_486 = arith.constant 0 : index
    %c0_487 = arith.constant 0 : index
    %c0_488 = arith.constant 0 : index
    %441 = vector.load %arg3[%c0_486, %c0_487, %c0_488] : memref<1x4x676xf32, #tpu.memory_space<vmem>>, vector<1x4x676xf32>
    %442 = vector.shape_cast %441 : vector<1x4x676xf32> to vector<4x676xf32>
    %c0_489 = arith.constant 0 : index
    %c0_490 = arith.constant 0 : index
    %443 = vector.load %arg6[%c0_489, %c0_490] : memref<676x212xf32, #tpu.memory_space<vmem>>, vector<676x212xf32>
    %cst_491 = arith.constant dense<0.000000e+00> : vector<4x212xf32>
    %444 = tpu.matmul %442, %443, %cst_491 {dimension_numbers = #tpu.dot_dimension_numbers<[1], [0], [0], [1], [0, 0, 1, 1], [], []>} : vector<4x676xf32>, vector<676x212xf32>, vector<4x212xf32> -> vector<4x212xf32>
    %445 = vector.extract_strided_slice %444 {offsets = [0, 0], sizes = [4, 16], strides = [1, 1]} : vector<4x212xf32> to vector<4x16xf32>
    %c0_492 = arith.constant 0 : index
    %c0_493 = arith.constant 0 : index
    %c0_494 = arith.constant 0 : index
    %446 = vector.load %arg4[%c0_492, %c0_493, %c0_494] : memref<1x4x128xf32, #tpu.memory_space<vmem>>, vector<1x4x16xf32>
    %447 = vector.shape_cast %446 : vector<1x4x16xf32> to vector<4x16xf32>
    %448 = vector.shape_cast %445 : vector<4x16xf32> to vector<1x4x16xf32>
    tpu.vector_store %arg4[%c0_492, %c0_493, %c0_494], %448 {strides = array<i32>} : memref<1x4x128xf32, #tpu.memory_space<vmem>>, vector<1x4x16xf32>,
    %449 = vector.extract_strided_slice %444 {offsets = [0, 28], sizes = [4, 16], strides = [1, 1]} : vector<4x212xf32> to vector<4x16xf32>
    %c0_495 = arith.constant 0 : index
    %c0_496 = arith.constant 0 : index
    %c16_497 = arith.constant 16 : index
    %450 = vector.load %arg4[%c0_495, %c0_496, %c16_497] : memref<1x4x128xf32, #tpu.memory_space<vmem>>, vector<1x4x16xf32>
    %451 = vector.shape_cast %450 : vector<1x4x16xf32> to vector<4x16xf32>
    %452 = vector.shape_cast %449 : vector<4x16xf32> to vector<1x4x16xf32>
    tpu.vector_store %arg4[%c0_495, %c0_496, %c16_497], %452 {strides = array<i32>} : memref<1x4x128xf32, #tpu.memory_space<vmem>>, vector<1x4x16xf32>,
    %453 = vector.extract_strided_slice %444 {offsets = [0, 56], sizes = [4, 16], strides = [1, 1]} : vector<4x212xf32> to vector<4x16xf32>
    %c0_498 = arith.constant 0 : index
    %c0_499 = arith.constant 0 : index
    %c32_500 = arith.constant 32 : index
    %454 = vector.load %arg4[%c0_498, %c0_499, %c32_500] : memref<1x4x128xf32, #tpu.memory_space<vmem>>, vector<1x4x16xf32>
    %455 = vector.shape_cast %454 : vector<1x4x16xf32> to vector<4x16xf32>
    %456 = vector.shape_cast %453 : vector<4x16xf32> to vector<1x4x16xf32>
    tpu.vector_store %arg4[%c0_498, %c0_499, %c32_500], %456 {strides = array<i32>} : memref<1x4x128xf32, #tpu.memory_space<vmem>>, vector<1x4x16xf32>,
    %457 = vector.extract_strided_slice %444 {offsets = [0, 84], sizes = [4, 16], strides = [1, 1]} : vector<4x212xf32> to vector<4x16xf32>
    %c0_501 = arith.constant 0 : index
    %c0_502 = arith.constant 0 : index
    %c48_503 = arith.constant 48 : index
    %458 = vector.load %arg4[%c0_501, %c0_502, %c48_503] : memref<1x4x128xf32, #tpu.memory_space<vmem>>, vector<1x4x16xf32>
    %459 = vector.shape_cast %458 : vector<1x4x16xf32> to vector<4x16xf32>
    %460 = vector.shape_cast %457 : vector<4x16xf32> to vector<1x4x16xf32>
    tpu.vector_store %arg4[%c0_501, %c0_502, %c48_503], %460 {strides = array<i32>} : memref<1x4x128xf32, #tpu.memory_space<vmem>>, vector<1x4x16xf32>,
    %461 = vector.extract_strided_slice %444 {offsets = [0, 112], sizes = [4, 16], strides = [1, 1]} : vector<4x212xf32> to vector<4x16xf32>
    %c0_504 = arith.constant 0 : index
    %c0_505 = arith.constant 0 : index
    %c64_506 = arith.constant 64 : index
    %462 = vector.load %arg4[%c0_504, %c0_505, %c64_506] : memref<1x4x128xf32, #tpu.memory_space<vmem>>, vector<1x4x16xf32>
    %463 = vector.shape_cast %462 : vector<1x4x16xf32> to vector<4x16xf32>
    %464 = vector.shape_cast %461 : vector<4x16xf32> to vector<1x4x16xf32>
    tpu.vector_store %arg4[%c0_504, %c0_505, %c64_506], %464 {strides = array<i32>} : memref<1x4x128xf32, #tpu.memory_space<vmem>>, vector<1x4x16xf32>,
    %465 = vector.extract_strided_slice %444 {offsets = [0, 140], sizes = [4, 16], strides = [1, 1]} : vector<4x212xf32> to vector<4x16xf32>
    %c0_507 = arith.constant 0 : index
    %c0_508 = arith.constant 0 : index
    %c80_509 = arith.constant 80 : index
    %466 = vector.load %arg4[%c0_507, %c0_508, %c80_509] : memref<1x4x128xf32, #tpu.memory_space<vmem>>, vector<1x4x16xf32>
    %467 = vector.shape_cast %466 : vector<1x4x16xf32> to vector<4x16xf32>
    %468 = vector.shape_cast %465 : vector<4x16xf32> to vector<1x4x16xf32>
    tpu.vector_store %arg4[%c0_507, %c0_508, %c80_509], %468 {strides = array<i32>} : memref<1x4x128xf32, #tpu.memory_space<vmem>>, vector<1x4x16xf32>,
    %469 = vector.extract_strided_slice %444 {offsets = [0, 168], sizes = [4, 16], strides = [1, 1]} : vector<4x212xf32> to vector<4x16xf32>
    %c0_510 = arith.constant 0 : index
    %c0_511 = arith.constant 0 : index
    %c96_512 = arith.constant 96 : index
    %470 = vector.load %arg4[%c0_510, %c0_511, %c96_512] : memref<1x4x128xf32, #tpu.memory_space<vmem>>, vector<1x4x16xf32>
    %471 = vector.shape_cast %470 : vector<1x4x16xf32> to vector<4x16xf32>
    %472 = vector.shape_cast %469 : vector<4x16xf32> to vector<1x4x16xf32>
    tpu.vector_store %arg4[%c0_510, %c0_511, %c96_512], %472 {strides = array<i32>} : memref<1x4x128xf32, #tpu.memory_space<vmem>>, vector<1x4x16xf32>,
    %473 = vector.extract_strided_slice %444 {offsets = [0, 196], sizes = [4, 16], strides = [1, 1]} : vector<4x212xf32> to vector<4x16xf32>
    %c0_513 = arith.constant 0 : index
    %c0_514 = arith.constant 0 : index
    %c112_515 = arith.constant 112 : index
    %474 = vector.load %arg4[%c0_513, %c0_514, %c112_515] : memref<1x4x128xf32, #tpu.memory_space<vmem>>, vector<1x4x16xf32>
    %475 = vector.shape_cast %474 : vector<1x4x16xf32> to vector<4x16xf32>
    %476 = vector.shape_cast %473 : vector<4x16xf32> to vector<1x4x16xf32>
    tpu.vector_store %arg4[%c0_513, %c0_514, %c112_515], %476 {strides = array<i32>} : memref<1x4x128xf32, #tpu.memory_space<vmem>>, vector<1x4x16xf32>,
    return
  }
  func.func @transform_0(%arg0: i32, %arg1: i32) -> (i32, i32, i32, i32) {
    %c0_i32 = arith.constant 0 : i32
    %c0_i32_0 = arith.constant 0 : i32
    %c0_i32_1 = arith.constant 0 : i32
    %c0_i32_2 = arith.constant 0 : i32
    return %arg0, %c0_i32, %c0_i32_0, %c0_i32_1 : i32, i32, i32, i32
  }
  func.func @transform_1(%arg0: i32, %arg1: i32) -> (i32, i32, i32) {
    %c0_i32 = arith.constant 0 : i32
    %c0_i32_0 = arith.constant 0 : i32
    %c0_i32_1 = arith.constant 0 : i32
    return %arg0, %c0_i32, %c0_i32_0 : i32, i32, i32
  }
  func.func @transform_2(%arg0: i32, %arg1: i32) -> (i32, i32, i32) {
    %c0_i32 = arith.constant 0 : i32
    %c0_i32_0 = arith.constant 0 : i32
    return %arg0, %c0_i32, %arg1 : i32, i32, i32
  }
}

</mosaic_0001>

<llo_original>
// kernel: tpu_custom_call.1
$region0: #{tpu_custom_call.1}
  #allocation0 [shape = 'u32[]', space=smem, size = 0x4, offset = 0x4, fixed_abs, tag = 'smem constant byte address 0x4 - core index']
  #allocation1 [shape = 'u32[144,128]{1,0:T(1,128)}', space=vmem, size = 0x12000, scoped, tag = 'internal scratch']
  #allocation2 [shape = 'f32[4,560]{1,0:T(4,128)}', space=vmem, size = 0x2800, scoped, tag = 'scratch operand']
  #allocation3 [shape = 'f32[676,212]{1,0:T(8,128)}', space=vmem, size = 0xaa000, scoped, tag = 'scratch operand']
  %s0 = inlined_call_operand.vmem [shape: f32[2,4,28,16], index: 0, kind: input, shape index: {}]
  %s1 = inlined_call_operand.vmem [shape: f32[2,4,676], index: 1, kind: input, shape index: {}]
  %s2 = inlined_call_operand.hbm [shape: f32[2,4,256], index: 2, kind: output, shape index: {}]
  %s3 = sld [smem:[#allocation0]]
  $region41: #{tpu_custom_call.1} parent=0
    _
  %s5 = ssub.s32 1, %s3
  %s6 = scalar_select 0, %s5, %s3
  $region1: #{tpu_custom_call.1} parent=0
    #allocation4 [shape = 'u8[4096]{0}', space=vmem, size = 0x1000, scoped, tag = 'output window, operand 0']
    #allocation5 [shape = 's32[2]{0}', space=sflag, size = 0x8, scoped, tag = 'scoped memory for tpu_custom_call.1']
    %7 = vsyncpa [#allocation5], 0
    %s8 = scalar_lea.sflag [#allocation5], 1
    %9 = vsyncpa %s8, 0
    loop: start=0, step=1, limit=6
    $region2: #{tpu_custom_call.1} parent=1 // loop_pre_header
      _
    $region3: #{tpu_custom_call.1} parent=1 // loop_header
      %s11 = sphi 0, %s15
      %p12 = scmp.ge.s32.totalorder %s11, 6
      %s18 = sphi 0, %s30
      %s19 = sphi 0, %s26
      %s20 = sphi 0, %s18
      %s21 = sphi 0, %s19
      %s22 = sphi 0, %s20
      %s23 = sphi 0, %s21
      %s33 = sphi 0, %s35
      %s36 = sphi 0, %s33
      %s37 = sphi 0, %s36
      %s53 = sphi 0, %s37
      %s59 = sphi 0, %s61
      %s62 = sphi 0, %s59
      %s63 = sphi 0, %s62
      %s79 = sphi 0, %s63
      %s87 = sphi 0, %s89
      %s90 = sphi 0, %s87
      %s91 = sphi 0, %s90
      %s107 = sphi 0, %s91
    $region4: #{tpu_custom_call.1} parent=1 // loop_header_branch
      %14 = sbr.rel (%p12) target = $region8
    $region5: #{tpu_custom_call.1} parent=1 // loop_body
      %s16 = ssub.s32 %s11, 1
      %s17 = ssub.s32 %s11, 2
      %s24 = sadd.s32 1, %s19
      %p25 = scmp.ge.s32.totalorder %s24, 2
      %s26 = scalar_select %p25, 0, %s24
      %s27 = sadd.s32 1, %s18
      %s28 = scalar_select %p25, %s27, %s18
      %p29 = scmp.ge.s32.totalorder %s28, 2
      %s30 = scalar_select %p29, 0, %s28
      %s31 = ssub.s32 %s18, %s30
      %p32 = scmp.eq.s32.totalorder %s31, 0
      %s34 = sadd.s32 %s33, 1
      %s35 = scalar_select %p32, %s33, %s34
      %p38 = pneg %p32
      %p39 = scmp.eq.s32.totalorder %s11, 3
      %p40 = por %p38, %p39
      %p41 = scmp.ne.s32.totalorder %s33, %s36
      %p42 = scmp.eq.s32.totalorder %s11, 0
      %p43 = por %p41, %p42
      %p44 = scmp.ne.s32.totalorder %s33, %s36
      %p45 = scmp.eq.s32.totalorder %s16, 3
      %p46 = por %p44, %p45
      %p47 = scmp.ne.s32.totalorder %s36, %s37
      %p48 = scmp.eq.s32.totalorder %s16, 0
      %p49 = por %p47, %p48
      %p50 = scmp.ne.s32.totalorder %s36, %s37
      %p51 = scmp.eq.s32.totalorder %s17, 3
      %p52 = por %p50, %p51
      %p54 = scmp.ne.s32.totalorder %s37, %s53
      %p55 = scmp.eq.s32.totalorder %s17, 0
      %p56 = por %p54, %p55
      %s57 = ssub.s32 %s18, %s30
      %p58 = scmp.eq.s32.totalorder %s57, 0
      %s60 = sadd.s32 %s59, 1
      %s61 = scalar_select %p58, %s59, %s60
      %p64 = pneg %p58
      %p65 = scmp.eq.s32.totalorder %s11, 3
      %p66 = por %p64, %p65
      %p67 = scmp.ne.s32.totalorder %s59, %s62
      %p68 = scmp.eq.s32.totalorder %s11, 0
      %p69 = por %p67, %p68
      %p70 = scmp.ne.s32.totalorder %s59, %s62
      %p71 = scmp.eq.s32.totalorder %s16, 3
      %p72 = por %p70, %p71
      %p73 = scmp.ne.s32.totalorder %s62, %s63
      %p74 = scmp.eq.s32.totalorder %s16, 0
      %p75 = por %p73, %p74
      %p76 = scmp.ne.s32.totalorder %s62, %s63
      %p77 = scmp.eq.s32.totalorder %s17, 3
      %p78 = por %p76, %p77
      %p80 = scmp.ne.s32.totalorder %s63, %s79
      %p81 = scmp.eq.s32.totalorder %s17, 0
      %p82 = por %p80, %p81
      %s83 = ssub.s32 %s18, %s30
      %s84 = ssub.s32 %s19, %s26
      %s85 = sor.u32 %s83, %s84
      %p86 = scmp.eq.s32.totalorder %s85, 0
      %s88 = sadd.s32 %s87, 1
      %s89 = scalar_select %p86, %s87, %s88
      %p92 = pneg %p86
      %p93 = scmp.eq.s32.totalorder %s11, 3
      %p94 = por %p92, %p93
      %p95 = scmp.ne.s32.totalorder %s87, %s90
      %p96 = scmp.eq.s32.totalorder %s11, 0
      %p97 = por %p95, %p96
      %p98 = scmp.ne.s32.totalorder %s87, %s90
      %p99 = scmp.eq.s32.totalorder %s16, 3
      %p100 = por %p98, %p99
      %p101 = scmp.ne.s32.totalorder %s90, %s91
      %p102 = scmp.eq.s32.totalorder %s16, 0
      %p103 = por %p101, %p102
      %p104 = scmp.ne.s32.totalorder %s90, %s91
      %p105 = scmp.eq.s32.totalorder %s17, 3
      %p106 = por %p104, %p105
      %p108 = scmp.ne.s32.totalorder %s91, %s107
      %p109 = scmp.eq.s32.totalorder %s17, 0
      %p110 = por %p108, %p109
      %p111 = scmp.le.s32.totalorder 1, %s11
      %p112 = scmp.lt.s32.totalorder %s11, 5
      %p113 = pnand %p111, %p112
      %p114 = pneg %p113
      // Predicated region
      $region9: #{tpu_custom_call.1} parent=5 // pred_check
        _
      $region10: #{tpu_custom_call.1} parent=5 // pred_check_branch
        %116 = sbr.rel (%p113) target = $region12
      $region11: #{tpu_custom_call.1} parent=5 // pred_region
        %s117 = ssub.s32 %s11, 1
      $region12: #{tpu_custom_call.1} parent=5 // pred_fallthru
        _
      %p118 = scmp.lt.s32.totalorder %s11, 4
      // Predicated region
      $region13: #{tpu_custom_call.1} parent=5 // pred_check
        %p119 = pneg %p118
      $region14: #{tpu_custom_call.1} parent=5 // pred_check_branch
        %121 = sbr.rel (%p119) target = $region16
      $region15: #{tpu_custom_call.1} parent=5 // pred_region
        // Predicated region
        $region17: #{tpu_custom_call.1} parent=15 // pred_check
          %p122 = pneg %p43
        $region18: #{tpu_custom_call.1} parent=15 // pred_check_branch
          %124 = sbr.rel (%p122) target = $region20
        $region19: #{tpu_custom_call.1} parent=15 // pred_region
          %p125 = scmp.lt.s32.totalorder %s18, 1
          %s126 = scalar_select %p125, %s18, 1
          %s127 = smul.addr %s126, 16
          %s128 = smul.addr %s127, 8
          %s129 = scalar_lea.vmem %s0, %s128
        $region20: #{tpu_custom_call.1} parent=15 // pred_fallthru
          _
        // Predicated region
        $region21: #{tpu_custom_call.1} parent=15 // pred_check
          %p130 = pneg %p69
        $region22: #{tpu_custom_call.1} parent=15 // pred_check_branch
          %132 = sbr.rel (%p130) target = $region24
        $region23: #{tpu_custom_call.1} parent=15 // pred_region
          %p133 = scmp.lt.s32.totalorder %s18, 1
          %s134 = scalar_select %p133, %s18, 1
          %s135 = smul.addr %s134, 6
          %s136 = smul.addr %s135, 4
          %s137 = scalar_lea.vmem %s1, %s136
        $region24: #{tpu_custom_call.1} parent=15 // pred_fallthru
          _
      $region16: #{tpu_custom_call.1} parent=5 // pred_fallthru
        _
      %p138 = scmp.le.s32.totalorder 1, %s11
      %p139 = scmp.lt.s32.totalorder %s11, 5
      %p140 = pnand %p138, %p139
      %p141 = pneg %p140
      // Predicated region
      $region25: #{tpu_custom_call.1} parent=5 // pred_check
        _
      $region26: #{tpu_custom_call.1} parent=5 // pred_check_branch
        %143 = sbr.rel (%p140) target = $region28
      $region27: #{tpu_custom_call.1} parent=5 // pred_region
        %s144 = ssub.s32 %s11, 1
        %p145 = scmp.lt.s32.totalorder %s20, 1
        %s146 = scalar_select %p145, %s20, 1
        %s147 = smul.addr %s146, 16
        %s148 = smul.addr %s147, 8
        %s149 = scalar_lea.vmem %s0, %s148
        %p150 = pneg %p49
        %p151 = pneg %p46
        %p152 = scmp.lt.s32.totalorder %s20, 1
        %s153 = scalar_select %p152, %s20, 1
        %s154 = smul.addr %s153, 6
        %s155 = smul.addr %s154, 4
        %s156 = scalar_lea.vmem %s1, %s155
        %p157 = pneg %p75
        %p158 = pneg %p72
        %p159 = pneg %p103
        %p160 = pneg %p100
        %s161 = sand.u32 %s90, 1
        %s162 = scalar_lea.sflag [#allocation5], %s161
        %s163 = sand.u32 %s90, 1
        %s164 = smul.addr %s163, 4
        %s165 = scalar_lea.vmem [#allocation4], %s164
        %p166 = scmp.lt.s32.totalorder %s20, 1
        %s167 = scalar_select %p166, %s20, 1
        %s168 = smul.addr %s167, 16
        %s169 = smul.addr %s168, 8
        %s170 = scalar_lea.vmem %s0, %s169
        %p171 = scmp.lt.s32.totalorder %s20, 1
        %s172 = scalar_select %p171, %s20, 1
        %s173 = smul.addr %s172, 6
        %s174 = smul.addr %s173, 4
        %s175 = scalar_lea.vmem %s1, %s174
        %s176 = smul.u32 %s21, 8
        %177 = vst [vmem:[#allocation2] sm:$0xff] 0.0
        %178 = vst [vmem:[#allocation2 + $0x8] sm:$0xff] 0.0
        %vm179 = vcmask 388096
        %180 = vst.msk [vmem:[#allocation2 + $0x10] sm:$0xf] %vm179, 0.0
        %s181 = scalar_lea.vmem %s170, %s176
        %v182 = vld [vmem:[%s181] sm:$0x1]
        %v183 = vld [vmem:[%s181 + $0x20] sm:$0x1]
        %v184 = vld [vmem:[%s181 + $0x40] sm:$0x1]
        %v185 = vld [vmem:[%s181 + $0x60] sm:$0x1]
        %v190 = vrot.slane %v183, 7
        %vm191 = vcmask 1041409
        %v192 = vsel %vm191, %v190, %v182
        %vm193 = vcmask 1045509
        %v194 = vsel %vm193, %v190, %v192
        %v195 = vrot.slane %v184, 6
        %vm196 = vcmask 1042434
        %v197 = vsel %vm196, %v195, %v194
        %vm198 = vcmask 1046534
        %v199 = vsel %vm198, %v195, %v197
        %v200 = vrot.slane %v185, 5
        %vm201 = vcmask 1043459
        %v202 = vsel %vm201, %v200, %v199
        %vm203 = vcmask 1047559
        %v204 = vsel %vm203, %v200, %v202
        %205 = vrot.lane.b32.xlu0 %v204, 6
        %v206 = vpop.permute.xlu0 %205
        %vm208 = vcmask 175152
        %209 = vst.msk [vmem:[#allocation2] sm:$0xf] %vm208, %v206
        %s210 = sadd.s32 %s176, 1
        %s211 = scalar_lea.vmem %s170, %s210
        %v212 = vld [vmem:[%s211] sm:$0x1]
        %v213 = vld [vmem:[%s211 + $0x20] sm:$0x1]
        %v214 = vld [vmem:[%s211 + $0x40] sm:$0x1]
        %v215 = vld [vmem:[%s211 + $0x60] sm:$0x1]
        %v220 = vrot.slane %v213, 7
        %v221 = vsel %vm191, %v220, %v212
        %v222 = vsel %vm193, %v220, %v221
        %v223 = vrot.slane %v214, 6
        %v224 = vsel %vm196, %v223, %v222
        %v225 = vsel %vm198, %v223, %v224
        %v226 = vrot.slane %v215, 5
        %v227 = vsel %vm201, %v226, %v225
        %v228 = vsel %vm203, %v226, %v227
        %229 = vrot.lane.b32.xlu0 %v228, 34
        %v230 = vpop.permute.xlu0 %229
        %vm232 = vcmask 404752
        %233 = vst.msk [vmem:[#allocation2] sm:$0xf] %vm232, %v230
        %s234 = sadd.s32 %s176, 2
        %s235 = scalar_lea.vmem %s170, %s234
        %v236 = vld [vmem:[%s235] sm:$0x1]
        %v237 = vld [vmem:[%s235 + $0x20] sm:$0x1]
        %v238 = vld [vmem:[%s235 + $0x40] sm:$0x1]
        %v239 = vld [vmem:[%s235 + $0x60] sm:$0x1]
        %v244 = vrot.slane %v237, 7
        %v245 = vsel %vm191, %v244, %v236
        %v246 = vsel %vm193, %v244, %v245
        %v247 = vrot.slane %v238, 6
        %v248 = vsel %vm196, %v247, %v246
        %v249 = vsel %vm198, %v247, %v248
        %v250 = vrot.slane %v239, 5
        %v251 = vsel %vm201, %v250, %v249
        %v252 = vsel %vm203, %v250, %v251
        %253 = vrot.lane.b32.xlu0 %v252, 62
        %v254 = vpop.permute.xlu0 %253
        %vm256 = vcmask 634352
        %257 = vst.msk [vmem:[#allocation2] sm:$0xf] %vm256, %v254
        %s258 = sadd.s32 %s176, 3
        %s259 = scalar_lea.vmem %s170, %s258
        %v260 = vld [vmem:[%s259] sm:$0x1]
        %v261 = vld [vmem:[%s259 + $0x20] sm:$0x1]
        %v262 = vld [vmem:[%s259 + $0x40] sm:$0x1]
        %v263 = vld [vmem:[%s259 + $0x60] sm:$0x1]
        %v268 = vrot.slane %v261, 7
        %v269 = vsel %vm191, %v268, %v260
        %v270 = vsel %vm193, %v268, %v269
        %v271 = vrot.slane %v262, 6
        %v272 = vsel %vm196, %v271, %v270
        %v273 = vsel %vm198, %v271, %v272
        %v274 = vrot.slane %v263, 5
        %v275 = vsel %vm201, %v274, %v273
        %v276 = vsel %vm203, %v274, %v275
        %277 = vrot.lane.b32.xlu0 %v276, 90
        %v278 = vpop.permute.xlu0 %277
        %vm280 = vcmask 863952
        %281 = vst.msk [vmem:[#allocation2] sm:$0xf] %vm280, %v278
        %s282 = sadd.s32 %s176, 4
        %s283 = scalar_lea.vmem %s170, %s282
        %v284 = vld [vmem:[%s283] sm:$0x1]
        %v285 = vld [vmem:[%s283 + $0x20] sm:$0x1]
        %v286 = vld [vmem:[%s283 + $0x40] sm:$0x1]
        %v287 = vld [vmem:[%s283 + $0x60] sm:$0x1]
        %v292 = vrot.slane %v285, 7
        %v293 = vsel %vm191, %v292, %v284
        %v294 = vsel %vm193, %v292, %v293
        %v295 = vrot.slane %v286, 6
        %v296 = vsel %vm196, %v295, %v294
        %v297 = vsel %vm198, %v295, %v296
        %v298 = vrot.slane %v287, 5
        %v299 = vsel %vm201, %v298, %v297
        %v300 = vsel %vm203, %v298, %v299
        %301 = vrot.lane.b32.xlu0 %v300, 118
        %v302 = vpop.permute.xlu0 %301
        %v303 = vrot.slane %v302, 4
        %vm304 = vcmask 965632
        %v305 = vsel %vm304, %v303, %v302
        %vm307 = vcmask 1044400
        %vm308 = vcmask 48132
        %vm309 = vmor %vm308, %vm307
        %310 = vst.msk [vmem:[#allocation2] sm:$0xff] %vm309, %v305
        %s311 = sadd.s32 %s176, 5
        %s312 = scalar_lea.vmem %s170, %s311
        %v313 = vld [vmem:[%s312] sm:$0x1]
        %v314 = vld [vmem:[%s312 + $0x20] sm:$0x1]
        %v315 = vld [vmem:[%s312 + $0x40] sm:$0x1]
        %v316 = vld [vmem:[%s312 + $0x60] sm:$0x1]
        %v321 = vrot.slane %v314, 7
        %v322 = vsel %vm191, %v321, %v313
        %v323 = vsel %vm193, %v321, %v322
        %v324 = vrot.slane %v315, 6
        %v325 = vsel %vm196, %v324, %v323
        %v326 = vsel %vm198, %v324, %v325
        %v327 = vrot.slane %v316, 5
        %v328 = vsel %vm201, %v327, %v326
        %v329 = vsel %vm203, %v327, %v328
        %330 = vrot.lane.b32.xlu0 %v329, 18
        %v331 = vpop.permute.xlu0 %330
        %vm333 = vcmask 273552
        %334 = vst.msk [vmem:[#allocation2 + $0x4] sm:$0xf] %vm333, %v331
        %s335 = sadd.s32 %s176, 6
        %s336 = scalar_lea.vmem %s170, %s335
        %v337 = vld [vmem:[%s336] sm:$0x1]
        %v338 = vld [vmem:[%s336 + $0x20] sm:$0x1]
        %v339 = vld [vmem:[%s336 + $0x40] sm:$0x1]
        %v340 = vld [vmem:[%s336 + $0x60] sm:$0x1]
        %v345 = vrot.slane %v338, 7
        %v346 = vsel %vm191, %v345, %v337
        %v347 = vsel %vm193, %v345, %v346
        %v348 = vrot.slane %v339, 6
        %v349 = vsel %vm196, %v348, %v347
        %v350 = vsel %vm198, %v348, %v349
        %v351 = vrot.slane %v340, 5
        %v352 = vsel %vm201, %v351, %v350
        %v353 = vsel %vm203, %v351, %v352
        %354 = vrot.lane.b32.xlu0 %v353, 46
        %v355 = vpop.permute.xlu0 %354
        %vm357 = vcmask 503152
        %358 = vst.msk [vmem:[#allocation2 + $0x4] sm:$0xf] %vm357, %v355
        %s359 = sadd.s32 %s176, 7
        %s360 = scalar_lea.vmem %s170, %s359
        %v361 = vld [vmem:[%s360] sm:$0x1]
        %v362 = vld [vmem:[%s360 + $0x20] sm:$0x1]
        %v363 = vld [vmem:[%s360 + $0x40] sm:$0x1]
        %v364 = vld [vmem:[%s360 + $0x60] sm:$0x1]
        %v369 = vrot.slane %v362, 7
        %v370 = vsel %vm191, %v369, %v361
        %v371 = vsel %vm193, %v369, %v370
        %v372 = vrot.slane %v363, 6
        %v373 = vsel %vm196, %v372, %v371
        %v374 = vsel %vm198, %v372, %v373
        %v375 = vrot.slane %v364, 5
        %v376 = vsel %vm201, %v375, %v374
        %v377 = vsel %vm203, %v375, %v376
        %378 = vrot.lane.b32.xlu0 %v377, 74
        %v379 = vpop.permute.xlu0 %378
        %vm381 = vcmask 732752
        %382 = vst.msk [vmem:[#allocation2 + $0x4] sm:$0xf] %vm381, %v379
        %s383 = sadd.s32 %s176, 8
        %s384 = scalar_lea.vmem %s170, %s383
        %v385 = vld [vmem:[%s384] sm:$0x1]
        %v386 = vld [vmem:[%s384 + $0x20] sm:$0x1]
        %v387 = vld [vmem:[%s384 + $0x40] sm:$0x1]
        %v388 = vld [vmem:[%s384 + $0x60] sm:$0x1]
        %v393 = vrot.slane %v386, 7
        %v394 = vsel %vm191, %v393, %v385
        %v395 = vsel %vm193, %v393, %v394
        %v396 = vrot.slane %v387, 6
        %v397 = vsel %vm196, %v396, %v395
        %v398 = vsel %vm198, %v396, %v397
        %v399 = vrot.slane %v388, 5
        %v400 = vsel %vm201, %v399, %v398
        %v401 = vsel %vm203, %v399, %v400
        %402 = vrot.lane.b32.xlu0 %v401, 102
        %v403 = vpop.permute.xlu0 %402
        %vm405 = vcmask 962352
        %406 = vst.msk [vmem:[#allocation2 + $0x4] sm:$0xf] %vm405, %v403
        %s407 = sadd.s32 %s176, 9
        %s408 = scalar_lea.vmem %s170, %s407
        %v409 = vld [vmem:[%s408] sm:$0x1]
        %v410 = vld [vmem:[%s408 + $0x20] sm:$0x1]
        %v411 = vld [vmem:[%s408 + $0x40] sm:$0x1]
        %v412 = vld [vmem:[%s408 + $0x60] sm:$0x1]
        %v417 = vrot.slane %v410, 7
        %v418 = vsel %vm191, %v417, %v409
        %v419 = vsel %vm193, %v417, %v418
        %v420 = vrot.slane %v411, 6
        %v421 = vsel %vm196, %v420, %v419
        %v422 = vsel %vm198, %v420, %v421
        %v423 = vrot.slane %v412, 5
        %v424 = vsel %vm201, %v423, %v422
        %v425 = vsel %vm203, %v423, %v424
        %426 = vrot.lane.b32.xlu0 %v425, 2
        %v427 = vpop.permute.xlu0 %426
        %vm429 = vcmask 142352
        %430 = vst.msk [vmem:[#allocation2 + $0x8] sm:$0xf] %vm429, %v427
        %s431 = sadd.s32 %s176, 10
        %s432 = scalar_lea.vmem %s170, %s431
        %v433 = vld [vmem:[%s432] sm:$0x1]
        %v434 = vld [vmem:[%s432 + $0x20] sm:$0x1]
        %v435 = vld [vmem:[%s432 + $0x40] sm:$0x1]
        %v436 = vld [vmem:[%s432 + $0x60] sm:$0x1]
        %v441 = vrot.slane %v434, 7
        %v442 = vsel %vm191, %v441, %v433
        %v443 = vsel %vm193, %v441, %v442
        %v444 = vrot.slane %v435, 6
        %v445 = vsel %vm196, %v444, %v443
        %v446 = vsel %vm198, %v444, %v445
        %v447 = vrot.slane %v436, 5
        %v448 = vsel %vm201, %v447, %v446
        %v449 = vsel %vm203, %v447, %v448
        %450 = vrot.lane.b32.xlu0 %v449, 30
        %v451 = vpop.permute.xlu0 %450
        %vm453 = vcmask 371952
        %454 = vst.msk [vmem:[#allocation2 + $0x8] sm:$0xf] %vm453, %v451
        %s455 = sadd.s32 %s176, 11
        %s456 = scalar_lea.vmem %s170, %s455
        %v457 = vld [vmem:[%s456] sm:$0x1]
        %v458 = vld [vmem:[%s456 + $0x20] sm:$0x1]
        %v459 = vld [vmem:[%s456 + $0x40] sm:$0x1]
        %v460 = vld [vmem:[%s456 + $0x60] sm:$0x1]
        %v465 = vrot.slane %v458, 7
        %v466 = vsel %vm191, %v465, %v457
        %v467 = vsel %vm193, %v465, %v466
        %v468 = vrot.slane %v459, 6
        %v469 = vsel %vm196, %v468, %v467
        %v470 = vsel %vm198, %v468, %v469
        %v471 = vrot.slane %v460, 5
        %v472 = vsel %vm201, %v471, %v470
        %v473 = vsel %vm203, %v471, %v472
        %474 = vrot.lane.b32.xlu0 %v473, 58
        %v475 = vpop.permute.xlu0 %474
        %vm477 = vcmask 601552
        %478 = vst.msk [vmem:[#allocation2 + $0x8] sm:$0xf] %vm477, %v475
        %s479 = sadd.s32 %s176, 12
        %s480 = scalar_lea.vmem %s170, %s479
        %v481 = vld [vmem:[%s480] sm:$0x1]
        %v482 = vld [vmem:[%s480 + $0x20] sm:$0x1]
        %v483 = vld [vmem:[%s480 + $0x40] sm:$0x1]
        %v484 = vld [vmem:[%s480 + $0x60] sm:$0x1]
        %v489 = vrot.slane %v482, 7
        %v490 = vsel %vm191, %v489, %v481
        %v491 = vsel %vm193, %v489, %v490
        %v492 = vrot.slane %v483, 6
        %v493 = vsel %vm196, %v492, %v491
        %v494 = vsel %vm198, %v492, %v493
        %v495 = vrot.slane %v484, 5
        %v496 = vsel %vm201, %v495, %v494
        %v497 = vsel %vm203, %v495, %v496
        %498 = vrot.lane.b32.xlu0 %v497, 86
        %v499 = vpop.permute.xlu0 %498
        %vm501 = vcmask 831152
        %502 = vst.msk [vmem:[#allocation2 + $0x8] sm:$0xf] %vm501, %v499
        %s503 = sadd.s32 %s176, 13
        %s504 = scalar_lea.vmem %s170, %s503
        %v505 = vld [vmem:[%s504] sm:$0x1]
        %v506 = vld [vmem:[%s504 + $0x20] sm:$0x1]
        %v507 = vld [vmem:[%s504 + $0x40] sm:$0x1]
        %v508 = vld [vmem:[%s504 + $0x60] sm:$0x1]
        %v513 = vrot.slane %v506, 7
        %v514 = vsel %vm191, %v513, %v505
        %v515 = vsel %vm193, %v513, %v514
        %v516 = vrot.slane %v507, 6
        %v517 = vsel %vm196, %v516, %v515
        %v518 = vsel %vm198, %v516, %v517
        %v519 = vrot.slane %v508, 5
        %v520 = vsel %vm201, %v519, %v518
        %v521 = vsel %vm203, %v519, %v520
        %522 = vrot.lane.b32.xlu0 %v521, 114
        %v523 = vpop.permute.xlu0 %522
        %v524 = vrot.slane %v523, 4
        %vm525 = vcmask 932864
        %v526 = vsel %vm525, %v524, %v523
        %vm528 = vcmask 1044368
        %vm529 = vcmask 15364
        %vm530 = vmor %vm529, %vm528
        %531 = vst.msk [vmem:[#allocation2 + $0x8] sm:$0xff] %vm530, %v526
        %s532 = sadd.s32 %s176, 14
        %s533 = scalar_lea.vmem %s170, %s532
        %v534 = vld [vmem:[%s533] sm:$0x1]
        %v535 = vld [vmem:[%s533 + $0x20] sm:$0x1]
        %v536 = vld [vmem:[%s533 + $0x40] sm:$0x1]
        %v537 = vld [vmem:[%s533 + $0x60] sm:$0x1]
        %v542 = vrot.slane %v535, 7
        %v543 = vsel %vm191, %v542, %v534
        %v544 = vsel %vm193, %v542, %v543
        %v545 = vrot.slane %v536, 6
        %v546 = vsel %vm196, %v545, %v544
        %v547 = vsel %vm198, %v545, %v546
        %v548 = vrot.slane %v537, 5
        %v549 = vsel %vm201, %v548, %v547
        %v550 = vsel %vm203, %v548, %v549
        %551 = vrot.lane.b32.xlu0 %v550, 14
        %v552 = vpop.permute.xlu0 %551
        %vm554 = vcmask 240752
        %555 = vst.msk [vmem:[#allocation2 + $0xc] sm:$0xf] %vm554, %v552
        %s556 = sadd.s32 %s176, 15
        %s557 = scalar_lea.vmem %s170, %s556
        %v558 = vld [vmem:[%s557] sm:$0x1]
        %v559 = vld [vmem:[%s557 + $0x20] sm:$0x1]
        %v560 = vld [vmem:[%s557 + $0x40] sm:$0x1]
        %v561 = vld [vmem:[%s557 + $0x60] sm:$0x1]
        %v566 = vrot.slane %v559, 7
        %v567 = vsel %vm191, %v566, %v558
        %v568 = vsel %vm193, %v566, %v567
        %v569 = vrot.slane %v560, 6
        %v570 = vsel %vm196, %v569, %v568
        %v571 = vsel %vm198, %v569, %v570
        %v572 = vrot.slane %v561, 5
        %v573 = vsel %vm201, %v572, %v571
        %v574 = vsel %vm203, %v572, %v573
        %575 = vrot.lane.b32.xlu0 %v574, 42
        %v576 = vpop.permute.xlu0 %575
        %vm578 = vcmask 470352
        %579 = vst.msk [vmem:[#allocation2 + $0xc] sm:$0xf] %vm578, %v576
        %s580 = sadd.s32 %s176, 16
        %s581 = scalar_lea.vmem %s170, %s580
        %v582 = vld [vmem:[%s581] sm:$0x1]
        %v583 = vld [vmem:[%s581 + $0x20] sm:$0x1]
        %v584 = vld [vmem:[%s581 + $0x40] sm:$0x1]
        %v585 = vld [vmem:[%s581 + $0x60] sm:$0x1]
        %v590 = vrot.slane %v583, 7
        %v591 = vsel %vm191, %v590, %v582
        %v592 = vsel %vm193, %v590, %v591
        %v593 = vrot.slane %v584, 6
        %v594 = vsel %vm196, %v593, %v592
        %v595 = vsel %vm198, %v593, %v594
        %v596 = vrot.slane %v585, 5
        %v597 = vsel %vm201, %v596, %v595
        %v598 = vsel %vm203, %v596, %v597
        %599 = vrot.lane.b32.xlu0 %v598, 70
        %v600 = vpop.permute.xlu0 %599
        %vm602 = vcmask 699952
        %603 = vst.msk [vmem:[#allocation2 + $0xc] sm:$0xf] %vm602, %v600
        %s604 = sadd.s32 %s176, 17
        %s605 = scalar_lea.vmem %s170, %s604
        %v606 = vld [vmem:[%s605] sm:$0x1]
        %v607 = vld [vmem:[%s605 + $0x20] sm:$0x1]
        %v608 = vld [vmem:[%s605 + $0x40] sm:$0x1]
        %v609 = vld [vmem:[%s605 + $0x60] sm:$0x1]
        %v614 = vrot.slane %v607, 7
        %v615 = vsel %vm191, %v614, %v606
        %v616 = vsel %vm193, %v614, %v615
        %v617 = vrot.slane %v608, 6
        %v618 = vsel %vm196, %v617, %v616
        %v619 = vsel %vm198, %v617, %v618
        %v620 = vrot.slane %v609, 5
        %v621 = vsel %vm201, %v620, %v619
        %v622 = vsel %vm203, %v620, %v621
        %623 = vrot.lane.b32.xlu0 %v622, 98
        %v624 = vpop.permute.xlu0 %623
        %vm626 = vcmask 929552
        %627 = vst.msk [vmem:[#allocation2 + $0xc] sm:$0xf] %vm626, %v624
        %s628 = sadd.s32 %s176, 18
        %s629 = scalar_lea.vmem %s170, %s628
        %v630 = vld [vmem:[%s629] sm:$0x1]
        %v631 = vld [vmem:[%s629 + $0x20] sm:$0x1]
        %v632 = vld [vmem:[%s629 + $0x40] sm:$0x1]
        %v633 = vld [vmem:[%s629 + $0x60] sm:$0x1]
        %v638 = vrot.slane %v631, 7
        %v639 = vsel %vm191, %v638, %v630
        %v640 = vsel %vm193, %v638, %v639
        %v641 = vrot.slane %v632, 6
        %v642 = vsel %vm196, %v641, %v640
        %v643 = vsel %vm198, %v641, %v642
        %v644 = vrot.slane %v633, 5
        %v645 = vsel %vm201, %v644, %v643
        %v646 = vsel %vm203, %v644, %v645
        %647 = vrot.lane.b32.xlu0 %v646, 126
        %v648 = vpop.permute.xlu0 %647
        %v649 = vrot.slane %v648, 4
        %vm650 = vcmask 1031168
        %v651 = vsel %vm650, %v649, %v648
        %vm653 = vcmask 1044464
        %vm654 = vcmask 113668
        %vm655 = vmor %vm654, %vm653
        %656 = vst.msk [vmem:[#allocation2 + $0xc] sm:$0xff] %vm655, %v651
        %s657 = sadd.s32 %s176, 19
        %s658 = scalar_lea.vmem %s170, %s657
        %v659 = vld [vmem:[%s658] sm:$0x1]
        %v660 = vld [vmem:[%s658 + $0x20] sm:$0x1]
        %v661 = vld [vmem:[%s658 + $0x40] sm:$0x1]
        %v662 = vld [vmem:[%s658 + $0x60] sm:$0x1]
        %v667 = vrot.slane %v660, 7
        %v668 = vsel %vm191, %v667, %v659
        %v669 = vsel %vm193, %v667, %v668
        %v670 = vrot.slane %v661, 6
        %v671 = vsel %vm196, %v670, %v669
        %v672 = vsel %vm198, %v670, %v671
        %v673 = vrot.slane %v662, 5
        %v674 = vsel %vm201, %v673, %v672
        %v675 = vsel %vm203, %v673, %v674
        %676 = vrot.lane.b32.xlu0 %v675, 26
        %v677 = vpop.permute.xlu0 %676
        %vm679 = vcmask 339152
        %680 = vst.msk [vmem:[#allocation2 + $0x10] sm:$0xf] %vm679, %v677
        %v681 = vld [vmem:[#allocation2] sm:$0xff]
        %v683 = vcombine.high %v681, %v681
        %685 = vst [vmem:[#allocation3] sm:$0xf] %v681
        %vm686 = vcmask 683008
        %687 = vst.msk [vmem:[#allocation3 + $0x8] sm:$0xf] %vm686, %v683
        %v688 = vld [vmem:[#allocation2] sm:$0xff]
        %v690 = vcombine.low %v688, %v688
        %691 = vrot.lane.b32.xlu0 %v690, 127
        %v692 = vpop.permute.xlu0 %691
        %693 = vrot.lane.b32.xlu0 %v688, 127
        %v694 = vpop.permute.xlu0 %693
        %vm695 = vcmask 1039360
        %v696 = vsel %vm695, %v692, %v694
        %699 = vst [vmem:[#allocation3] sm:$0xf0] %v696
        %vm700 = vcmask 687108
        %701 = vst.msk [vmem:[#allocation3 + $0x8] sm:$0xf0] %vm700, %v694
        %v702 = vld [vmem:[#allocation2] sm:$0xff]
        %v704 = vcombine.high %v702, %v702
        %705 = vrot.lane.b32.xlu0 %v702, 126
        %v706 = vpop.permute.xlu0 %705
        %707 = vrot.lane.b32.xlu0 %v704, 126
        %v708 = vpop.permute.xlu0 %707
        %v709 = vsel %vm650, %v706, %v708
        %712 = vst [vmem:[#allocation3 + $0x10] sm:$0xf] %v709
        %713 = vst.msk [vmem:[#allocation3 + $0x18] sm:$0xf] %vm686, %v708
        %v714 = vld [vmem:[#allocation2] sm:$0xff]
        %v716 = vcombine.low %v714, %v714
        %717 = vrot.lane.b32.xlu0 %v716, 125
        %v718 = vpop.permute.xlu0 %717
        %719 = vrot.lane.b32.xlu0 %v714, 125
        %v720 = vpop.permute.xlu0 %719
        %vm721 = vcmask 1022976
        %v722 = vsel %vm721, %v718, %v720
        %725 = vst [vmem:[#allocation3 + $0x10] sm:$0xf0] %v722
        %726 = vst.msk [vmem:[#allocation3 + $0x18] sm:$0xf0] %vm700, %v720
        %v727 = vld [vmem:[#allocation2] sm:$0xff]
        %v729 = vcombine.high %v727, %v727
        %730 = vrot.lane.b32.xlu0 %v727, 124
        %v731 = vpop.permute.xlu0 %730
        %732 = vrot.lane.b32.xlu0 %v729, 124
        %v733 = vpop.permute.xlu0 %732
        %vm734 = vcmask 1014784
        %v735 = vsel %vm734, %v731, %v733
        %738 = vst [vmem:[#allocation3 + $0x20] sm:$0xf] %v735
        %739 = vst.msk [vmem:[#allocation3 + $0x28] sm:$0xf] %vm686, %v733
        %v740 = vld [vmem:[#allocation2] sm:$0xff]
        %v742 = vcombine.low %v740, %v740
        %743 = vrot.lane.b32.xlu0 %v742, 123
        %v744 = vpop.permute.xlu0 %743
        %745 = vrot.lane.b32.xlu0 %v740, 123
        %v746 = vpop.permute.xlu0 %745
        %vm747 = vcmask 1006592
        %v748 = vsel %vm747, %v744, %v746
        %751 = vst [vmem:[#allocation3 + $0x20] sm:$0xf0] %v748
        %752 = vst.msk [vmem:[#allocation3 + $0x28] sm:$0xf0] %vm700, %v746
        %v753 = vld [vmem:[#allocation2] sm:$0xff]
        %v755 = vcombine.high %v753, %v753
        %756 = vrot.lane.b32.xlu0 %v753, 122
        %v757 = vpop.permute.xlu0 %756
        %758 = vrot.lane.b32.xlu0 %v755, 122
        %v759 = vpop.permute.xlu0 %758
        %vm760 = vcmask 998400
        %v761 = vsel %vm760, %v757, %v759
        %764 = vst [vmem:[#allocation3 + $0x30] sm:$0xf] %v761
        %765 = vst.msk [vmem:[#allocation3 + $0x38] sm:$0xf] %vm686, %v759
        %v766 = vld [vmem:[#allocation2] sm:$0xff]
        %v768 = vcombine.low %v766, %v766
        %769 = vrot.lane.b32.xlu0 %v768, 121
        %v770 = vpop.permute.xlu0 %769
        %771 = vrot.lane.b32.xlu0 %v766, 121
        %v772 = vpop.permute.xlu0 %771
        %vm773 = vcmask 990208
        %v774 = vsel %vm773, %v770, %v772
        %777 = vst [vmem:[#allocation3 + $0x30] sm:$0xf0] %v774
        %778 = vst.msk [vmem:[#allocation3 + $0x38] sm:$0xf0] %vm700, %v772
        %v779 = vld [vmem:[#allocation2] sm:$0xff]
        %v781 = vcombine.high %v779, %v779
        %782 = vrot.lane.b32.xlu0 %v779, 120
        %v783 = vpop.permute.xlu0 %782
        %784 = vrot.lane.b32.xlu0 %v781, 120
        %v785 = vpop.permute.xlu0 %784
        %vm786 = vcmask 982016
        %v787 = vsel %vm786, %v783, %v785
        %790 = vst [vmem:[#allocation3 + $0x40] sm:$0xf] %v787
        %791 = vst.msk [vmem:[#allocation3 + $0x48] sm:$0xf] %vm686, %v785
        %v792 = vld [vmem:[#allocation2] sm:$0xff]
        %v794 = vcombine.low %v792, %v792
        %795 = vrot.lane.b32.xlu0 %v794, 119
        %v796 = vpop.permute.xlu0 %795
        %797 = vrot.lane.b32.xlu0 %v792, 119
        %v798 = vpop.permute.xlu0 %797
        %vm799 = vcmask 973824
        %v800 = vsel %vm799, %v796, %v798
        %803 = vst [vmem:[#allocation3 + $0x40] sm:$0xf0] %v800
        %804 = vst.msk [vmem:[#allocation3 + $0x48] sm:$0xf0] %vm700, %v798
        %v805 = vld [vmem:[#allocation2] sm:$0xff]
        %v807 = vcombine.high %v805, %v805
        %808 = vrot.lane.b32.xlu0 %v805, 118
        %v809 = vpop.permute.xlu0 %808
        %810 = vrot.lane.b32.xlu0 %v807, 118
        %v811 = vpop.permute.xlu0 %810
        %v812 = vsel %vm304, %v809, %v811
        %815 = vst [vmem:[#allocation3 + $0x50] sm:$0xf] %v812
        %816 = vst.msk [vmem:[#allocation3 + $0x58] sm:$0xf] %vm686, %v811
        %v817 = vld [vmem:[#allocation2] sm:$0xff]
        %v819 = vcombine.low %v817, %v817
        %820 = vrot.lane.b32.xlu0 %v819, 117
        %v821 = vpop.permute.xlu0 %820
        %822 = vrot.lane.b32.xlu0 %v817, 117
        %v823 = vpop.permute.xlu0 %822
        %vm824 = vcmask 957440
        %v825 = vsel %vm824, %v821, %v823
        %828 = vst [vmem:[#allocation3 + $0x50] sm:$0xf0] %v825
        %829 = vst.msk [vmem:[#allocation3 + $0x58] sm:$0xf0] %vm700, %v823
        %v830 = vld [vmem:[#allocation2] sm:$0xff]
        %v832 = vcombine.high %v830, %v830
        %833 = vrot.lane.b32.xlu0 %v830, 116
        %v834 = vpop.permute.xlu0 %833
        %835 = vrot.lane.b32.xlu0 %v832, 116
        %v836 = vpop.permute.xlu0 %835
        %vm837 = vcmask 949248
        %v838 = vsel %vm837, %v834, %v836
        %841 = vst [vmem:[#allocation3 + $0x60] sm:$0xf] %v838
        %842 = vst.msk [vmem:[#allocation3 + $0x68] sm:$0xf] %vm686, %v836
        %v843 = vld [vmem:[#allocation2] sm:$0xff]
        %v845 = vcombine.low %v843, %v843
        %846 = vrot.lane.b32.xlu0 %v845, 100
        %v847 = vpop.permute.xlu0 %846
        %848 = vrot.lane.b32.xlu0 %v843, 100
        %v849 = vpop.permute.xlu0 %848
        %vm850 = vcmask 818176
        %v851 = vsel %vm850, %v847, %v849
        %854 = vst [vmem:[#allocation3 + $0x60] sm:$0xf0] %v851
        %855 = vst.msk [vmem:[#allocation3 + $0x68] sm:$0xf0] %vm700, %v849
        %v856 = vld [vmem:[#allocation2] sm:$0xff]
        %v858 = vcombine.high %v856, %v856
        %859 = vrot.lane.b32.xlu0 %v856, 99
        %v860 = vpop.permute.xlu0 %859
        %861 = vrot.lane.b32.xlu0 %v858, 99
        %v862 = vpop.permute.xlu0 %861
        %vm863 = vcmask 809984
        %v864 = vsel %vm863, %v860, %v862
        %867 = vst [vmem:[#allocation3 + $0x70] sm:$0xf] %v864
        %868 = vst.msk [vmem:[#allocation3 + $0x78] sm:$0xf] %vm686, %v862
        %v869 = vld [vmem:[#allocation2] sm:$0xff]
        %v871 = vcombine.low %v869, %v869
        %872 = vrot.lane.b32.xlu0 %v871, 98
        %v873 = vpop.permute.xlu0 %872
        %874 = vrot.lane.b32.xlu0 %v869, 98
        %v875 = vpop.permute.xlu0 %874
        %vm876 = vcmask 801792
        %v877 = vsel %vm876, %v873, %v875
        %880 = vst [vmem:[#allocation3 + $0x70] sm:$0xf0] %v877
        %881 = vst.msk [vmem:[#allocation3 + $0x78] sm:$0xf0] %vm700, %v875
        %v882 = vld [vmem:[#allocation2] sm:$0xff]
        %v884 = vcombine.high %v882, %v882
        %885 = vrot.lane.b32.xlu0 %v882, 97
        %v886 = vpop.permute.xlu0 %885
        %887 = vrot.lane.b32.xlu0 %v884, 97
        %v888 = vpop.permute.xlu0 %887
        %vm889 = vcmask 793600
        %v890 = vsel %vm889, %v886, %v888
        %893 = vst [vmem:[#allocation3 + $0x80] sm:$0xf] %v890
        %894 = vst.msk [vmem:[#allocation3 + $0x88] sm:$0xf] %vm686, %v888
        %v895 = vld [vmem:[#allocation2] sm:$0xff]
        %v897 = vcombine.low %v895, %v895
        %898 = vrot.lane.b32.xlu0 %v897, 96
        %v899 = vpop.permute.xlu0 %898
        %900 = vrot.lane.b32.xlu0 %v895, 96
        %v901 = vpop.permute.xlu0 %900
        %vm902 = vcmask 785408
        %v903 = vsel %vm902, %v899, %v901
        %906 = vst [vmem:[#allocation3 + $0x80] sm:$0xf0] %v903
        %907 = vst.msk [vmem:[#allocation3 + $0x88] sm:$0xf0] %vm700, %v901
        %v908 = vld [vmem:[#allocation2] sm:$0xff]
        %v910 = vcombine.high %v908, %v908
        %911 = vrot.lane.b32.xlu0 %v908, 95
        %v912 = vpop.permute.xlu0 %911
        %913 = vrot.lane.b32.xlu0 %v910, 95
        %v914 = vpop.permute.xlu0 %913
        %vm915 = vcmask 777216
        %v916 = vsel %vm915, %v912, %v914
        %919 = vst [vmem:[#allocation3 + $0x90] sm:$0xf] %v916
        %920 = vst.msk [vmem:[#allocation3 + $0x98] sm:$0xf] %vm686, %v914
        %v921 = vld [vmem:[#allocation2] sm:$0xff]
        %v923 = vcombine.low %v921, %v921
        %924 = vrot.lane.b32.xlu0 %v923, 94
        %v925 = vpop.permute.xlu0 %924
        %926 = vrot.lane.b32.xlu0 %v921, 94
        %v927 = vpop.permute.xlu0 %926
        %vm928 = vcmask 769024
        %v929 = vsel %vm928, %v925, %v927
        %932 = vst [vmem:[#allocation3 + $0x90] sm:$0xf0] %v929
        %933 = vst.msk [vmem:[#allocation3 + $0x98] sm:$0xf0] %vm700, %v927
        %v934 = vld [vmem:[#allocation2] sm:$0xff]
        %v936 = vcombine.high %v934, %v934
        %937 = vrot.lane.b32.xlu0 %v934, 93
        %v938 = vpop.permute.xlu0 %937
        %939 = vrot.lane.b32.xlu0 %v936, 93
        %v940 = vpop.permute.xlu0 %939
        %vm941 = vcmask 760832
        %v942 = vsel %vm941, %v938, %v940
        %945 = vst [vmem:[#allocation3 + $0xa0] sm:$0xf] %v942
        %946 = vst.msk [vmem:[#allocation3 + $0xa8] sm:$0xf] %vm686, %v940
        %v947 = vld [vmem:[#allocation2] sm:$0xff]
        %v949 = vcombine.low %v947, %v947
        %950 = vrot.lane.b32.xlu0 %v949, 92
        %v951 = vpop.permute.xlu0 %950
        %952 = vrot.lane.b32.xlu0 %v947, 92
        %v953 = vpop.permute.xlu0 %952
        %vm954 = vcmask 752640
        %v955 = vsel %vm954, %v951, %v953
        %958 = vst [vmem:[#allocation3 + $0xa0] sm:$0xf0] %v955
        %959 = vst.msk [vmem:[#allocation3 + $0xa8] sm:$0xf0] %vm700, %v953
        %v960 = vld [vmem:[#allocation2] sm:$0xff]
        %v962 = vcombine.high %v960, %v960
        %963 = vrot.lane.b32.xlu0 %v960, 91
        %v964 = vpop.permute.xlu0 %963
        %965 = vrot.lane.b32.xlu0 %v962, 91
        %v966 = vpop.permute.xlu0 %965
        %vm967 = vcmask 744448
        %v968 = vsel %vm967, %v964, %v966
        %971 = vst [vmem:[#allocation3 + $0xb0] sm:$0xf] %v968
        %972 = vst.msk [vmem:[#allocation3 + $0xb8] sm:$0xf] %vm686, %v966
        %v973 = vld [vmem:[#allocation2] sm:$0xff]
        %v975 = vcombine.low %v973, %v973
        %976 = vrot.lane.b32.xlu0 %v975, 90
        %v977 = vpop.permute.xlu0 %976
        %978 = vrot.lane.b32.xlu0 %v973, 90
        %v979 = vpop.permute.xlu0 %978
        %vm980 = vcmask 736256
        %v981 = vsel %vm980, %v977, %v979
        %984 = vst [vmem:[#allocation3 + $0xb0] sm:$0xf0] %v981
        %985 = vst.msk [vmem:[#allocation3 + $0xb8] sm:$0xf0] %vm700, %v979
        %v986 = vld [vmem:[#allocation2] sm:$0xff]
        %v988 = vcombine.high %v986, %v986
        %989 = vrot.lane.b32.xlu0 %v986, 89
        %v990 = vpop.permute.xlu0 %989
        %991 = vrot.lane.b32.xlu0 %v988, 89
        %v992 = vpop.permute.xlu0 %991
        %vm993 = vcmask 728064
        %v994 = vsel %vm993, %v990, %v992
        %997 = vst [vmem:[#allocation3 + $0xc0] sm:$0xf] %v994
        %998 = vst.msk [vmem:[#allocation3 + $0xc8] sm:$0xf] %vm686, %v992
        %v999 = vld [vmem:[#allocation2] sm:$0xff]
        %v1001 = vcombine.low %v999, %v999
        %1002 = vrot.lane.b32.xlu0 %v1001, 88
        %v1003 = vpop.permute.xlu0 %1002
        %1004 = vrot.lane.b32.xlu0 %v999, 88
        %v1005 = vpop.permute.xlu0 %1004
        %vm1006 = vcmask 719872
        %v1007 = vsel %vm1006, %v1003, %v1005
        %1010 = vst [vmem:[#allocation3 + $0xc0] sm:$0xf0] %v1007
        %1011 = vst.msk [vmem:[#allocation3 + $0xc8] sm:$0xf0] %vm700, %v1005
        %v1012 = vld [vmem:[#allocation2] sm:$0xff]
        %v1013 = vld [vmem:[#allocation2 + $0x8] sm:$0xf]
        %v1016 = vcombine.high %v1012, %v1012
        %1017 = vrot.lane.b32.xlu0 %v1012, 72
        %v1018 = vpop.permute.xlu0 %1017
        %1019 = vrot.lane.b32.xlu0 %v1016, 72
        %v1020 = vpop.permute.xlu0 %1019
        %1021 = vrot.lane.b32.xlu0 %v1013, 72
        %v1022 = vpop.permute.xlu0 %1021
        %vm1023 = vcmask 588800
        %v1024 = vsel %vm1023, %v1018, %v1020
        %v1025 = vsel %vm1023, %v1020, %v1022
        %1028 = vst [vmem:[#allocation3 + $0xd0] sm:$0xf] %v1024
        %1029 = vst.msk [vmem:[#allocation3 + $0xd8] sm:$0xf] %vm686, %v1025
        %v1030 = vld [vmem:[#allocation2] sm:$0xff]
        %v1031 = vld [vmem:[#allocation2 + $0x8] sm:$0xf]
        %v1034 = vcombine.low %v1030, %v1030
        %v1035 = vcombine.low %v1031, %v1031
        %1036 = vrot.lane.b32.xlu0 %v1034, 71
        %v1037 = vpop.permute.xlu0 %1036
        %1038 = vrot.lane.b32.xlu0 %v1030, 71
        %v1039 = vpop.permute.xlu0 %1038
        %1040 = vrot.lane.b32.xlu0 %v1035, 71
        %v1041 = vpop.permute.xlu0 %1040
        %vm1042 = vcmask 580608
        %v1043 = vsel %vm1042, %v1037, %v1039
        %v1044 = vsel %vm1042, %v1039, %v1041
        %1047 = vst [vmem:[#allocation3 + $0xd0] sm:$0xf0] %v1043
        %1048 = vst.msk [vmem:[#allocation3 + $0xd8] sm:$0xf0] %vm700, %v1044
        %v1049 = vld [vmem:[#allocation2] sm:$0xff]
        %v1050 = vld [vmem:[#allocation2 + $0x8] sm:$0xf]
        %v1053 = vcombine.high %v1049, %v1049
        %1054 = vrot.lane.b32.xlu0 %v1049, 70
        %v1055 = vpop.permute.xlu0 %1054
        %1056 = vrot.lane.b32.xlu0 %v1053, 70
        %v1057 = vpop.permute.xlu0 %1056
        %1058 = vrot.lane.b32.xlu0 %v1050, 70
        %v1059 = vpop.permute.xlu0 %1058
        %vm1060 = vcmask 572416
        %v1061 = vsel %vm1060, %v1055, %v1057
        %v1062 = vsel %vm1060, %v1057, %v1059
        %1065 = vst [vmem:[#allocation3 + $0xe0] sm:$0xf] %v1061
        %1066 = vst.msk [vmem:[#allocation3 + $0xe8] sm:$0xf] %vm686, %v1062
        %v1067 = vld [vmem:[#allocation2] sm:$0xff]
        %v1068 = vld [vmem:[#allocation2 + $0x8] sm:$0xf]
        %v1071 = vcombine.low %v1067, %v1067
        %v1072 = vcombine.low %v1068, %v1068
        %1073 = vrot.lane.b32.xlu0 %v1071, 69
        %v1074 = vpop.permute.xlu0 %1073
        %1075 = vrot.lane.b32.xlu0 %v1067, 69
        %v1076 = vpop.permute.xlu0 %1075
        %1077 = vrot.lane.b32.xlu0 %v1072, 69
        %v1078 = vpop.permute.xlu0 %1077
        %vm1079 = vcmask 564224
        %v1080 = vsel %vm1079, %v1074, %v1076
        %v1081 = vsel %vm1079, %v1076, %v1078
        %1084 = vst [vmem:[#allocation3 + $0xe0] sm:$0xf0] %v1080
        %1085 = vst.msk [vmem:[#allocation3 + $0xe8] sm:$0xf0] %vm700, %v1081
        %v1086 = vld [vmem:[#allocation2] sm:$0xff]
        %v1087 = vld [vmem:[#allocation2 + $0x8] sm:$0xf]
        %v1090 = vcombine.high %v1086, %v1086
        %1091 = vrot.lane.b32.xlu0 %v1086, 68
        %v1092 = vpop.permute.xlu0 %1091
        %1093 = vrot.lane.b32.xlu0 %v1090, 68
        %v1094 = vpop.permute.xlu0 %1093
        %1095 = vrot.lane.b32.xlu0 %v1087, 68
        %v1096 = vpop.permute.xlu0 %1095
        %vm1097 = vcmask 556032
        %v1098 = vsel %vm1097, %v1092, %v1094
        %v1099 = vsel %vm1097, %v1094, %v1096
        %1102 = vst [vmem:[#allocation3 + $0xf0] sm:$0xf] %v1098
        %1103 = vst.msk [vmem:[#allocation3 + $0xf8] sm:$0xf] %vm686, %v1099
        %v1104 = vld [vmem:[#allocation2] sm:$0xff]
        %v1105 = vld [vmem:[#allocation2 + $0x8] sm:$0xf]
        %v1108 = vcombine.low %v1104, %v1104
        %v1109 = vcombine.low %v1105, %v1105
        %1110 = vrot.lane.b32.xlu0 %v1108, 67
        %v1111 = vpop.permute.xlu0 %1110
        %1112 = vrot.lane.b32.xlu0 %v1104, 67
        %v1113 = vpop.permute.xlu0 %1112
        %1114 = vrot.lane.b32.xlu0 %v1109, 67
        %v1115 = vpop.permute.xlu0 %1114
        %vm1116 = vcmask 547840
        %v1117 = vsel %vm1116, %v1111, %v1113
        %v1118 = vsel %vm1116, %v1113, %v1115
        %1121 = vst [vmem:[#allocation3 + $0xf0] sm:$0xf0] %v1117
        %1122 = vst.msk [vmem:[#allocation3 + $0xf8] sm:$0xf0] %vm700, %v1118
        %v1123 = vld [vmem:[#allocation2] sm:$0xff]
        %v1124 = vld [vmem:[#allocation2 + $0x8] sm:$0xf]
        %v1127 = vcombine.high %v1123, %v1123
        %1128 = vrot.lane.b32.xlu0 %v1123, 66
        %v1129 = vpop.permute.xlu0 %1128
        %1130 = vrot.lane.b32.xlu0 %v1127, 66
        %v1131 = vpop.permute.xlu0 %1130
        %1132 = vrot.lane.b32.xlu0 %v1124, 66
        %v1133 = vpop.permute.xlu0 %1132
        %vm1134 = vcmask 539648
        %v1135 = vsel %vm1134, %v1129, %v1131
        %v1136 = vsel %vm1134, %v1131, %v1133
        %1139 = vst [vmem:[#allocation3 + $0x100] sm:$0xf] %v1135
        %1140 = vst.msk [vmem:[#allocation3 + $0x108] sm:$0xf] %vm686, %v1136
        %v1141 = vld [vmem:[#allocation2] sm:$0xff]
        %v1142 = vld [vmem:[#allocation2 + $0x8] sm:$0xf]
        %v1145 = vcombine.low %v1141, %v1141
        %v1146 = vcombine.low %v1142, %v1142
        %1147 = vrot.lane.b32.xlu0 %v1145, 65
        %v1148 = vpop.permute.xlu0 %1147
        %1149 = vrot.lane.b32.xlu0 %v1141, 65
        %v1150 = vpop.permute.xlu0 %1149
        %1151 = vrot.lane.b32.xlu0 %v1146, 65
        %v1152 = vpop.permute.xlu0 %1151
        %vm1153 = vcmask 531456
        %v1154 = vsel %vm1153, %v1148, %v1150
        %v1155 = vsel %vm1153, %v1150, %v1152
        %1158 = vst [vmem:[#allocation3 + $0x100] sm:$0xf0] %v1154
        %1159 = vst.msk [vmem:[#allocation3 + $0x108] sm:$0xf0] %vm700, %v1155
        %v1160 = vld [vmem:[#allocation2] sm:$0xff]
        %v1161 = vld [vmem:[#allocation2 + $0x8] sm:$0xf]
        %v1164 = vcombine.high %v1160, %v1160
        %1165 = vrot.lane.b32.xlu0 %v1160, 64
        %v1166 = vpop.permute.xlu0 %1165
        %1167 = vrot.lane.b32.xlu0 %v1164, 64
        %v1168 = vpop.permute.xlu0 %1167
        %1169 = vrot.lane.b32.xlu0 %v1161, 64
        %v1170 = vpop.permute.xlu0 %1169
        %vm1171 = vcmask 523264
        %v1172 = vsel %vm1171, %v1166, %v1168
        %v1173 = vsel %vm1171, %v1168, %v1170
        %1176 = vst [vmem:[#allocation3 + $0x110] sm:$0xf] %v1172
        %1177 = vst.msk [vmem:[#allocation3 + $0x118] sm:$0xf] %vm686, %v1173
        %v1178 = vld [vmem:[#allocation2] sm:$0xff]
        %v1179 = vld [vmem:[#allocation2 + $0x8] sm:$0xf]
        %v1182 = vcombine.low %v1178, %v1178
        %v1183 = vcombine.low %v1179, %v1179
        %1184 = vrot.lane.b32.xlu0 %v1182, 63
        %v1185 = vpop.permute.xlu0 %1184
        %1186 = vrot.lane.b32.xlu0 %v1178, 63
        %v1187 = vpop.permute.xlu0 %1186
        %1188 = vrot.lane.b32.xlu0 %v1183, 63
        %v1189 = vpop.permute.xlu0 %1188
        %vm1190 = vcmask 515072
        %v1191 = vsel %vm1190, %v1185, %v1187
        %v1192 = vsel %vm1190, %v1187, %v1189
        %1195 = vst [vmem:[#allocation3 + $0x110] sm:$0xf0] %v1191
        %1196 = vst.msk [vmem:[#allocation3 + $0x118] sm:$0xf0] %vm700, %v1192
        %v1197 = vld [vmem:[#allocation2] sm:$0xff]
        %v1198 = vld [vmem:[#allocation2 + $0x8] sm:$0xf]
        %v1201 = vcombine.high %v1197, %v1197
        %1202 = vrot.lane.b32.xlu0 %v1197, 62
        %v1203 = vpop.permute.xlu0 %1202
        %1204 = vrot.lane.b32.xlu0 %v1201, 62
        %v1205 = vpop.permute.xlu0 %1204
        %1206 = vrot.lane.b32.xlu0 %v1198, 62
        %v1207 = vpop.permute.xlu0 %1206
        %vm1208 = vcmask 506880
        %v1209 = vsel %vm1208, %v1203, %v1205
        %v1210 = vsel %vm1208, %v1205, %v1207
        %1213 = vst [vmem:[#allocation3 + $0x120] sm:$0xf] %v1209
        %1214 = vst.msk [vmem:[#allocation3 + $0x128] sm:$0xf] %vm686, %v1210
        %v1215 = vld [vmem:[#allocation2] sm:$0xff]
        %v1216 = vld [vmem:[#allocation2 + $0x8] sm:$0xf]
        %v1219 = vcombine.low %v1215, %v1215
        %v1220 = vcombine.low %v1216, %v1216
        %1221 = vrot.lane.b32.xlu0 %v1219, 61
        %v1222 = vpop.permute.xlu0 %1221
        %1223 = vrot.lane.b32.xlu0 %v1215, 61
        %v1224 = vpop.permute.xlu0 %1223
        %1225 = vrot.lane.b32.xlu0 %v1220, 61
        %v1226 = vpop.permute.xlu0 %1225
        %vm1227 = vcmask 498688
        %v1228 = vsel %vm1227, %v1222, %v1224
        %v1229 = vsel %vm1227, %v1224, %v1226
        %1232 = vst [vmem:[#allocation3 + $0x120] sm:$0xf0] %v1228
        %1233 = vst.msk [vmem:[#allocation3 + $0x128] sm:$0xf0] %vm700, %v1229
        %v1234 = vld [vmem:[#allocation2] sm:$0xff]
        %v1235 = vld [vmem:[#allocation2 + $0x8] sm:$0xf]
        %v1238 = vcombine.high %v1234, %v1234
        %1239 = vrot.lane.b32.xlu0 %v1234, 60
        %v1240 = vpop.permute.xlu0 %1239
        %1241 = vrot.lane.b32.xlu0 %v1238, 60
        %v1242 = vpop.permute.xlu0 %1241
        %1243 = vrot.lane.b32.xlu0 %v1235, 60
        %v1244 = vpop.permute.xlu0 %1243
        %vm1245 = vcmask 490496
        %v1246 = vsel %vm1245, %v1240, %v1242
        %v1247 = vsel %vm1245, %v1242, %v1244
        %1250 = vst [vmem:[#allocation3 + $0x130] sm:$0xf] %v1246
        %1251 = vst.msk [vmem:[#allocation3 + $0x138] sm:$0xf] %vm686, %v1247
        %v1252 = vld [vmem:[#allocation2] sm:$0xff]
        %v1253 = vld [vmem:[#allocation2 + $0x8] sm:$0xf]
        %v1256 = vcombine.low %v1252, %v1252
        %v1257 = vcombine.low %v1253, %v1253
        %1258 = vrot.lane.b32.xlu0 %v1256, 44
        %v1259 = vpop.permute.xlu0 %1258
        %1260 = vrot.lane.b32.xlu0 %v1252, 44
        %v1261 = vpop.permute.xlu0 %1260
        %1262 = vrot.lane.b32.xlu0 %v1257, 44
        %v1263 = vpop.permute.xlu0 %1262
        %vm1264 = vcmask 359424
        %v1265 = vsel %vm1264, %v1259, %v1261
        %v1266 = vsel %vm1264, %v1261, %v1263
        %1269 = vst [vmem:[#allocation3 + $0x130] sm:$0xf0] %v1265
        %1270 = vst.msk [vmem:[#allocation3 + $0x138] sm:$0xf0] %vm700, %v1266
        %v1271 = vld [vmem:[#allocation2] sm:$0xff]
        %v1272 = vld [vmem:[#allocation2 + $0x8] sm:$0xf]
        %v1275 = vcombine.high %v1271, %v1271
        %1276 = vrot.lane.b32.xlu0 %v1271, 43
        %v1277 = vpop.permute.xlu0 %1276
        %1278 = vrot.lane.b32.xlu0 %v1275, 43
        %v1279 = vpop.permute.xlu0 %1278
        %1280 = vrot.lane.b32.xlu0 %v1272, 43
        %v1281 = vpop.permute.xlu0 %1280
        %vm1282 = vcmask 351232
        %v1283 = vsel %vm1282, %v1277, %v1279
        %v1284 = vsel %vm1282, %v1279, %v1281
        %1287 = vst [vmem:[#allocation3 + $0x140] sm:$0xf] %v1283
        %1288 = vst.msk [vmem:[#allocation3 + $0x148] sm:$0xf] %vm686, %v1284
        %v1289 = vld [vmem:[#allocation2] sm:$0xff]
        %v1290 = vld [vmem:[#allocation2 + $0x8] sm:$0xf]
        %v1293 = vcombine.low %v1289, %v1289
        %v1294 = vcombine.low %v1290, %v1290
        %1295 = vrot.lane.b32.xlu0 %v1293, 42
        %v1296 = vpop.permute.xlu0 %1295
        %1297 = vrot.lane.b32.xlu0 %v1289, 42
        %v1298 = vpop.permute.xlu0 %1297
        %1299 = vrot.lane.b32.xlu0 %v1294, 42
        %v1300 = vpop.permute.xlu0 %1299
        %vm1301 = vcmask 343040
        %v1302 = vsel %vm1301, %v1296, %v1298
        %v1303 = vsel %vm1301, %v1298, %v1300
        %1306 = vst [vmem:[#allocation3 + $0x140] sm:$0xf0] %v1302
        %1307 = vst.msk [vmem:[#allocation3 + $0x148] sm:$0xf0] %vm700, %v1303
        %v1308 = vld [vmem:[#allocation2] sm:$0xff]
        %v1309 = vld [vmem:[#allocation2 + $0x8] sm:$0xf]
        %v1312 = vcombine.high %v1308, %v1308
        %1313 = vrot.lane.b32.xlu0 %v1308, 41
        %v1314 = vpop.permute.xlu0 %1313
        %1315 = vrot.lane.b32.xlu0 %v1312, 41
        %v1316 = vpop.permute.xlu0 %1315
        %1317 = vrot.lane.b32.xlu0 %v1309, 41
        %v1318 = vpop.permute.xlu0 %1317
        %vm1319 = vcmask 334848
        %v1320 = vsel %vm1319, %v1314, %v1316
        %v1321 = vsel %vm1319, %v1316, %v1318
        %1324 = vst [vmem:[#allocation3 + $0x150] sm:$0xf] %v1320
        %1325 = vst.msk [vmem:[#allocation3 + $0x158] sm:$0xf] %vm686, %v1321
        %v1326 = vld [vmem:[#allocation2] sm:$0xff]
        %v1327 = vld [vmem:[#allocation2 + $0x8] sm:$0xf]
        %v1330 = vcombine.low %v1326, %v1326
        %v1331 = vcombine.low %v1327, %v1327
        %1332 = vrot.lane.b32.xlu0 %v1330, 40
        %v1333 = vpop.permute.xlu0 %1332
        %1334 = vrot.lane.b32.xlu0 %v1326, 40
        %v1335 = vpop.permute.xlu0 %1334
        %1336 = vrot.lane.b32.xlu0 %v1331, 40
        %v1337 = vpop.permute.xlu0 %1336
        %vm1338 = vcmask 326656
        %v1339 = vsel %vm1338, %v1333, %v1335
        %v1340 = vsel %vm1338, %v1335, %v1337
        %1343 = vst [vmem:[#allocation3 + $0x150] sm:$0xf0] %v1339
        %1344 = vst.msk [vmem:[#allocation3 + $0x158] sm:$0xf0] %vm700, %v1340
        %v1345 = vld [vmem:[#allocation2] sm:$0xff]
        %v1346 = vld [vmem:[#allocation2 + $0x8] sm:$0xf]
        %v1349 = vcombine.high %v1345, %v1345
        %1350 = vrot.lane.b32.xlu0 %v1345, 39
        %v1351 = vpop.permute.xlu0 %1350
        %1352 = vrot.lane.b32.xlu0 %v1349, 39
        %v1353 = vpop.permute.xlu0 %1352
        %1354 = vrot.lane.b32.xlu0 %v1346, 39
        %v1355 = vpop.permute.xlu0 %1354
        %vm1356 = vcmask 318464
        %v1357 = vsel %vm1356, %v1351, %v1353
        %v1358 = vsel %vm1356, %v1353, %v1355
        %1361 = vst [vmem:[#allocation3 + $0x160] sm:$0xf] %v1357
        %1362 = vst.msk [vmem:[#allocation3 + $0x168] sm:$0xf] %vm686, %v1358
        %v1363 = vld [vmem:[#allocation2] sm:$0xff]
        %v1364 = vld [vmem:[#allocation2 + $0x8] sm:$0xf]
        %v1367 = vcombine.low %v1363, %v1363
        %v1368 = vcombine.low %v1364, %v1364
        %1369 = vrot.lane.b32.xlu0 %v1367, 38
        %v1370 = vpop.permute.xlu0 %1369
        %1371 = vrot.lane.b32.xlu0 %v1363, 38
        %v1372 = vpop.permute.xlu0 %1371
        %1373 = vrot.lane.b32.xlu0 %v1368, 38
        %v1374 = vpop.permute.xlu0 %1373
        %vm1375 = vcmask 310272
        %v1376 = vsel %vm1375, %v1370, %v1372
        %v1377 = vsel %vm1375, %v1372, %v1374
        %1380 = vst [vmem:[#allocation3 + $0x160] sm:$0xf0] %v1376
        %1381 = vst.msk [vmem:[#allocation3 + $0x168] sm:$0xf0] %vm700, %v1377
        %v1382 = vld [vmem:[#allocation2] sm:$0xff]
        %v1383 = vld [vmem:[#allocation2 + $0x8] sm:$0xf]
        %v1386 = vcombine.high %v1382, %v1382
        %1387 = vrot.lane.b32.xlu0 %v1382, 37
        %v1388 = vpop.permute.xlu0 %1387
        %1389 = vrot.lane.b32.xlu0 %v1386, 37
        %v1390 = vpop.permute.xlu0 %1389
        %1391 = vrot.lane.b32.xlu0 %v1383, 37
        %v1392 = vpop.permute.xlu0 %1391
        %vm1393 = vcmask 302080
        %v1394 = vsel %vm1393, %v1388, %v1390
        %v1395 = vsel %vm1393, %v1390, %v1392
        %1398 = vst [vmem:[#allocation3 + $0x170] sm:$0xf] %v1394
        %1399 = vst.msk [vmem:[#allocation3 + $0x178] sm:$0xf] %vm686, %v1395
        %v1400 = vld [vmem:[#allocation2] sm:$0xff]
        %v1401 = vld [vmem:[#allocation2 + $0x8] sm:$0xf]
        %v1404 = vcombine.low %v1400, %v1400
        %v1405 = vcombine.low %v1401, %v1401
        %1406 = vrot.lane.b32.xlu0 %v1404, 36
        %v1407 = vpop.permute.xlu0 %1406
        %1408 = vrot.lane.b32.xlu0 %v1400, 36
        %v1409 = vpop.permute.xlu0 %1408
        %1410 = vrot.lane.b32.xlu0 %v1405, 36
        %v1411 = vpop.permute.xlu0 %1410
        %vm1412 = vcmask 293888
        %v1413 = vsel %vm1412, %v1407, %v1409
        %v1414 = vsel %vm1412, %v1409, %v1411
        %1417 = vst [vmem:[#allocation3 + $0x170] sm:$0xf0] %v1413
        %1418 = vst.msk [vmem:[#allocation3 + $0x178] sm:$0xf0] %vm700, %v1414
        %v1419 = vld [vmem:[#allocation2] sm:$0xff]
        %v1420 = vld [vmem:[#allocation2 + $0x8] sm:$0xf]
        %v1423 = vcombine.high %v1419, %v1419
        %1424 = vrot.lane.b32.xlu0 %v1419, 35
        %v1425 = vpop.permute.xlu0 %1424
        %1426 = vrot.lane.b32.xlu0 %v1423, 35
        %v1427 = vpop.permute.xlu0 %1426
        %1428 = vrot.lane.b32.xlu0 %v1420, 35
        %v1429 = vpop.permute.xlu0 %1428
        %vm1430 = vcmask 285696
        %v1431 = vsel %vm1430, %v1425, %v1427
        %v1432 = vsel %vm1430, %v1427, %v1429
        %1435 = vst [vmem:[#allocation3 + $0x180] sm:$0xf] %v1431
        %1436 = vst.msk [vmem:[#allocation3 + $0x188] sm:$0xf] %vm686, %v1432
        %v1437 = vld [vmem:[#allocation2] sm:$0xff]
        %v1438 = vld [vmem:[#allocation2 + $0x8] sm:$0xf]
        %v1441 = vcombine.low %v1437, %v1437
        %v1442 = vcombine.low %v1438, %v1438
        %1443 = vrot.lane.b32.xlu0 %v1441, 34
        %v1444 = vpop.permute.xlu0 %1443
        %1445 = vrot.lane.b32.xlu0 %v1437, 34
        %v1446 = vpop.permute.xlu0 %1445
        %1447 = vrot.lane.b32.xlu0 %v1442, 34
        %v1448 = vpop.permute.xlu0 %1447
        %vm1449 = vcmask 277504
        %v1450 = vsel %vm1449, %v1444, %v1446
        %v1451 = vsel %vm1449, %v1446, %v1448
        %1454 = vst [vmem:[#allocation3 + $0x180] sm:$0xf0] %v1450
        %1455 = vst.msk [vmem:[#allocation3 + $0x188] sm:$0xf0] %vm700, %v1451
        %v1456 = vld [vmem:[#allocation2] sm:$0xff]
        %v1457 = vld [vmem:[#allocation2 + $0x8] sm:$0xf]
        %v1460 = vcombine.high %v1456, %v1456
        %1461 = vrot.lane.b32.xlu0 %v1456, 33
        %v1462 = vpop.permute.xlu0 %1461
        %1463 = vrot.lane.b32.xlu0 %v1460, 33
        %v1464 = vpop.permute.xlu0 %1463
        %1465 = vrot.lane.b32.xlu0 %v1457, 33
        %v1466 = vpop.permute.xlu0 %1465
        %vm1467 = vcmask 269312
        %v1468 = vsel %vm1467, %v1462, %v1464
        %v1469 = vsel %vm1467, %v1464, %v1466
        %1472 = vst [vmem:[#allocation3 + $0x190] sm:$0xf] %v1468
        %1473 = vst.msk [vmem:[#allocation3 + $0x198] sm:$0xf] %vm686, %v1469
        %v1474 = vld [vmem:[#allocation2] sm:$0xff]
        %v1475 = vld [vmem:[#allocation2 + $0x8] sm:$0xf]
        %v1478 = vcombine.low %v1474, %v1474
        %v1479 = vcombine.low %v1475, %v1475
        %1480 = vrot.lane.b32.xlu0 %v1478, 32
        %v1481 = vpop.permute.xlu0 %1480
        %1482 = vrot.lane.b32.xlu0 %v1474, 32
        %v1483 = vpop.permute.xlu0 %1482
        %1484 = vrot.lane.b32.xlu0 %v1479, 32
        %v1485 = vpop.permute.xlu0 %1484
        %vm1486 = vcmask 261120
        %v1487 = vsel %vm1486, %v1481, %v1483
        %v1488 = vsel %vm1486, %v1483, %v1485
        %1491 = vst [vmem:[#allocation3 + $0x190] sm:$0xf0] %v1487
        %1492 = vst.msk [vmem:[#allocation3 + $0x198] sm:$0xf0] %vm700, %v1488
        %v1493 = vld [vmem:[#allocation2] sm:$0xff]
        %v1494 = vld [vmem:[#allocation2 + $0x8] sm:$0xf]
        %v1497 = vcombine.high %v1493, %v1493
        %1498 = vrot.lane.b32.xlu0 %v1493, 16
        %v1499 = vpop.permute.xlu0 %1498
        %1500 = vrot.lane.b32.xlu0 %v1497, 16
        %v1501 = vpop.permute.xlu0 %1500
        %1502 = vrot.lane.b32.xlu0 %v1494, 16
        %v1503 = vpop.permute.xlu0 %1502
        %vm1504 = vcmask 130048
        %v1505 = vsel %vm1504, %v1499, %v1501
        %v1506 = vsel %vm1504, %v1501, %v1503
        %1509 = vst [vmem:[#allocation3 + $0x1a0] sm:$0xf] %v1505
        %1510 = vst.msk [vmem:[#allocation3 + $0x1a8] sm:$0xf] %vm686, %v1506
        %v1511 = vld [vmem:[#allocation2] sm:$0xff]
        %v1512 = vld [vmem:[#allocation2 + $0x8] sm:$0xf]
        %v1515 = vcombine.low %v1511, %v1511
        %v1516 = vcombine.low %v1512, %v1512
        %1517 = vrot.lane.b32.xlu0 %v1515, 15
        %v1518 = vpop.permute.xlu0 %1517
        %1519 = vrot.lane.b32.xlu0 %v1511, 15
        %v1520 = vpop.permute.xlu0 %1519
        %1521 = vrot.lane.b32.xlu0 %v1516, 15
        %v1522 = vpop.permute.xlu0 %1521
        %vm1523 = vcmask 121856
        %v1524 = vsel %vm1523, %v1518, %v1520
        %v1525 = vsel %vm1523, %v1520, %v1522
        %1528 = vst [vmem:[#allocation3 + $0x1a0] sm:$0xf0] %v1524
        %1529 = vst.msk [vmem:[#allocation3 + $0x1a8] sm:$0xf0] %vm700, %v1525
        %v1530 = vld [vmem:[#allocation2] sm:$0xff]
        %v1531 = vld [vmem:[#allocation2 + $0x8] sm:$0xf]
        %v1534 = vcombine.high %v1530, %v1530
        %1535 = vrot.lane.b32.xlu0 %v1530, 14
        %v1536 = vpop.permute.xlu0 %1535
        %1537 = vrot.lane.b32.xlu0 %v1534, 14
        %v1538 = vpop.permute.xlu0 %1537
        %1539 = vrot.lane.b32.xlu0 %v1531, 14
        %v1540 = vpop.permute.xlu0 %1539
        %vm1541 = vcmask 113664
        %v1542 = vsel %vm1541, %v1536, %v1538
        %v1543 = vsel %vm1541, %v1538, %v1540
        %1546 = vst [vmem:[#allocation3 + $0x1b0] sm:$0xf] %v1542
        %1547 = vst.msk [vmem:[#allocation3 + $0x1b8] sm:$0xf] %vm686, %v1543
        %v1548 = vld [vmem:[#allocation2] sm:$0xff]
        %v1549 = vld [vmem:[#allocation2 + $0x8] sm:$0xf]
        %v1552 = vcombine.low %v1548, %v1548
        %v1553 = vcombine.low %v1549, %v1549
        %1554 = vrot.lane.b32.xlu0 %v1552, 13
        %v1555 = vpop.permute.xlu0 %1554
        %1556 = vrot.lane.b32.xlu0 %v1548, 13
        %v1557 = vpop.permute.xlu0 %1556
        %1558 = vrot.lane.b32.xlu0 %v1553, 13
        %v1559 = vpop.permute.xlu0 %1558
        %vm1560 = vcmask 105472
        %v1561 = vsel %vm1560, %v1555, %v1557
        %v1562 = vsel %vm1560, %v1557, %v1559
        %1565 = vst [vmem:[#allocation3 + $0x1b0] sm:$0xf0] %v1561
        %1566 = vst.msk [vmem:[#allocation3 + $0x1b8] sm:$0xf0] %vm700, %v1562
        %v1567 = vld [vmem:[#allocation2] sm:$0xff]
        %v1568 = vld [vmem:[#allocation2 + $0x8] sm:$0xf]
        %v1571 = vcombine.high %v1567, %v1567
        %1572 = vrot.lane.b32.xlu0 %v1567, 12
        %v1573 = vpop.permute.xlu0 %1572
        %1574 = vrot.lane.b32.xlu0 %v1571, 12
        %v1575 = vpop.permute.xlu0 %1574
        %1576 = vrot.lane.b32.xlu0 %v1568, 12
        %v1577 = vpop.permute.xlu0 %1576
        %vm1578 = vcmask 97280
        %v1579 = vsel %vm1578, %v1573, %v1575
        %v1580 = vsel %vm1578, %v1575, %v1577
        %1583 = vst [vmem:[#allocation3 + $0x1c0] sm:$0xf] %v1579
        %1584 = vst.msk [vmem:[#allocation3 + $0x1c8] sm:$0xf] %vm686, %v1580
        %v1585 = vld [vmem:[#allocation2] sm:$0xff]
        %v1586 = vld [vmem:[#allocation2 + $0x8] sm:$0xf]
        %v1589 = vcombine.low %v1585, %v1585
        %v1590 = vcombine.low %v1586, %v1586
        %1591 = vrot.lane.b32.xlu0 %v1589, 11
        %v1592 = vpop.permute.xlu0 %1591
        %1593 = vrot.lane.b32.xlu0 %v1585, 11
        %v1594 = vpop.permute.xlu0 %1593
        %1595 = vrot.lane.b32.xlu0 %v1590, 11
        %v1596 = vpop.permute.xlu0 %1595
        %vm1597 = vcmask 89088
        %v1598 = vsel %vm1597, %v1592, %v1594
        %v1599 = vsel %vm1597, %v1594, %v1596
        %1602 = vst [vmem:[#allocation3 + $0x1c0] sm:$0xf0] %v1598
        %1603 = vst.msk [vmem:[#allocation3 + $0x1c8] sm:$0xf0] %vm700, %v1599
        %v1604 = vld [vmem:[#allocation2] sm:$0xff]
        %v1605 = vld [vmem:[#allocation2 + $0x8] sm:$0xf]
        %v1608 = vcombine.high %v1604, %v1604
        %1609 = vrot.lane.b32.xlu0 %v1604, 10
        %v1610 = vpop.permute.xlu0 %1609
        %1611 = vrot.lane.b32.xlu0 %v1608, 10
        %v1612 = vpop.permute.xlu0 %1611
        %1613 = vrot.lane.b32.xlu0 %v1605, 10
        %v1614 = vpop.permute.xlu0 %1613
        %vm1615 = vcmask 80896
        %v1616 = vsel %vm1615, %v1610, %v1612
        %v1617 = vsel %vm1615, %v1612, %v1614
        %1620 = vst [vmem:[#allocation3 + $0x1d0] sm:$0xf] %v1616
        %1621 = vst.msk [vmem:[#allocation3 + $0x1d8] sm:$0xf] %vm686, %v1617
        %v1622 = vld [vmem:[#allocation2] sm:$0xff]
        %v1623 = vld [vmem:[#allocation2 + $0x8] sm:$0xf]
        %v1626 = vcombine.low %v1622, %v1622
        %v1627 = vcombine.low %v1623, %v1623
        %1628 = vrot.lane.b32.xlu0 %v1626, 9
        %v1629 = vpop.permute.xlu0 %1628
        %1630 = vrot.lane.b32.xlu0 %v1622, 9
        %v1631 = vpop.permute.xlu0 %1630
        %1632 = vrot.lane.b32.xlu0 %v1627, 9
        %v1633 = vpop.permute.xlu0 %1632
        %vm1634 = vcmask 72704
        %v1635 = vsel %vm1634, %v1629, %v1631
        %v1636 = vsel %vm1634, %v1631, %v1633
        %1639 = vst [vmem:[#allocation3 + $0x1d0] sm:$0xf0] %v1635
        %1640 = vst.msk [vmem:[#allocation3 + $0x1d8] sm:$0xf0] %vm700, %v1636
        %v1641 = vld [vmem:[#allocation2] sm:$0xff]
        %v1642 = vld [vmem:[#allocation2 + $0x8] sm:$0xf]
        %v1645 = vcombine.high %v1641, %v1641
        %1646 = vrot.lane.b32.xlu0 %v1641, 8
        %v1647 = vpop.permute.xlu0 %1646
        %1648 = vrot.lane.b32.xlu0 %v1645, 8
        %v1649 = vpop.permute.xlu0 %1648
        %1650 = vrot.lane.b32.xlu0 %v1642, 8
        %v1651 = vpop.permute.xlu0 %1650
        %vm1652 = vcmask 64512
        %v1653 = vsel %vm1652, %v1647, %v1649
        %v1654 = vsel %vm1652, %v1649, %v1651
        %1657 = vst [vmem:[#allocation3 + $0x1e0] sm:$0xf] %v1653
        %1658 = vst.msk [vmem:[#allocation3 + $0x1e8] sm:$0xf] %vm686, %v1654
        %v1659 = vld [vmem:[#allocation2] sm:$0xff]
        %v1660 = vld [vmem:[#allocation2 + $0x8] sm:$0xf]
        %v1663 = vcombine.low %v1659, %v1659
        %v1664 = vcombine.low %v1660, %v1660
        %1665 = vrot.lane.b32.xlu0 %v1663, 7
        %v1666 = vpop.permute.xlu0 %1665
        %1667 = vrot.lane.b32.xlu0 %v1659, 7
        %v1668 = vpop.permute.xlu0 %1667
        %1669 = vrot.lane.b32.xlu0 %v1664, 7
        %v1670 = vpop.permute.xlu0 %1669
        %vm1671 = vcmask 56320
        %v1672 = vsel %vm1671, %v1666, %v1668
        %v1673 = vsel %vm1671, %v1668, %v1670
        %1676 = vst [vmem:[#allocation3 + $0x1e0] sm:$0xf0] %v1672
        %1677 = vst.msk [vmem:[#allocation3 + $0x1e8] sm:$0xf0] %vm700, %v1673
        %v1678 = vld [vmem:[#allocation2] sm:$0xff]
        %v1679 = vld [vmem:[#allocation2 + $0x8] sm:$0xf]
        %v1682 = vcombine.high %v1678, %v1678
        %1683 = vrot.lane.b32.xlu0 %v1678, 6
        %v1684 = vpop.permute.xlu0 %1683
        %1685 = vrot.lane.b32.xlu0 %v1682, 6
        %v1686 = vpop.permute.xlu0 %1685
        %1687 = vrot.lane.b32.xlu0 %v1679, 6
        %v1688 = vpop.permute.xlu0 %1687
        %vm1689 = vcmask 48128
        %v1690 = vsel %vm1689, %v1684, %v1686
        %v1691 = vsel %vm1689, %v1686, %v1688
        %1694 = vst [vmem:[#allocation3 + $0x1f0] sm:$0xf] %v1690
        %1695 = vst.msk [vmem:[#allocation3 + $0x1f8] sm:$0xf] %vm686, %v1691
        %v1696 = vld [vmem:[#allocation2] sm:$0xff]
        %v1697 = vld [vmem:[#allocation2 + $0x8] sm:$0xf]
        %v1700 = vcombine.low %v1696, %v1696
        %v1701 = vcombine.low %v1697, %v1697
        %1702 = vrot.lane.b32.xlu0 %v1700, 5
        %v1703 = vpop.permute.xlu0 %1702
        %1704 = vrot.lane.b32.xlu0 %v1696, 5
        %v1705 = vpop.permute.xlu0 %1704
        %1706 = vrot.lane.b32.xlu0 %v1701, 5
        %v1707 = vpop.permute.xlu0 %1706
        %vm1708 = vcmask 39936
        %v1709 = vsel %vm1708, %v1703, %v1705
        %v1710 = vsel %vm1708, %v1705, %v1707
        %1713 = vst [vmem:[#allocation3 + $0x1f0] sm:$0xf0] %v1709
        %1714 = vst.msk [vmem:[#allocation3 + $0x1f8] sm:$0xf0] %vm700, %v1710
        %v1715 = vld [vmem:[#allocation2] sm:$0xff]
        %v1716 = vld [vmem:[#allocation2 + $0x8] sm:$0xf]
        %v1719 = vcombine.high %v1715, %v1715
        %1720 = vrot.lane.b32.xlu0 %v1715, 4
        %v1721 = vpop.permute.xlu0 %1720
        %1722 = vrot.lane.b32.xlu0 %v1719, 4
        %v1723 = vpop.permute.xlu0 %1722
        %1724 = vrot.lane.b32.xlu0 %v1716, 4
        %v1725 = vpop.permute.xlu0 %1724
        %vm1726 = vcmask 31744
        %v1727 = vsel %vm1726, %v1721, %v1723
        %v1728 = vsel %vm1726, %v1723, %v1725
        %1731 = vst [vmem:[#allocation3 + $0x200] sm:$0xf] %v1727
        %1732 = vst.msk [vmem:[#allocation3 + $0x208] sm:$0xf] %vm686, %v1728
        %v1733 = vld [vmem:[#allocation2 + $0x4] sm:$0xff]
        %v1735 = vcombine.low %v1733, %v1733
        %1736 = vrot.lane.b32.xlu0 %v1735, 116
        %v1737 = vpop.permute.xlu0 %1736
        %1738 = vrot.lane.b32.xlu0 %v1733, 116
        %v1739 = vpop.permute.xlu0 %1738
        %v1740 = vsel %vm837, %v1737, %v1739
        %1743 = vst [vmem:[#allocation3 + $0x200] sm:$0xf0] %v1740
        %1744 = vst.msk [vmem:[#allocation3 + $0x208] sm:$0xf0] %vm700, %v1739
        %v1745 = vld [vmem:[#allocation2 + $0x4] sm:$0xff]
        %v1747 = vcombine.high %v1745, %v1745
        %1748 = vrot.lane.b32.xlu0 %v1745, 115
        %v1749 = vpop.permute.xlu0 %1748
        %1750 = vrot.lane.b32.xlu0 %v1747, 115
        %v1751 = vpop.permute.xlu0 %1750
        %vm1752 = vcmask 941056
        %v1753 = vsel %vm1752, %v1749, %v1751
        %1756 = vst [vmem:[#allocation3 + $0x210] sm:$0xf] %v1753
        %1757 = vst.msk [vmem:[#allocation3 + $0x218] sm:$0xf] %vm686, %v1751
        %v1758 = vld [vmem:[#allocation2 + $0x4] sm:$0xff]
        %v1760 = vcombine.low %v1758, %v1758
        %1761 = vrot.lane.b32.xlu0 %v1760, 114
        %v1762 = vpop.permute.xlu0 %1761
        %1763 = vrot.lane.b32.xlu0 %v1758, 114
        %v1764 = vpop.permute.xlu0 %1763
        %v1765 = vsel %vm525, %v1762, %v1764
        %1768 = vst [vmem:[#allocation3 + $0x210] sm:$0xf0] %v1765
        %1769 = vst.msk [vmem:[#allocation3 + $0x218] sm:$0xf0] %vm700, %v1764
        %v1770 = vld [vmem:[#allocation2 + $0x4] sm:$0xff]
        %v1772 = vcombine.high %v1770, %v1770
        %1773 = vrot.lane.b32.xlu0 %v1770, 113
        %v1774 = vpop.permute.xlu0 %1773
        %1775 = vrot.lane.b32.xlu0 %v1772, 113
        %v1776 = vpop.permute.xlu0 %1775
        %vm1777 = vcmask 924672
        %v1778 = vsel %vm1777, %v1774, %v1776
        %1781 = vst [vmem:[#allocation3 + $0x220] sm:$0xf] %v1778
        %1782 = vst.msk [vmem:[#allocation3 + $0x228] sm:$0xf] %vm686, %v1776
        %v1783 = vld [vmem:[#allocation2 + $0x4] sm:$0xff]
        %v1785 = vcombine.low %v1783, %v1783
        %1786 = vrot.lane.b32.xlu0 %v1785, 112
        %v1787 = vpop.permute.xlu0 %1786
        %1788 = vrot.lane.b32.xlu0 %v1783, 112
        %v1789 = vpop.permute.xlu0 %1788
        %vm1790 = vcmask 916480
        %v1791 = vsel %vm1790, %v1787, %v1789
        %1794 = vst [vmem:[#allocation3 + $0x220] sm:$0xf0] %v1791
        %1795 = vst.msk [vmem:[#allocation3 + $0x228] sm:$0xf0] %vm700, %v1789
        %v1796 = vld [vmem:[#allocation2 + $0x4] sm:$0xff]
        %v1798 = vcombine.high %v1796, %v1796
        %1799 = vrot.lane.b32.xlu0 %v1796, 111
        %v1800 = vpop.permute.xlu0 %1799
        %1801 = vrot.lane.b32.xlu0 %v1798, 111
        %v1802 = vpop.permute.xlu0 %1801
        %vm1803 = vcmask 908288
        %v1804 = vsel %vm1803, %v1800, %v1802
        %1807 = vst [vmem:[#allocation3 + $0x230] sm:$0xf] %v1804
        %1808 = vst.msk [vmem:[#allocation3 + $0x238] sm:$0xf] %vm686, %v1802
        %v1809 = vld [vmem:[#allocation2 + $0x4] sm:$0xff]
        %v1811 = vcombine.low %v1809, %v1809
        %1812 = vrot.lane.b32.xlu0 %v1811, 110
        %v1813 = vpop.permute.xlu0 %1812
        %1814 = vrot.lane.b32.xlu0 %v1809, 110
        %v1815 = vpop.permute.xlu0 %1814
        %vm1816 = vcmask 900096
        %v1817 = vsel %vm1816, %v1813, %v1815
        %1820 = vst [vmem:[#allocation3 + $0x230] sm:$0xf0] %v1817
        %1821 = vst.msk [vmem:[#allocation3 + $0x238] sm:$0xf0] %vm700, %v1815
        %v1822 = vld [vmem:[#allocation2 + $0x4] sm:$0xff]
        %v1824 = vcombine.high %v1822, %v1822
        %1825 = vrot.lane.b32.xlu0 %v1822, 109
        %v1826 = vpop.permute.xlu0 %1825
        %1827 = vrot.lane.b32.xlu0 %v1824, 109
        %v1828 = vpop.permute.xlu0 %1827
        %vm1829 = vcmask 891904
        %v1830 = vsel %vm1829, %v1826, %v1828
        %1833 = vst [vmem:[#allocation3 + $0x240] sm:$0xf] %v1830
        %1834 = vst.msk [vmem:[#allocation3 + $0x248] sm:$0xf] %vm686, %v1828
        %v1835 = vld [vmem:[#allocation2 + $0x4] sm:$0xff]
        %v1837 = vcombine.low %v1835, %v1835
        %1838 = vrot.lane.b32.xlu0 %v1837, 108
        %v1839 = vpop.permute.xlu0 %1838
        %1840 = vrot.lane.b32.xlu0 %v1835, 108
        %v1841 = vpop.permute.xlu0 %1840
        %vm1842 = vcmask 883712
        %v1843 = vsel %vm1842, %v1839, %v1841
        %1846 = vst [vmem:[#allocation3 + $0x240] sm:$0xf0] %v1843
        %1847 = vst.msk [vmem:[#allocation3 + $0x248] sm:$0xf0] %vm700, %v1841
        %v1848 = vld [vmem:[#allocation2 + $0x4] sm:$0xff]
        %v1850 = vcombine.high %v1848, %v1848
        %1851 = vrot.lane.b32.xlu0 %v1848, 107
        %v1852 = vpop.permute.xlu0 %1851
        %1853 = vrot.lane.b32.xlu0 %v1850, 107
        %v1854 = vpop.permute.xlu0 %1853
        %vm1855 = vcmask 875520
        %v1856 = vsel %vm1855, %v1852, %v1854
        %1859 = vst [vmem:[#allocation3 + $0x250] sm:$0xf] %v1856
        %1860 = vst.msk [vmem:[#allocation3 + $0x258] sm:$0xf] %vm686, %v1854
        %v1861 = vld [vmem:[#allocation2 + $0x4] sm:$0xff]
        %v1863 = vcombine.low %v1861, %v1861
        %1864 = vrot.lane.b32.xlu0 %v1863, 106
        %v1865 = vpop.permute.xlu0 %1864
        %1866 = vrot.lane.b32.xlu0 %v1861, 106
        %v1867 = vpop.permute.xlu0 %1866
        %vm1868 = vcmask 867328
        %v1869 = vsel %vm1868, %v1865, %v1867
        %1872 = vst [vmem:[#allocation3 + $0x250] sm:$0xf0] %v1869
        %1873 = vst.msk [vmem:[#allocation3 + $0x258] sm:$0xf0] %vm700, %v1867
        %v1874 = vld [vmem:[#allocation2 + $0x4] sm:$0xff]
        %v1876 = vcombine.high %v1874, %v1874
        %1877 = vrot.lane.b32.xlu0 %v1874, 105
        %v1878 = vpop.permute.xlu0 %1877
        %1879 = vrot.lane.b32.xlu0 %v1876, 105
        %v1880 = vpop.permute.xlu0 %1879
        %vm1881 = vcmask 859136
        %v1882 = vsel %vm1881, %v1878, %v1880
        %1885 = vst [vmem:[#allocation3 + $0x260] sm:$0xf] %v1882
        %1886 = vst.msk [vmem:[#allocation3 + $0x268] sm:$0xf] %vm686, %v1880
        %v1887 = vld [vmem:[#allocation2 + $0x4] sm:$0xff]
        %v1889 = vcombine.low %v1887, %v1887
        %1890 = vrot.lane.b32.xlu0 %v1889, 104
        %v1891 = vpop.permute.xlu0 %1890
        %1892 = vrot.lane.b32.xlu0 %v1887, 104
        %v1893 = vpop.permute.xlu0 %1892
        %vm1894 = vcmask 850944
        %v1895 = vsel %vm1894, %v1891, %v1893
        %1898 = vst [vmem:[#allocation3 + $0x260] sm:$0xf0] %v1895
        %1899 = vst.msk [vmem:[#allocation3 + $0x268] sm:$0xf0] %vm700, %v1893
        %v1900 = vld [vmem:[#allocation2 + $0x4] sm:$0xff]
        %v1902 = vcombine.high %v1900, %v1900
        %1903 = vrot.lane.b32.xlu0 %v1900, 88
        %v1904 = vpop.permute.xlu0 %1903
        %1905 = vrot.lane.b32.xlu0 %v1902, 88
        %v1906 = vpop.permute.xlu0 %1905
        %v1907 = vsel %vm1006, %v1904, %v1906
        %1910 = vst [vmem:[#allocation3 + $0x270] sm:$0xf] %v1907
        %1911 = vst.msk [vmem:[#allocation3 + $0x278] sm:$0xf] %vm686, %v1906
        %v1912 = vld [vmem:[#allocation2 + $0x4] sm:$0xff]
        %v1914 = vcombine.low %v1912, %v1912
        %1915 = vrot.lane.b32.xlu0 %v1914, 87
        %v1916 = vpop.permute.xlu0 %1915
        %1917 = vrot.lane.b32.xlu0 %v1912, 87
        %v1918 = vpop.permute.xlu0 %1917
        %vm1919 = vcmask 711680
        %v1920 = vsel %vm1919, %v1916, %v1918
        %1923 = vst [vmem:[#allocation3 + $0x270] sm:$0xf0] %v1920
        %1924 = vst.msk [vmem:[#allocation3 + $0x278] sm:$0xf0] %vm700, %v1918
        %v1925 = vld [vmem:[#allocation2 + $0x4] sm:$0xff]
        %v1927 = vcombine.high %v1925, %v1925
        %1928 = vrot.lane.b32.xlu0 %v1925, 86
        %v1929 = vpop.permute.xlu0 %1928
        %1930 = vrot.lane.b32.xlu0 %v1927, 86
        %v1931 = vpop.permute.xlu0 %1930
        %vm1932 = vcmask 703488
        %v1933 = vsel %vm1932, %v1929, %v1931
        %1936 = vst [vmem:[#allocation3 + $0x280] sm:$0xf] %v1933
        %1937 = vst.msk [vmem:[#allocation3 + $0x288] sm:$0xf] %vm686, %v1931
        %v1938 = vld [vmem:[#allocation2 + $0x4] sm:$0xff]
        %v1940 = vcombine.low %v1938, %v1938
        %1941 = vrot.lane.b32.xlu0 %v1940, 85
        %v1942 = vpop.permute.xlu0 %1941
        %1943 = vrot.lane.b32.xlu0 %v1938, 85
        %v1944 = vpop.permute.xlu0 %1943
        %vm1945 = vcmask 695296
        %v1946 = vsel %vm1945, %v1942, %v1944
        %1949 = vst [vmem:[#allocation3 + $0x280] sm:$0xf0] %v1946
        %1950 = vst.msk [vmem:[#allocation3 + $0x288] sm:$0xf0] %vm700, %v1944
        %v1951 = vld [vmem:[#allocation2 + $0x4] sm:$0xff]
        %v1953 = vcombine.high %v1951, %v1951
        %1954 = vrot.lane.b32.xlu0 %v1951, 84
        %v1955 = vpop.permute.xlu0 %1954
        %1956 = vrot.lane.b32.xlu0 %v1953, 84
        %v1957 = vpop.permute.xlu0 %1956
        %vm1958 = vcmask 687104
        %v1959 = vsel %vm1958, %v1955, %v1957
        %1962 = vst [vmem:[#allocation3 + $0x290] sm:$0xf] %v1959
        %1963 = vst.msk [vmem:[#allocation3 + $0x298] sm:$0xf] %vm686, %v1957
        %v1964 = vld [vmem:[#allocation2 + $0x4] sm:$0xff]
        %v1965 = vld [vmem:[#allocation2 + $0xc] sm:$0xf]
        %v1968 = vcombine.low %v1964, %v1964
        %v1969 = vcombine.low %v1965, %v1965
        %1970 = vrot.lane.b32.xlu0 %v1968, 83
        %v1971 = vpop.permute.xlu0 %1970
        %1972 = vrot.lane.b32.xlu0 %v1964, 83
        %v1973 = vpop.permute.xlu0 %1972
        %1974 = vrot.lane.b32.xlu0 %v1969, 83
        %v1975 = vpop.permute.xlu0 %1974
        %vm1976 = vcmask 678912
        %v1977 = vsel %vm1976, %v1971, %v1973
        %v1978 = vsel %vm1976, %v1973, %v1975
        %1981 = vst [vmem:[#allocation3 + $0x290] sm:$0xf0] %v1977
        %1982 = vst.msk [vmem:[#allocation3 + $0x298] sm:$0xf0] %vm700, %v1978
        %v1983 = vld [vmem:[#allocation2 + $0x4] sm:$0xff]
        %v1984 = vld [vmem:[#allocation2 + $0xc] sm:$0xf]
        %v1987 = vcombine.high %v1983, %v1983
        %1988 = vrot.lane.b32.xlu0 %v1983, 82
        %v1989 = vpop.permute.xlu0 %1988
        %1990 = vrot.lane.b32.xlu0 %v1987, 82
        %v1991 = vpop.permute.xlu0 %1990
        %1992 = vrot.lane.b32.xlu0 %v1984, 82
        %v1993 = vpop.permute.xlu0 %1992
        %vm1994 = vcmask 670720
        %v1995 = vsel %vm1994, %v1989, %v1991
        %v1996 = vsel %vm1994, %v1991, %v1993
        %1999 = vst [vmem:[#allocation3 + $0x2a0] sm:$0xf] %v1995
        %2000 = vst.msk [vmem:[#allocation3 + $0x2a8] sm:$0xf] %vm686, %v1996
        %v2001 = vld [vmem:[#allocation2 + $0x4] sm:$0xff]
        %v2002 = vld [vmem:[#allocation2 + $0xc] sm:$0xf]
        %v2005 = vcombine.low %v2001, %v2001
        %v2006 = vcombine.low %v2002, %v2002
        %2007 = vrot.lane.b32.xlu0 %v2005, 81
        %v2008 = vpop.permute.xlu0 %2007
        %2009 = vrot.lane.b32.xlu0 %v2001, 81
        %v2010 = vpop.permute.xlu0 %2009
        %2011 = vrot.lane.b32.xlu0 %v2006, 81
        %v2012 = vpop.permute.xlu0 %2011
        %vm2013 = vcmask 662528
        %v2014 = vsel %vm2013, %v2008, %v2010
        %v2015 = vsel %vm2013, %v2010, %v2012
        %2018 = vst [vmem:[#allocation3 + $0x2a0] sm:$0xf0] %v2014
        %2019 = vst.msk [vmem:[#allocation3 + $0x2a8] sm:$0xf0] %vm700, %v2015
        %v2020 = vld [vmem:[#allocation2 + $0x4] sm:$0xff]
        %v2021 = vld [vmem:[#allocation2 + $0xc] sm:$0xf]
        %v2024 = vcombine.high %v2020, %v2020
        %2025 = vrot.lane.b32.xlu0 %v2020, 80
        %v2026 = vpop.permute.xlu0 %2025
        %2027 = vrot.lane.b32.xlu0 %v2024, 80
        %v2028 = vpop.permute.xlu0 %2027
        %2029 = vrot.lane.b32.xlu0 %v2021, 80
        %v2030 = vpop.permute.xlu0 %2029
        %vm2031 = vcmask 654336
        %v2032 = vsel %vm2031, %v2026, %v2028
        %v2033 = vsel %vm2031, %v2028, %v2030
        %2036 = vst [vmem:[#allocation3 + $0x2b0] sm:$0xf] %v2032
        %2037 = vst.msk [vmem:[#allocation3 + $0x2b8] sm:$0xf] %vm686, %v2033
        %v2038 = vld [vmem:[#allocation2 + $0x4] sm:$0xff]
        %v2039 = vld [vmem:[#allocation2 + $0xc] sm:$0xf]
        %v2042 = vcombine.low %v2038, %v2038
        %v2043 = vcombine.low %v2039, %v2039
        %2044 = vrot.lane.b32.xlu0 %v2042, 79
        %v2045 = vpop.permute.xlu0 %2044
        %2046 = vrot.lane.b32.xlu0 %v2038, 79
        %v2047 = vpop.permute.xlu0 %2046
        %2048 = vrot.lane.b32.xlu0 %v2043, 79
        %v2049 = vpop.permute.xlu0 %2048
        %vm2050 = vcmask 646144
        %v2051 = vsel %vm2050, %v2045, %v2047
        %v2052 = vsel %vm2050, %v2047, %v2049
        %2055 = vst [vmem:[#allocation3 + $0x2b0] sm:$0xf0] %v2051
        %2056 = vst.msk [vmem:[#allocation3 + $0x2b8] sm:$0xf0] %vm700, %v2052
        %v2057 = vld [vmem:[#allocation2 + $0x4] sm:$0xff]
        %v2058 = vld [vmem:[#allocation2 + $0xc] sm:$0xf]
        %v2061 = vcombine.high %v2057, %v2057
        %2062 = vrot.lane.b32.xlu0 %v2057, 78
        %v2063 = vpop.permute.xlu0 %2062
        %2064 = vrot.lane.b32.xlu0 %v2061, 78
        %v2065 = vpop.permute.xlu0 %2064
        %2066 = vrot.lane.b32.xlu0 %v2058, 78
        %v2067 = vpop.permute.xlu0 %2066
        %vm2068 = vcmask 637952
        %v2069 = vsel %vm2068, %v2063, %v2065
        %v2070 = vsel %vm2068, %v2065, %v2067
        %2073 = vst [vmem:[#allocation3 + $0x2c0] sm:$0xf] %v2069
        %2074 = vst.msk [vmem:[#allocation3 + $0x2c8] sm:$0xf] %vm686, %v2070
        %v2075 = vld [vmem:[#allocation2 + $0x4] sm:$0xff]
        %v2076 = vld [vmem:[#allocation2 + $0xc] sm:$0xf]
        %v2079 = vcombine.low %v2075, %v2075
        %v2080 = vcombine.low %v2076, %v2076
        %2081 = vrot.lane.b32.xlu0 %v2079, 77
        %v2082 = vpop.permute.xlu0 %2081
        %2083 = vrot.lane.b32.xlu0 %v2075, 77
        %v2084 = vpop.permute.xlu0 %2083
        %2085 = vrot.lane.b32.xlu0 %v2080, 77
        %v2086 = vpop.permute.xlu0 %2085
        %vm2087 = vcmask 629760
        %v2088 = vsel %vm2087, %v2082, %v2084
        %v2089 = vsel %vm2087, %v2084, %v2086
        %2092 = vst [vmem:[#allocation3 + $0x2c0] sm:$0xf0] %v2088
        %2093 = vst.msk [vmem:[#allocation3 + $0x2c8] sm:$0xf0] %vm700, %v2089
        %v2094 = vld [vmem:[#allocation2 + $0x4] sm:$0xff]
        %v2095 = vld [vmem:[#allocation2 + $0xc] sm:$0xf]
        %v2098 = vcombine.high %v2094, %v2094
        %2099 = vrot.lane.b32.xlu0 %v2094, 76
        %v2100 = vpop.permute.xlu0 %2099
        %2101 = vrot.lane.b32.xlu0 %v2098, 76
        %v2102 = vpop.permute.xlu0 %2101
        %2103 = vrot.lane.b32.xlu0 %v2095, 76
        %v2104 = vpop.permute.xlu0 %2103
        %vm2105 = vcmask 621568
        %v2106 = vsel %vm2105, %v2100, %v2102
        %v2107 = vsel %vm2105, %v2102, %v2104
        %2110 = vst [vmem:[#allocation3 + $0x2d0] sm:$0xf] %v2106
        %2111 = vst.msk [vmem:[#allocation3 + $0x2d8] sm:$0xf] %vm686, %v2107
        %v2112 = vld [vmem:[#allocation2 + $0x4] sm:$0xff]
        %v2113 = vld [vmem:[#allocation2 + $0xc] sm:$0xf]
        %v2116 = vcombine.low %v2112, %v2112
        %v2117 = vcombine.low %v2113, %v2113
        %2118 = vrot.lane.b32.xlu0 %v2116, 60
        %v2119 = vpop.permute.xlu0 %2118
        %2120 = vrot.lane.b32.xlu0 %v2112, 60
        %v2121 = vpop.permute.xlu0 %2120
        %2122 = vrot.lane.b32.xlu0 %v2117, 60
        %v2123 = vpop.permute.xlu0 %2122
        %v2124 = vsel %vm1245, %v2119, %v2121
        %v2125 = vsel %vm1245, %v2121, %v2123
        %2128 = vst [vmem:[#allocation3 + $0x2d0] sm:$0xf0] %v2124
        %2129 = vst.msk [vmem:[#allocation3 + $0x2d8] sm:$0xf0] %vm700, %v2125
        %v2130 = vld [vmem:[#allocation2 + $0x4] sm:$0xff]
        %v2131 = vld [vmem:[#allocation2 + $0xc] sm:$0xf]
        %v2134 = vcombine.high %v2130, %v2130
        %2135 = vrot.lane.b32.xlu0 %v2130, 59
        %v2136 = vpop.permute.xlu0 %2135
        %2137 = vrot.lane.b32.xlu0 %v2134, 59
        %v2138 = vpop.permute.xlu0 %2137
        %2139 = vrot.lane.b32.xlu0 %v2131, 59
        %v2140 = vpop.permute.xlu0 %2139
        %vm2141 = vcmask 482304
        %v2142 = vsel %vm2141, %v2136, %v2138
        %v2143 = vsel %vm2141, %v2138, %v2140
        %2146 = vst [vmem:[#allocation3 + $0x2e0] sm:$0xf] %v2142
        %2147 = vst.msk [vmem:[#allocation3 + $0x2e8] sm:$0xf] %vm686, %v2143
        %v2148 = vld [vmem:[#allocation2 + $0x4] sm:$0xff]
        %v2149 = vld [vmem:[#allocation2 + $0xc] sm:$0xf]
        %v2152 = vcombine.low %v2148, %v2148
        %v2153 = vcombine.low %v2149, %v2149
        %2154 = vrot.lane.b32.xlu0 %v2152, 58
        %v2155 = vpop.permute.xlu0 %2154
        %2156 = vrot.lane.b32.xlu0 %v2148, 58
        %v2157 = vpop.permute.xlu0 %2156
        %2158 = vrot.lane.b32.xlu0 %v2153, 58
        %v2159 = vpop.permute.xlu0 %2158
        %vm2160 = vcmask 474112
        %v2161 = vsel %vm2160, %v2155, %v2157
        %v2162 = vsel %vm2160, %v2157, %v2159
        %2165 = vst [vmem:[#allocation3 + $0x2e0] sm:$0xf0] %v2161
        %2166 = vst.msk [vmem:[#allocation3 + $0x2e8] sm:$0xf0] %vm700, %v2162
        %v2167 = vld [vmem:[#allocation2 + $0x4] sm:$0xff]
        %v2168 = vld [vmem:[#allocation2 + $0xc] sm:$0xf]
        %v2171 = vcombine.high %v2167, %v2167
        %2172 = vrot.lane.b32.xlu0 %v2167, 57
        %v2173 = vpop.permute.xlu0 %2172
        %2174 = vrot.lane.b32.xlu0 %v2171, 57
        %v2175 = vpop.permute.xlu0 %2174
        %2176 = vrot.lane.b32.xlu0 %v2168, 57
        %v2177 = vpop.permute.xlu0 %2176
        %vm2178 = vcmask 465920
        %v2179 = vsel %vm2178, %v2173, %v2175
        %v2180 = vsel %vm2178, %v2175, %v2177
        %2183 = vst [vmem:[#allocation3 + $0x2f0] sm:$0xf] %v2179
        %2184 = vst.msk [vmem:[#allocation3 + $0x2f8] sm:$0xf] %vm686, %v2180
        %v2185 = vld [vmem:[#allocation2 + $0x4] sm:$0xff]
        %v2186 = vld [vmem:[#allocation2 + $0xc] sm:$0xf]
        %v2189 = vcombine.low %v2185, %v2185
        %v2190 = vcombine.low %v2186, %v2186
        %2191 = vrot.lane.b32.xlu0 %v2189, 56
        %v2192 = vpop.permute.xlu0 %2191
        %2193 = vrot.lane.b32.xlu0 %v2185, 56
        %v2194 = vpop.permute.xlu0 %2193
        %2195 = vrot.lane.b32.xlu0 %v2190, 56
        %v2196 = vpop.permute.xlu0 %2195
        %vm2197 = vcmask 457728
        %v2198 = vsel %vm2197, %v2192, %v2194
        %v2199 = vsel %vm2197, %v2194, %v2196
        %2202 = vst [vmem:[#allocation3 + $0x2f0] sm:$0xf0] %v2198
        %2203 = vst.msk [vmem:[#allocation3 + $0x2f8] sm:$0xf0] %vm700, %v2199
        %v2204 = vld [vmem:[#allocation2 + $0x4] sm:$0xff]
        %v2205 = vld [vmem:[#allocation2 + $0xc] sm:$0xf]
        %v2208 = vcombine.high %v2204, %v2204
        %2209 = vrot.lane.b32.xlu0 %v2204, 55
        %v2210 = vpop.permute.xlu0 %2209
        %2211 = vrot.lane.b32.xlu0 %v2208, 55
        %v2212 = vpop.permute.xlu0 %2211
        %2213 = vrot.lane.b32.xlu0 %v2205, 55
        %v2214 = vpop.permute.xlu0 %2213
        %vm2215 = vcmask 449536
        %v2216 = vsel %vm2215, %v2210, %v2212
        %v2217 = vsel %vm2215, %v2212, %v2214
        %2220 = vst [vmem:[#allocation3 + $0x300] sm:$0xf] %v2216
        %2221 = vst.msk [vmem:[#allocation3 + $0x308] sm:$0xf] %vm686, %v2217
        %v2222 = vld [vmem:[#allocation2 + $0x4] sm:$0xff]
        %v2223 = vld [vmem:[#allocation2 + $0xc] sm:$0xf]
        %v2226 = vcombine.low %v2222, %v2222
        %v2227 = vcombine.low %v2223, %v2223
        %2228 = vrot.lane.b32.xlu0 %v2226, 54
        %v2229 = vpop.permute.xlu0 %2228
        %2230 = vrot.lane.b32.xlu0 %v2222, 54
        %v2231 = vpop.permute.xlu0 %2230
        %2232 = vrot.lane.b32.xlu0 %v2227, 54
        %v2233 = vpop.permute.xlu0 %2232
        %vm2234 = vcmask 441344
        %v2235 = vsel %vm2234, %v2229, %v2231
        %v2236 = vsel %vm2234, %v2231, %v2233
        %2239 = vst [vmem:[#allocation3 + $0x300] sm:$0xf0] %v2235
        %2240 = vst.msk [vmem:[#allocation3 + $0x308] sm:$0xf0] %vm700, %v2236
        %v2241 = vld [vmem:[#allocation2 + $0x4] sm:$0xff]
        %v2242 = vld [vmem:[#allocation2 + $0xc] sm:$0xf]
        %v2245 = vcombine.high %v2241, %v2241
        %2246 = vrot.lane.b32.xlu0 %v2241, 53
        %v2247 = vpop.permute.xlu0 %2246
        %2248 = vrot.lane.b32.xlu0 %v2245, 53
        %v2249 = vpop.permute.xlu0 %2248
        %2250 = vrot.lane.b32.xlu0 %v2242, 53
        %v2251 = vpop.permute.xlu0 %2250
        %vm2252 = vcmask 433152
        %v2253 = vsel %vm2252, %v2247, %v2249
        %v2254 = vsel %vm2252, %v2249, %v2251
        %2257 = vst [vmem:[#allocation3 + $0x310] sm:$0xf] %v2253
        %2258 = vst.msk [vmem:[#allocation3 + $0x318] sm:$0xf] %vm686, %v2254
        %v2259 = vld [vmem:[#allocation2 + $0x4] sm:$0xff]
        %v2260 = vld [vmem:[#allocation2 + $0xc] sm:$0xf]
        %v2263 = vcombine.low %v2259, %v2259
        %v2264 = vcombine.low %v2260, %v2260
        %2265 = vrot.lane.b32.xlu0 %v2263, 52
        %v2266 = vpop.permute.xlu0 %2265
        %2267 = vrot.lane.b32.xlu0 %v2259, 52
        %v2268 = vpop.permute.xlu0 %2267
        %2269 = vrot.lane.b32.xlu0 %v2264, 52
        %v2270 = vpop.permute.xlu0 %2269
        %vm2271 = vcmask 424960
        %v2272 = vsel %vm2271, %v2266, %v2268
        %v2273 = vsel %vm2271, %v2268, %v2270
        %2276 = vst [vmem:[#allocation3 + $0x310] sm:$0xf0] %v2272
        %2277 = vst.msk [vmem:[#allocation3 + $0x318] sm:$0xf0] %vm700, %v2273
        %v2278 = vld [vmem:[#allocation2 + $0x4] sm:$0xff]
        %v2279 = vld [vmem:[#allocation2 + $0xc] sm:$0xf]
        %v2282 = vcombine.high %v2278, %v2278
        %2283 = vrot.lane.b32.xlu0 %v2278, 51
        %v2284 = vpop.permute.xlu0 %2283
        %2285 = vrot.lane.b32.xlu0 %v2282, 51
        %v2286 = vpop.permute.xlu0 %2285
        %2287 = vrot.lane.b32.xlu0 %v2279, 51
        %v2288 = vpop.permute.xlu0 %2287
        %vm2289 = vcmask 416768
        %v2290 = vsel %vm2289, %v2284, %v2286
        %v2291 = vsel %vm2289, %v2286, %v2288
        %2294 = vst [vmem:[#allocation3 + $0x320] sm:$0xf] %v2290
        %2295 = vst.msk [vmem:[#allocation3 + $0x328] sm:$0xf] %vm686, %v2291
        %v2296 = vld [vmem:[#allocation2 + $0x4] sm:$0xff]
        %v2297 = vld [vmem:[#allocation2 + $0xc] sm:$0xf]
        %v2300 = vcombine.low %v2296, %v2296
        %v2301 = vcombine.low %v2297, %v2297
        %2302 = vrot.lane.b32.xlu0 %v2300, 50
        %v2303 = vpop.permute.xlu0 %2302
        %2304 = vrot.lane.b32.xlu0 %v2296, 50
        %v2305 = vpop.permute.xlu0 %2304
        %2306 = vrot.lane.b32.xlu0 %v2301, 50
        %v2307 = vpop.permute.xlu0 %2306
        %vm2308 = vcmask 408576
        %v2309 = vsel %vm2308, %v2303, %v2305
        %v2310 = vsel %vm2308, %v2305, %v2307
        %2313 = vst [vmem:[#allocation3 + $0x320] sm:$0xf0] %v2309
        %2314 = vst.msk [vmem:[#allocation3 + $0x328] sm:$0xf0] %vm700, %v2310
        %v2315 = vld [vmem:[#allocation2 + $0x4] sm:$0xff]
        %v2316 = vld [vmem:[#allocation2 + $0xc] sm:$0xf]
        %v2319 = vcombine.high %v2315, %v2315
        %2320 = vrot.lane.b32.xlu0 %v2315, 49
        %v2321 = vpop.permute.xlu0 %2320
        %2322 = vrot.lane.b32.xlu0 %v2319, 49
        %v2323 = vpop.permute.xlu0 %2322
        %2324 = vrot.lane.b32.xlu0 %v2316, 49
        %v2325 = vpop.permute.xlu0 %2324
        %vm2326 = vcmask 400384
        %v2327 = vsel %vm2326, %v2321, %v2323
        %v2328 = vsel %vm2326, %v2323, %v2325
        %2331 = vst [vmem:[#allocation3 + $0x330] sm:$0xf] %v2327
        %2332 = vst.msk [vmem:[#allocation3 + $0x338] sm:$0xf] %vm686, %v2328
        %v2333 = vld [vmem:[#allocation2 + $0x4] sm:$0xff]
        %v2334 = vld [vmem:[#allocation2 + $0xc] sm:$0xf]
        %v2337 = vcombine.low %v2333, %v2333
        %v2338 = vcombine.low %v2334, %v2334
        %2339 = vrot.lane.b32.xlu0 %v2337, 48
        %v2340 = vpop.permute.xlu0 %2339
        %2341 = vrot.lane.b32.xlu0 %v2333, 48
        %v2342 = vpop.permute.xlu0 %2341
        %2343 = vrot.lane.b32.xlu0 %v2338, 48
        %v2344 = vpop.permute.xlu0 %2343
        %vm2345 = vcmask 392192
        %v2346 = vsel %vm2345, %v2340, %v2342
        %v2347 = vsel %vm2345, %v2342, %v2344
        %2350 = vst [vmem:[#allocation3 + $0x330] sm:$0xf0] %v2346
        %2351 = vst.msk [vmem:[#allocation3 + $0x338] sm:$0xf0] %vm700, %v2347
        %v2352 = vld [vmem:[#allocation2 + $0x4] sm:$0xff]
        %v2353 = vld [vmem:[#allocation2 + $0xc] sm:$0xf]
        %v2356 = vcombine.high %v2352, %v2352
        %2357 = vrot.lane.b32.xlu0 %v2352, 32
        %v2358 = vpop.permute.xlu0 %2357
        %2359 = vrot.lane.b32.xlu0 %v2356, 32
        %v2360 = vpop.permute.xlu0 %2359
        %2361 = vrot.lane.b32.xlu0 %v2353, 32
        %v2362 = vpop.permute.xlu0 %2361
        %v2363 = vsel %vm1486, %v2358, %v2360
        %v2364 = vsel %vm1486, %v2360, %v2362
        %2367 = vst [vmem:[#allocation3 + $0x340] sm:$0xf] %v2363
        %2368 = vst.msk [vmem:[#allocation3 + $0x348] sm:$0xf] %vm686, %v2364
        %v2369 = vld [vmem:[#allocation2 + $0x4] sm:$0xff]
        %v2370 = vld [vmem:[#allocation2 + $0xc] sm:$0xf]
        %v2373 = vcombine.low %v2369, %v2369
        %v2374 = vcombine.low %v2370, %v2370
        %2375 = vrot.lane.b32.xlu0 %v2373, 31
        %v2376 = vpop.permute.xlu0 %2375
        %2377 = vrot.lane.b32.xlu0 %v2369, 31
        %v2378 = vpop.permute.xlu0 %2377
        %2379 = vrot.lane.b32.xlu0 %v2374, 31
        %v2380 = vpop.permute.xlu0 %2379
        %vm2381 = vcmask 252928
        %v2382 = vsel %vm2381, %v2376, %v2378
        %v2383 = vsel %vm2381, %v2378, %v2380
        %2386 = vst [vmem:[#allocation3 + $0x340] sm:$0xf0] %v2382
        %2387 = vst.msk [vmem:[#allocation3 + $0x348] sm:$0xf0] %vm700, %v2383
        %v2388 = vld [vmem:[#allocation2 + $0x4] sm:$0xff]
        %v2389 = vld [vmem:[#allocation2 + $0xc] sm:$0xf]
        %v2392 = vcombine.high %v2388, %v2388
        %2393 = vrot.lane.b32.xlu0 %v2388, 30
        %v2394 = vpop.permute.xlu0 %2393
        %2395 = vrot.lane.b32.xlu0 %v2392, 30
        %v2396 = vpop.permute.xlu0 %2395
        %2397 = vrot.lane.b32.xlu0 %v2389, 30
        %v2398 = vpop.permute.xlu0 %2397
        %vm2399 = vcmask 244736
        %v2400 = vsel %vm2399, %v2394, %v2396
        %v2401 = vsel %vm2399, %v2396, %v2398
        %2404 = vst [vmem:[#allocation3 + $0x350] sm:$0xf] %v2400
        %2405 = vst.msk [vmem:[#allocation3 + $0x358] sm:$0xf] %vm686, %v2401
        %v2406 = vld [vmem:[#allocation2 + $0x4] sm:$0xff]
        %v2407 = vld [vmem:[#allocation2 + $0xc] sm:$0xf]
        %v2410 = vcombine.low %v2406, %v2406
        %v2411 = vcombine.low %v2407, %v2407
        %2412 = vrot.lane.b32.xlu0 %v2410, 29
        %v2413 = vpop.permute.xlu0 %2412
        %2414 = vrot.lane.b32.xlu0 %v2406, 29
        %v2415 = vpop.permute.xlu0 %2414
        %2416 = vrot.lane.b32.xlu0 %v2411, 29
        %v2417 = vpop.permute.xlu0 %2416
        %vm2418 = vcmask 236544
        %v2419 = vsel %vm2418, %v2413, %v2415
        %v2420 = vsel %vm2418, %v2415, %v2417
        %2423 = vst [vmem:[#allocation3 + $0x350] sm:$0xf0] %v2419
        %2424 = vst.msk [vmem:[#allocation3 + $0x358] sm:$0xf0] %vm700, %v2420
        %v2425 = vld [vmem:[#allocation2 + $0x4] sm:$0xff]
        %v2426 = vld [vmem:[#allocation2 + $0xc] sm:$0xf]
        %v2429 = vcombine.high %v2425, %v2425
        %2430 = vrot.lane.b32.xlu0 %v2425, 28
        %v2431 = vpop.permute.xlu0 %2430
        %2432 = vrot.lane.b32.xlu0 %v2429, 28
        %v2433 = vpop.permute.xlu0 %2432
        %2434 = vrot.lane.b32.xlu0 %v2426, 28
        %v2435 = vpop.permute.xlu0 %2434
        %vm2436 = vcmask 228352
        %v2437 = vsel %vm2436, %v2431, %v2433
        %v2438 = vsel %vm2436, %v2433, %v2435
        %2441 = vst [vmem:[#allocation3 + $0x360] sm:$0xf] %v2437
        %2442 = vst.msk [vmem:[#allocation3 + $0x368] sm:$0xf] %vm686, %v2438
        %v2443 = vld [vmem:[#allocation2 + $0x4] sm:$0xff]
        %v2444 = vld [vmem:[#allocation2 + $0xc] sm:$0xf]
        %v2447 = vcombine.low %v2443, %v2443
        %v2448 = vcombine.low %v2444, %v2444
        %2449 = vrot.lane.b32.xlu0 %v2447, 27
        %v2450 = vpop.permute.xlu0 %2449
        %2451 = vrot.lane.b32.xlu0 %v2443, 27
        %v2452 = vpop.permute.xlu0 %2451
        %2453 = vrot.lane.b32.xlu0 %v2448, 27
        %v2454 = vpop.permute.xlu0 %2453
        %vm2455 = vcmask 220160
        %v2456 = vsel %vm2455, %v2450, %v2452
        %v2457 = vsel %vm2455, %v2452, %v2454
        %2460 = vst [vmem:[#allocation3 + $0x360] sm:$0xf0] %v2456
        %2461 = vst.msk [vmem:[#allocation3 + $0x368] sm:$0xf0] %vm700, %v2457
        %v2462 = vld [vmem:[#allocation2 + $0x4] sm:$0xff]
        %v2463 = vld [vmem:[#allocation2 + $0xc] sm:$0xf]
        %v2466 = vcombine.high %v2462, %v2462
        %2467 = vrot.lane.b32.xlu0 %v2462, 26
        %v2468 = vpop.permute.xlu0 %2467
        %2469 = vrot.lane.b32.xlu0 %v2466, 26
        %v2470 = vpop.permute.xlu0 %2469
        %2471 = vrot.lane.b32.xlu0 %v2463, 26
        %v2472 = vpop.permute.xlu0 %2471
        %vm2473 = vcmask 211968
        %v2474 = vsel %vm2473, %v2468, %v2470
        %v2475 = vsel %vm2473, %v2470, %v2472
        %2478 = vst [vmem:[#allocation3 + $0x370] sm:$0xf] %v2474
        %2479 = vst.msk [vmem:[#allocation3 + $0x378] sm:$0xf] %vm686, %v2475
        %v2480 = vld [vmem:[#allocation2 + $0x4] sm:$0xff]
        %v2481 = vld [vmem:[#allocation2 + $0xc] sm:$0xf]
        %v2484 = vcombine.low %v2480, %v2480
        %v2485 = vcombine.low %v2481, %v2481
        %2486 = vrot.lane.b32.xlu0 %v2484, 25
        %v2487 = vpop.permute.xlu0 %2486
        %2488 = vrot.lane.b32.xlu0 %v2480, 25
        %v2489 = vpop.permute.xlu0 %2488
        %2490 = vrot.lane.b32.xlu0 %v2485, 25
        %v2491 = vpop.permute.xlu0 %2490
        %vm2492 = vcmask 203776
        %v2493 = vsel %vm2492, %v2487, %v2489
        %v2494 = vsel %vm2492, %v2489, %v2491
        %2497 = vst [vmem:[#allocation3 + $0x370] sm:$0xf0] %v2493
        %2498 = vst.msk [vmem:[#allocation3 + $0x378] sm:$0xf0] %vm700, %v2494
        %v2499 = vld [vmem:[#allocation2 + $0x4] sm:$0xff]
        %v2500 = vld [vmem:[#allocation2 + $0xc] sm:$0xf]
        %v2503 = vcombine.high %v2499, %v2499
        %2504 = vrot.lane.b32.xlu0 %v2499, 24
        %v2505 = vpop.permute.xlu0 %2504
        %2506 = vrot.lane.b32.xlu0 %v2503, 24
        %v2507 = vpop.permute.xlu0 %2506
        %2508 = vrot.lane.b32.xlu0 %v2500, 24
        %v2509 = vpop.permute.xlu0 %2508
        %vm2510 = vcmask 195584
        %v2511 = vsel %vm2510, %v2505, %v2507
        %v2512 = vsel %vm2510, %v2507, %v2509
        %2515 = vst [vmem:[#allocation3 + $0x380] sm:$0xf] %v2511
        %2516 = vst.msk [vmem:[#allocation3 + $0x388] sm:$0xf] %vm686, %v2512
        %v2517 = vld [vmem:[#allocation2 + $0x4] sm:$0xff]
        %v2518 = vld [vmem:[#allocation2 + $0xc] sm:$0xf]
        %v2521 = vcombine.low %v2517, %v2517
        %v2522 = vcombine.low %v2518, %v2518
        %2523 = vrot.lane.b32.xlu0 %v2521, 23
        %v2524 = vpop.permute.xlu0 %2523
        %2525 = vrot.lane.b32.xlu0 %v2517, 23
        %v2526 = vpop.permute.xlu0 %2525
        %2527 = vrot.lane.b32.xlu0 %v2522, 23
        %v2528 = vpop.permute.xlu0 %2527
        %vm2529 = vcmask 187392
        %v2530 = vsel %vm2529, %v2524, %v2526
        %v2531 = vsel %vm2529, %v2526, %v2528
        %2534 = vst [vmem:[#allocation3 + $0x380] sm:$0xf0] %v2530
        %2535 = vst.msk [vmem:[#allocation3 + $0x388] sm:$0xf0] %vm700, %v2531
        %v2536 = vld [vmem:[#allocation2 + $0x4] sm:$0xff]
        %v2537 = vld [vmem:[#allocation2 + $0xc] sm:$0xf]
        %v2540 = vcombine.high %v2536, %v2536
        %2541 = vrot.lane.b32.xlu0 %v2536, 22
        %v2542 = vpop.permute.xlu0 %2541
        %2543 = vrot.lane.b32.xlu0 %v2540, 22
        %v2544 = vpop.permute.xlu0 %2543
        %2545 = vrot.lane.b32.xlu0 %v2537, 22
        %v2546 = vpop.permute.xlu0 %2545
        %vm2547 = vcmask 179200
        %v2548 = vsel %vm2547, %v2542, %v2544
        %v2549 = vsel %vm2547, %v2544, %v2546
        %2552 = vst [vmem:[#allocation3 + $0x390] sm:$0xf] %v2548
        %2553 = vst.msk [vmem:[#allocation3 + $0x398] sm:$0xf] %vm686, %v2549
        %v2554 = vld [vmem:[#allocation2 + $0x4] sm:$0xff]
        %v2555 = vld [vmem:[#allocation2 + $0xc] sm:$0xf]
        %v2558 = vcombine.low %v2554, %v2554
        %v2559 = vcombine.low %v2555, %v2555
        %2560 = vrot.lane.b32.xlu0 %v2558, 21
        %v2561 = vpop.permute.xlu0 %2560
        %2562 = vrot.lane.b32.xlu0 %v2554, 21
        %v2563 = vpop.permute.xlu0 %2562
        %2564 = vrot.lane.b32.xlu0 %v2559, 21
        %v2565 = vpop.permute.xlu0 %2564
        %vm2566 = vcmask 171008
        %v2567 = vsel %vm2566, %v2561, %v2563
        %v2568 = vsel %vm2566, %v2563, %v2565
        %2571 = vst [vmem:[#allocation3 + $0x390] sm:$0xf0] %v2567
        %2572 = vst.msk [vmem:[#allocation3 + $0x398] sm:$0xf0] %vm700, %v2568
        %v2573 = vld [vmem:[#allocation2 + $0x4] sm:$0xff]
        %v2574 = vld [vmem:[#allocation2 + $0xc] sm:$0xf]
        %v2577 = vcombine.high %v2573, %v2573
        %2578 = vrot.lane.b32.xlu0 %v2573, 20
        %v2579 = vpop.permute.xlu0 %2578
        %2580 = vrot.lane.b32.xlu0 %v2577, 20
        %v2581 = vpop.permute.xlu0 %2580
        %2582 = vrot.lane.b32.xlu0 %v2574, 20
        %v2583 = vpop.permute.xlu0 %2582
        %vm2584 = vcmask 162816
        %v2585 = vsel %vm2584, %v2579, %v2581
        %v2586 = vsel %vm2584, %v2581, %v2583
        %2589 = vst [vmem:[#allocation3 + $0x3a0] sm:$0xf] %v2585
        %2590 = vst.msk [vmem:[#allocation3 + $0x3a8] sm:$0xf] %vm686, %v2586
        %v2591 = vld [vmem:[#allocation2 + $0x4] sm:$0xff]
        %v2592 = vld [vmem:[#allocation2 + $0xc] sm:$0xf]
        %v2595 = vcombine.low %v2591, %v2591
        %v2596 = vcombine.low %v2592, %v2592
        %2597 = vrot.lane.b32.xlu0 %v2595, 4
        %v2598 = vpop.permute.xlu0 %2597
        %2599 = vrot.lane.b32.xlu0 %v2591, 4
        %v2600 = vpop.permute.xlu0 %2599
        %2601 = vrot.lane.b32.xlu0 %v2596, 4
        %v2602 = vpop.permute.xlu0 %2601
        %v2603 = vsel %vm1726, %v2598, %v2600
        %v2604 = vsel %vm1726, %v2600, %v2602
        %2607 = vst [vmem:[#allocation3 + $0x3a0] sm:$0xf0] %v2603
        %2608 = vst.msk [vmem:[#allocation3 + $0x3a8] sm:$0xf0] %vm700, %v2604
        %v2609 = vld [vmem:[#allocation2 + $0x4] sm:$0xff]
        %v2610 = vld [vmem:[#allocation2 + $0xc] sm:$0xf]
        %v2613 = vcombine.high %v2609, %v2609
        %2614 = vrot.lane.b32.xlu0 %v2609, 3
        %v2615 = vpop.permute.xlu0 %2614
        %2616 = vrot.lane.b32.xlu0 %v2613, 3
        %v2617 = vpop.permute.xlu0 %2616
        %2618 = vrot.lane.b32.xlu0 %v2610, 3
        %v2619 = vpop.permute.xlu0 %2618
        %vm2620 = vcmask 23552
        %v2621 = vsel %vm2620, %v2615, %v2617
        %v2622 = vsel %vm2620, %v2617, %v2619
        %2625 = vst [vmem:[#allocation3 + $0x3b0] sm:$0xf] %v2621
        %2626 = vst.msk [vmem:[#allocation3 + $0x3b8] sm:$0xf] %vm686, %v2622
        %v2627 = vld [vmem:[#allocation2 + $0x4] sm:$0xff]
        %v2628 = vld [vmem:[#allocation2 + $0xc] sm:$0xf]
        %v2631 = vcombine.low %v2627, %v2627
        %v2632 = vcombine.low %v2628, %v2628
        %2633 = vrot.lane.b32.xlu0 %v2631, 2
        %v2634 = vpop.permute.xlu0 %2633
        %2635 = vrot.lane.b32.xlu0 %v2627, 2
        %v2636 = vpop.permute.xlu0 %2635
        %2637 = vrot.lane.b32.xlu0 %v2632, 2
        %v2638 = vpop.permute.xlu0 %2637
        %vm2639 = vcmask 15360
        %v2640 = vsel %vm2639, %v2634, %v2636
        %v2641 = vsel %vm2639, %v2636, %v2638
        %2644 = vst [vmem:[#allocation3 + $0x3b0] sm:$0xf0] %v2640
        %2645 = vst.msk [vmem:[#allocation3 + $0x3b8] sm:$0xf0] %vm700, %v2641
        %v2646 = vld [vmem:[#allocation2 + $0x4] sm:$0xff]
        %v2647 = vld [vmem:[#allocation2 + $0xc] sm:$0xf]
        %v2650 = vcombine.high %v2646, %v2646
        %2651 = vrot.lane.b32.xlu0 %v2646, 1
        %v2652 = vpop.permute.xlu0 %2651
        %2653 = vrot.lane.b32.xlu0 %v2650, 1
        %v2654 = vpop.permute.xlu0 %2653
        %2655 = vrot.lane.b32.xlu0 %v2647, 1
        %v2656 = vpop.permute.xlu0 %2655
        %vm2657 = vcmask 7168
        %v2658 = vsel %vm2657, %v2652, %v2654
        %v2659 = vsel %vm2657, %v2654, %v2656
        %2662 = vst [vmem:[#allocation3 + $0x3c0] sm:$0xf] %v2658
        %2663 = vst.msk [vmem:[#allocation3 + $0x3c8] sm:$0xf] %vm686, %v2659
        %v2664 = vld [vmem:[#allocation2 + $0x8] sm:$0xff]
        %v2666 = vcombine.low %v2664, %v2664
        %2668 = vst [vmem:[#allocation3 + $0x3c0] sm:$0xf0] %v2666
        %2669 = vst.msk [vmem:[#allocation3 + $0x3c8] sm:$0xf0] %vm700, %v2664
        %v2670 = vld [vmem:[#allocation2 + $0x8] sm:$0xff]
        %v2672 = vcombine.high %v2670, %v2670
        %2673 = vrot.lane.b32.xlu0 %v2670, 127
        %v2674 = vpop.permute.xlu0 %2673
        %2675 = vrot.lane.b32.xlu0 %v2672, 127
        %v2676 = vpop.permute.xlu0 %2675
        %v2677 = vsel %vm695, %v2674, %v2676
        %2680 = vst [vmem:[#allocation3 + $0x3d0] sm:$0xf] %v2677
        %2681 = vst.msk [vmem:[#allocation3 + $0x3d8] sm:$0xf] %vm686, %v2676
        %v2682 = vld [vmem:[#allocation2 + $0x8] sm:$0xff]
        %v2684 = vcombine.low %v2682, %v2682
        %2685 = vrot.lane.b32.xlu0 %v2684, 126
        %v2686 = vpop.permute.xlu0 %2685
        %2687 = vrot.lane.b32.xlu0 %v2682, 126
        %v2688 = vpop.permute.xlu0 %2687
        %v2689 = vsel %vm650, %v2686, %v2688
        %2692 = vst [vmem:[#allocation3 + $0x3d0] sm:$0xf0] %v2689
        %2693 = vst.msk [vmem:[#allocation3 + $0x3d8] sm:$0xf0] %vm700, %v2688
        %v2694 = vld [vmem:[#allocation2 + $0x8] sm:$0xff]
        %v2696 = vcombine.high %v2694, %v2694
        %2697 = vrot.lane.b32.xlu0 %v2694, 125
        %v2698 = vpop.permute.xlu0 %2697
        %2699 = vrot.lane.b32.xlu0 %v2696, 125
        %v2700 = vpop.permute.xlu0 %2699
        %v2701 = vsel %vm721, %v2698, %v2700
        %2704 = vst [vmem:[#allocation3 + $0x3e0] sm:$0xf] %v2701
        %2705 = vst.msk [vmem:[#allocation3 + $0x3e8] sm:$0xf] %vm686, %v2700
        %v2706 = vld [vmem:[#allocation2 + $0x8] sm:$0xff]
        %v2708 = vcombine.low %v2706, %v2706
        %2709 = vrot.lane.b32.xlu0 %v2708, 124
        %v2710 = vpop.permute.xlu0 %2709
        %2711 = vrot.lane.b32.xlu0 %v2706, 124
        %v2712 = vpop.permute.xlu0 %2711
        %v2713 = vsel %vm734, %v2710, %v2712
        %2716 = vst [vmem:[#allocation3 + $0x3e0] sm:$0xf0] %v2713
        %2717 = vst.msk [vmem:[#allocation3 + $0x3e8] sm:$0xf0] %vm700, %v2712
        %v2718 = vld [vmem:[#allocation2 + $0x8] sm:$0xff]
        %v2720 = vcombine.high %v2718, %v2718
        %2721 = vrot.lane.b32.xlu0 %v2718, 123
        %v2722 = vpop.permute.xlu0 %2721
        %2723 = vrot.lane.b32.xlu0 %v2720, 123
        %v2724 = vpop.permute.xlu0 %2723
        %v2725 = vsel %vm747, %v2722, %v2724
        %2728 = vst [vmem:[#allocation3 + $0x3f0] sm:$0xf] %v2725
        %2729 = vst.msk [vmem:[#allocation3 + $0x3f8] sm:$0xf] %vm686, %v2724
        %v2730 = vld [vmem:[#allocation2 + $0x8] sm:$0xff]
        %v2732 = vcombine.low %v2730, %v2730
        %2733 = vrot.lane.b32.xlu0 %v2732, 122
        %v2734 = vpop.permute.xlu0 %2733
        %2735 = vrot.lane.b32.xlu0 %v2730, 122
        %v2736 = vpop.permute.xlu0 %2735
        %v2737 = vsel %vm760, %v2734, %v2736
        %2740 = vst [vmem:[#allocation3 + $0x3f0] sm:$0xf0] %v2737
        %2741 = vst.msk [vmem:[#allocation3 + $0x3f8] sm:$0xf0] %vm700, %v2736
        %v2742 = vld [vmem:[#allocation2 + $0x8] sm:$0xff]
        %v2744 = vcombine.high %v2742, %v2742
        %2745 = vrot.lane.b32.xlu0 %v2742, 121
        %v2746 = vpop.permute.xlu0 %2745
        %2747 = vrot.lane.b32.xlu0 %v2744, 121
        %v2748 = vpop.permute.xlu0 %2747
        %v2749 = vsel %vm773, %v2746, %v2748
        %2752 = vst [vmem:[#allocation3 + $0x400] sm:$0xf] %v2749
        %2753 = vst.msk [vmem:[#allocation3 + $0x408] sm:$0xf] %vm686, %v2748
        %v2754 = vld [vmem:[#allocation2 + $0x8] sm:$0xff]
        %v2756 = vcombine.low %v2754, %v2754
        %2757 = vrot.lane.b32.xlu0 %v2756, 120
        %v2758 = vpop.permute.xlu0 %2757
        %2759 = vrot.lane.b32.xlu0 %v2754, 120
        %v2760 = vpop.permute.xlu0 %2759
        %v2761 = vsel %vm786, %v2758, %v2760
        %2764 = vst [vmem:[#allocation3 + $0x400] sm:$0xf0] %v2761
        %2765 = vst.msk [vmem:[#allocation3 + $0x408] sm:$0xf0] %vm700, %v2760
        %v2766 = vld [vmem:[#allocation2 + $0x8] sm:$0xff]
        %v2768 = vcombine.high %v2766, %v2766
        %2769 = vrot.lane.b32.xlu0 %v2766, 104
        %v2770 = vpop.permute.xlu0 %2769
        %2771 = vrot.lane.b32.xlu0 %v2768, 104
        %v2772 = vpop.permute.xlu0 %2771
        %v2773 = vsel %vm1894, %v2770, %v2772
        %2776 = vst [vmem:[#allocation3 + $0x410] sm:$0xf] %v2773
        %2777 = vst.msk [vmem:[#allocation3 + $0x418] sm:$0xf] %vm686, %v2772
        %v2778 = vld [vmem:[#allocation2 + $0x8] sm:$0xff]
        %v2780 = vcombine.low %v2778, %v2778
        %2781 = vrot.lane.b32.xlu0 %v2780, 103
        %v2782 = vpop.permute.xlu0 %2781
        %2783 = vrot.lane.b32.xlu0 %v2778, 103
        %v2784 = vpop.permute.xlu0 %2783
        %vm2785 = vcmask 842752
        %v2786 = vsel %vm2785, %v2782, %v2784
        %2789 = vst [vmem:[#allocation3 + $0x410] sm:$0xf0] %v2786
        %2790 = vst.msk [vmem:[#allocation3 + $0x418] sm:$0xf0] %vm700, %v2784
        %v2791 = vld [vmem:[#allocation2 + $0x8] sm:$0xff]
        %v2793 = vcombine.high %v2791, %v2791
        %2794 = vrot.lane.b32.xlu0 %v2791, 102
        %v2795 = vpop.permute.xlu0 %2794
        %2796 = vrot.lane.b32.xlu0 %v2793, 102
        %v2797 = vpop.permute.xlu0 %2796
        %vm2798 = vcmask 834560
        %v2799 = vsel %vm2798, %v2795, %v2797
        %2802 = vst [vmem:[#allocation3 + $0x420] sm:$0xf] %v2799
        %2803 = vst.msk [vmem:[#allocation3 + $0x428] sm:$0xf] %vm686, %v2797
        %v2804 = vld [vmem:[#allocation2 + $0x8] sm:$0xff]
        %v2806 = vcombine.low %v2804, %v2804
        %2807 = vrot.lane.b32.xlu0 %v2806, 101
        %v2808 = vpop.permute.xlu0 %2807
        %2809 = vrot.lane.b32.xlu0 %v2804, 101
        %v2810 = vpop.permute.xlu0 %2809
        %vm2811 = vcmask 826368
        %v2812 = vsel %vm2811, %v2808, %v2810
        %2815 = vst [vmem:[#allocation3 + $0x420] sm:$0xf0] %v2812
        %2816 = vst.msk [vmem:[#allocation3 + $0x428] sm:$0xf0] %vm700, %v2810
        %v2817 = vld [vmem:[#allocation2 + $0x8] sm:$0xff]
        %v2819 = vcombine.high %v2817, %v2817
        %2820 = vrot.lane.b32.xlu0 %v2817, 100
        %v2821 = vpop.permute.xlu0 %2820
        %2822 = vrot.lane.b32.xlu0 %v2819, 100
        %v2823 = vpop.permute.xlu0 %2822
        %v2824 = vsel %vm850, %v2821, %v2823
        %2827 = vst [vmem:[#allocation3 + $0x430] sm:$0xf] %v2824
        %2828 = vst.msk [vmem:[#allocation3 + $0x438] sm:$0xf] %vm686, %v2823
        %v2829 = vld [vmem:[#allocation2 + $0x8] sm:$0xff]
        %v2831 = vcombine.low %v2829, %v2829
        %2832 = vrot.lane.b32.xlu0 %v2831, 99
        %v2833 = vpop.permute.xlu0 %2832
        %2834 = vrot.lane.b32.xlu0 %v2829, 99
        %v2835 = vpop.permute.xlu0 %2834
        %v2836 = vsel %vm863, %v2833, %v2835
        %2839 = vst [vmem:[#allocation3 + $0x430] sm:$0xf0] %v2836
        %2840 = vst.msk [vmem:[#allocation3 + $0x438] sm:$0xf0] %vm700, %v2835
        %v2841 = vld [vmem:[#allocation2 + $0x8] sm:$0xff]
        %v2843 = vcombine.high %v2841, %v2841
        %2844 = vrot.lane.b32.xlu0 %v2841, 98
        %v2845 = vpop.permute.xlu0 %2844
        %2846 = vrot.lane.b32.xlu0 %v2843, 98
        %v2847 = vpop.permute.xlu0 %2846
        %v2848 = vsel %vm876, %v2845, %v2847
        %2851 = vst [vmem:[#allocation3 + $0x440] sm:$0xf] %v2848
        %2852 = vst.msk [vmem:[#allocation3 + $0x448] sm:$0xf] %vm686, %v2847
        %v2853 = vld [vmem:[#allocation2 + $0x8] sm:$0xff]
        %v2855 = vcombine.low %v2853, %v2853
        %2856 = vrot.lane.b32.xlu0 %v2855, 97
        %v2857 = vpop.permute.xlu0 %2856
        %2858 = vrot.lane.b32.xlu0 %v2853, 97
        %v2859 = vpop.permute.xlu0 %2858
        %v2860 = vsel %vm889, %v2857, %v2859
        %2863 = vst [vmem:[#allocation3 + $0x440] sm:$0xf0] %v2860
        %2864 = vst.msk [vmem:[#allocation3 + $0x448] sm:$0xf0] %vm700, %v2859
        %v2865 = vld [vmem:[#allocation2 + $0x8] sm:$0xff]
        %v2867 = vcombine.high %v2865, %v2865
        %2868 = vrot.lane.b32.xlu0 %v2865, 96
        %v2869 = vpop.permute.xlu0 %2868
        %2870 = vrot.lane.b32.xlu0 %v2867, 96
        %v2871 = vpop.permute.xlu0 %2870
        %v2872 = vsel %vm902, %v2869, %v2871
        %2875 = vst [vmem:[#allocation3 + $0x450] sm:$0xf] %v2872
        %2876 = vst.msk [vmem:[#allocation3 + $0x458] sm:$0xf] %vm686, %v2871
        %v2877 = vld [vmem:[#allocation2 + $0x8] sm:$0xff]
        %v2879 = vcombine.low %v2877, %v2877
        %2880 = vrot.lane.b32.xlu0 %v2879, 95
        %v2881 = vpop.permute.xlu0 %2880
        %2882 = vrot.lane.b32.xlu0 %v2877, 95
        %v2883 = vpop.permute.xlu0 %2882
        %v2884 = vsel %vm915, %v2881, %v2883
        %2887 = vst [vmem:[#allocation3 + $0x450] sm:$0xf0] %v2884
        %2888 = vst.msk [vmem:[#allocation3 + $0x458] sm:$0xf0] %vm700, %v2883
        %v2889 = vld [vmem:[#allocation2 + $0x8] sm:$0xff]
        %v2891 = vcombine.high %v2889, %v2889
        %2892 = vrot.lane.b32.xlu0 %v2889, 94
        %v2893 = vpop.permute.xlu0 %2892
        %2894 = vrot.lane.b32.xlu0 %v2891, 94
        %v2895 = vpop.permute.xlu0 %2894
        %v2896 = vsel %vm928, %v2893, %v2895
        %2899 = vst [vmem:[#allocation3 + $0x460] sm:$0xf] %v2896
        %2900 = vst.msk [vmem:[#allocation3 + $0x468] sm:$0xf] %vm686, %v2895
        %v2901 = vld [vmem:[#allocation2 + $0x8] sm:$0xff]
        %v2903 = vcombine.low %v2901, %v2901
        %2904 = vrot.lane.b32.xlu0 %v2903, 93
        %v2905 = vpop.permute.xlu0 %2904
        %2906 = vrot.lane.b32.xlu0 %v2901, 93
        %v2907 = vpop.permute.xlu0 %2906
        %v2908 = vsel %vm941, %v2905, %v2907
        %2911 = vst [vmem:[#allocation3 + $0x460] sm:$0xf0] %v2908
        %2912 = vst.msk [vmem:[#allocation3 + $0x468] sm:$0xf0] %vm700, %v2907
        %v2913 = vld [vmem:[#allocation2 + $0x8] sm:$0xff]
        %v2915 = vcombine.high %v2913, %v2913
        %2916 = vrot.lane.b32.xlu0 %v2913, 92
        %v2917 = vpop.permute.xlu0 %2916
        %2918 = vrot.lane.b32.xlu0 %v2915, 92
        %v2919 = vpop.permute.xlu0 %2918
        %v2920 = vsel %vm954, %v2917, %v2919
        %2923 = vst [vmem:[#allocation3 + $0x470] sm:$0xf] %v2920
        %2924 = vst.msk [vmem:[#allocation3 + $0x478] sm:$0xf] %vm686, %v2919
        %v2925 = vld [vmem:[#allocation2 + $0x8] sm:$0xff]
        %v2926 = vld [vmem:[#allocation2 + $0x10] sm:$0xf]
        %v2929 = vcombine.low %v2925, %v2925
        %v2930 = vcombine.low %v2926, %v2926
        %2931 = vrot.lane.b32.xlu0 %v2929, 76
        %v2932 = vpop.permute.xlu0 %2931
        %2933 = vrot.lane.b32.xlu0 %v2925, 76
        %v2934 = vpop.permute.xlu0 %2933
        %2935 = vrot.lane.b32.xlu0 %v2930, 76
        %v2936 = vpop.permute.xlu0 %2935
        %v2937 = vsel %vm2105, %v2932, %v2934
        %v2938 = vsel %vm2105, %v2934, %v2936
        %2941 = vst [vmem:[#allocation3 + $0x470] sm:$0xf0] %v2937
        %2942 = vst.msk [vmem:[#allocation3 + $0x478] sm:$0xf0] %vm700, %v2938
        %v2943 = vld [vmem:[#allocation2 + $0x8] sm:$0xff]
        %v2944 = vld [vmem:[#allocation2 + $0x10] sm:$0xf]
        %v2947 = vcombine.high %v2943, %v2943
        %2948 = vrot.lane.b32.xlu0 %v2943, 75
        %v2949 = vpop.permute.xlu0 %2948
        %2950 = vrot.lane.b32.xlu0 %v2947, 75
        %v2951 = vpop.permute.xlu0 %2950
        %2952 = vrot.lane.b32.xlu0 %v2944, 75
        %v2953 = vpop.permute.xlu0 %2952
        %vm2954 = vcmask 613376
        %v2955 = vsel %vm2954, %v2949, %v2951
        %v2956 = vsel %vm2954, %v2951, %v2953
        %2959 = vst [vmem:[#allocation3 + $0x480] sm:$0xf] %v2955
        %2960 = vst.msk [vmem:[#allocation3 + $0x488] sm:$0xf] %vm686, %v2956
        %v2961 = vld [vmem:[#allocation2 + $0x8] sm:$0xff]
        %v2962 = vld [vmem:[#allocation2 + $0x10] sm:$0xf]
        %v2965 = vcombine.low %v2961, %v2961
        %v2966 = vcombine.low %v2962, %v2962
        %2967 = vrot.lane.b32.xlu0 %v2965, 74
        %v2968 = vpop.permute.xlu0 %2967
        %2969 = vrot.lane.b32.xlu0 %v2961, 74
        %v2970 = vpop.permute.xlu0 %2969
        %2971 = vrot.lane.b32.xlu0 %v2966, 74
        %v2972 = vpop.permute.xlu0 %2971
        %vm2973 = vcmask 605184
        %v2974 = vsel %vm2973, %v2968, %v2970
        %v2975 = vsel %vm2973, %v2970, %v2972
        %2978 = vst [vmem:[#allocation3 + $0x480] sm:$0xf0] %v2974
        %2979 = vst.msk [vmem:[#allocation3 + $0x488] sm:$0xf0] %vm700, %v2975
        %v2980 = vld [vmem:[#allocation2 + $0x8] sm:$0xff]
        %v2981 = vld [vmem:[#allocation2 + $0x10] sm:$0xf]
        %v2984 = vcombine.high %v2980, %v2980
        %2985 = vrot.lane.b32.xlu0 %v2980, 73
        %v2986 = vpop.permute.xlu0 %2985
        %2987 = vrot.lane.b32.xlu0 %v2984, 73
        %v2988 = vpop.permute.xlu0 %2987
        %2989 = vrot.lane.b32.xlu0 %v2981, 73
        %v2990 = vpop.permute.xlu0 %2989
        %vm2991 = vcmask 596992
        %v2992 = vsel %vm2991, %v2986, %v2988
        %v2993 = vsel %vm2991, %v2988, %v2990
        %2996 = vst [vmem:[#allocation3 + $0x490] sm:$0xf] %v2992
        %2997 = vst.msk [vmem:[#allocation3 + $0x498] sm:$0xf] %vm686, %v2993
        %v2998 = vld [vmem:[#allocation2 + $0x8] sm:$0xff]
        %v2999 = vld [vmem:[#allocation2 + $0x10] sm:$0xf]
        %v3002 = vcombine.low %v2998, %v2998
        %v3003 = vcombine.low %v2999, %v2999
        %3004 = vrot.lane.b32.xlu0 %v3002, 72
        %v3005 = vpop.permute.xlu0 %3004
        %3006 = vrot.lane.b32.xlu0 %v2998, 72
        %v3007 = vpop.permute.xlu0 %3006
        %3008 = vrot.lane.b32.xlu0 %v3003, 72
        %v3009 = vpop.permute.xlu0 %3008
        %v3010 = vsel %vm1023, %v3005, %v3007
        %v3011 = vsel %vm1023, %v3007, %v3009
        %3014 = vst [vmem:[#allocation3 + $0x490] sm:$0xf0] %v3010
        %3015 = vst.msk [vmem:[#allocation3 + $0x498] sm:$0xf0] %vm700, %v3011
        %v3016 = vld [vmem:[#allocation2 + $0x8] sm:$0xff]
        %v3017 = vld [vmem:[#allocation2 + $0x10] sm:$0xf]
        %v3020 = vcombine.high %v3016, %v3016
        %3021 = vrot.lane.b32.xlu0 %v3016, 71
        %v3022 = vpop.permute.xlu0 %3021
        %3023 = vrot.lane.b32.xlu0 %v3020, 71
        %v3024 = vpop.permute.xlu0 %3023
        %3025 = vrot.lane.b32.xlu0 %v3017, 71
        %v3026 = vpop.permute.xlu0 %3025
        %v3027 = vsel %vm1042, %v3022, %v3024
        %v3028 = vsel %vm1042, %v3024, %v3026
        %3031 = vst [vmem:[#allocation3 + $0x4a0] sm:$0xf] %v3027
        %3032 = vst.msk [vmem:[#allocation3 + $0x4a8] sm:$0xf] %vm686, %v3028
        %v3033 = vld [vmem:[#allocation2 + $0x8] sm:$0xff]
        %v3034 = vld [vmem:[#allocation2 + $0x10] sm:$0xf]
        %v3037 = vcombine.low %v3033, %v3033
        %v3038 = vcombine.low %v3034, %v3034
        %3039 = vrot.lane.b32.xlu0 %v3037, 70
        %v3040 = vpop.permute.xlu0 %3039
        %3041 = vrot.lane.b32.xlu0 %v3033, 70
        %v3042 = vpop.permute.xlu0 %3041
        %3043 = vrot.lane.b32.xlu0 %v3038, 70
        %v3044 = vpop.permute.xlu0 %3043
        %v3045 = vsel %vm1060, %v3040, %v3042
        %v3046 = vsel %vm1060, %v3042, %v3044
        %3049 = vst [vmem:[#allocation3 + $0x4a0] sm:$0xf0] %v3045
        %3050 = vst.msk [vmem:[#allocation3 + $0x4a8] sm:$0xf0] %vm700, %v3046
        %v3051 = vld [vmem:[#allocation2 + $0x8] sm:$0xff]
        %v3052 = vld [vmem:[#allocation2 + $0x10] sm:$0xf]
        %v3055 = vcombine.high %v3051, %v3051
        %3056 = vrot.lane.b32.xlu0 %v3051, 69
        %v3057 = vpop.permute.xlu0 %3056
        %3058 = vrot.lane.b32.xlu0 %v3055, 69
        %v3059 = vpop.permute.xlu0 %3058
        %3060 = vrot.lane.b32.xlu0 %v3052, 69
        %v3061 = vpop.permute.xlu0 %3060
        %v3062 = vsel %vm1079, %v3057, %v3059
        %v3063 = vsel %vm1079, %v3059, %v3061
        %3066 = vst [vmem:[#allocation3 + $0x4b0] sm:$0xf] %v3062
        %3067 = vst.msk [vmem:[#allocation3 + $0x4b8] sm:$0xf] %vm686, %v3063
        %v3068 = vld [vmem:[#allocation2 + $0x8] sm:$0xff]
        %v3069 = vld [vmem:[#allocation2 + $0x10] sm:$0xf]
        %v3072 = vcombine.low %v3068, %v3068
        %v3073 = vcombine.low %v3069, %v3069
        %3074 = vrot.lane.b32.xlu0 %v3072, 68
        %v3075 = vpop.permute.xlu0 %3074
        %3076 = vrot.lane.b32.xlu0 %v3068, 68
        %v3077 = vpop.permute.xlu0 %3076
        %3078 = vrot.lane.b32.xlu0 %v3073, 68
        %v3079 = vpop.permute.xlu0 %3078
        %v3080 = vsel %vm1097, %v3075, %v3077
        %v3081 = vsel %vm1097, %v3077, %v3079
        %3084 = vst [vmem:[#allocation3 + $0x4b0] sm:$0xf0] %v3080
        %3085 = vst.msk [vmem:[#allocation3 + $0x4b8] sm:$0xf0] %vm700, %v3081
        %v3086 = vld [vmem:[#allocation2 + $0x8] sm:$0xff]
        %v3087 = vld [vmem:[#allocation2 + $0x10] sm:$0xf]
        %v3090 = vcombine.high %v3086, %v3086
        %3091 = vrot.lane.b32.xlu0 %v3086, 67
        %v3092 = vpop.permute.xlu0 %3091
        %3093 = vrot.lane.b32.xlu0 %v3090, 67
        %v3094 = vpop.permute.xlu0 %3093
        %3095 = vrot.lane.b32.xlu0 %v3087, 67
        %v3096 = vpop.permute.xlu0 %3095
        %v3097 = vsel %vm1116, %v3092, %v3094
        %v3098 = vsel %vm1116, %v3094, %v3096
        %3101 = vst [vmem:[#allocation3 + $0x4c0] sm:$0xf] %v3097
        %3102 = vst.msk [vmem:[#allocation3 + $0x4c8] sm:$0xf] %vm686, %v3098
        %v3103 = vld [vmem:[#allocation2 + $0x8] sm:$0xff]
        %v3104 = vld [vmem:[#allocation2 + $0x10] sm:$0xf]
        %v3107 = vcombine.low %v3103, %v3103
        %v3108 = vcombine.low %v3104, %v3104
        %3109 = vrot.lane.b32.xlu0 %v3107, 66
        %v3110 = vpop.permute.xlu0 %3109
        %3111 = vrot.lane.b32.xlu0 %v3103, 66
        %v3112 = vpop.permute.xlu0 %3111
        %3113 = vrot.lane.b32.xlu0 %v3108, 66
        %v3114 = vpop.permute.xlu0 %3113
        %v3115 = vsel %vm1134, %v3110, %v3112
        %v3116 = vsel %vm1134, %v3112, %v3114
        %3119 = vst [vmem:[#allocation3 + $0x4c0] sm:$0xf0] %v3115
        %3120 = vst.msk [vmem:[#allocation3 + $0x4c8] sm:$0xf0] %vm700, %v3116
        %v3121 = vld [vmem:[#allocation2 + $0x8] sm:$0xff]
        %v3122 = vld [vmem:[#allocation2 + $0x10] sm:$0xf]
        %v3125 = vcombine.high %v3121, %v3121
        %3126 = vrot.lane.b32.xlu0 %v3121, 65
        %v3127 = vpop.permute.xlu0 %3126
        %3128 = vrot.lane.b32.xlu0 %v3125, 65
        %v3129 = vpop.permute.xlu0 %3128
        %3130 = vrot.lane.b32.xlu0 %v3122, 65
        %v3131 = vpop.permute.xlu0 %3130
        %v3132 = vsel %vm1153, %v3127, %v3129
        %v3133 = vsel %vm1153, %v3129, %v3131
        %3136 = vst [vmem:[#allocation3 + $0x4d0] sm:$0xf] %v3132
        %3137 = vst.msk [vmem:[#allocation3 + $0x4d8] sm:$0xf] %vm686, %v3133
        %v3138 = vld [vmem:[#allocation2 + $0x8] sm:$0xff]
        %v3139 = vld [vmem:[#allocation2 + $0x10] sm:$0xf]
        %v3142 = vcombine.low %v3138, %v3138
        %v3143 = vcombine.low %v3139, %v3139
        %3144 = vrot.lane.b32.xlu0 %v3142, 64
        %v3145 = vpop.permute.xlu0 %3144
        %3146 = vrot.lane.b32.xlu0 %v3138, 64
        %v3147 = vpop.permute.xlu0 %3146
        %3148 = vrot.lane.b32.xlu0 %v3143, 64
        %v3149 = vpop.permute.xlu0 %3148
        %v3150 = vsel %vm1171, %v3145, %v3147
        %v3151 = vsel %vm1171, %v3147, %v3149
        %3154 = vst [vmem:[#allocation3 + $0x4d0] sm:$0xf0] %v3150
        %3155 = vst.msk [vmem:[#allocation3 + $0x4d8] sm:$0xf0] %vm700, %v3151
        %v3156 = vld [vmem:[#allocation2 + $0x8] sm:$0xff]
        %v3157 = vld [vmem:[#allocation2 + $0x10] sm:$0xf]
        %v3160 = vcombine.high %v3156, %v3156
        %3161 = vrot.lane.b32.xlu0 %v3156, 48
        %v3162 = vpop.permute.xlu0 %3161
        %3163 = vrot.lane.b32.xlu0 %v3160, 48
        %v3164 = vpop.permute.xlu0 %3163
        %3165 = vrot.lane.b32.xlu0 %v3157, 48
        %v3166 = vpop.permute.xlu0 %3165
        %v3167 = vsel %vm2345, %v3162, %v3164
        %v3168 = vsel %vm2345, %v3164, %v3166
        %3171 = vst [vmem:[#allocation3 + $0x4e0] sm:$0xf] %v3167
        %3172 = vst.msk [vmem:[#allocation3 + $0x4e8] sm:$0xf] %vm686, %v3168
        %v3173 = vld [vmem:[#allocation2 + $0x8] sm:$0xff]
        %v3174 = vld [vmem:[#allocation2 + $0x10] sm:$0xf]
        %v3177 = vcombine.low %v3173, %v3173
        %v3178 = vcombine.low %v3174, %v3174
        %3179 = vrot.lane.b32.xlu0 %v3177, 47
        %v3180 = vpop.permute.xlu0 %3179
        %3181 = vrot.lane.b32.xlu0 %v3173, 47
        %v3182 = vpop.permute.xlu0 %3181
        %3183 = vrot.lane.b32.xlu0 %v3178, 47
        %v3184 = vpop.permute.xlu0 %3183
        %vm3185 = vcmask 384000
        %v3186 = vsel %vm3185, %v3180, %v3182
        %v3187 = vsel %vm3185, %v3182, %v3184
        %3190 = vst [vmem:[#allocation3 + $0x4e0] sm:$0xf0] %v3186
        %3191 = vst.msk [vmem:[#allocation3 + $0x4e8] sm:$0xf0] %vm700, %v3187
        %v3192 = vld [vmem:[#allocation2 + $0x8] sm:$0xff]
        %v3193 = vld [vmem:[#allocation2 + $0x10] sm:$0xf]
        %v3196 = vcombine.high %v3192, %v3192
        %3197 = vrot.lane.b32.xlu0 %v3192, 46
        %v3198 = vpop.permute.xlu0 %3197
        %3199 = vrot.lane.b32.xlu0 %v3196, 46
        %v3200 = vpop.permute.xlu0 %3199
        %3201 = vrot.lane.b32.xlu0 %v3193, 46
        %v3202 = vpop.permute.xlu0 %3201
        %vm3203 = vcmask 375808
        %v3204 = vsel %vm3203, %v3198, %v3200
        %v3205 = vsel %vm3203, %v3200, %v3202
        %3208 = vst [vmem:[#allocation3 + $0x4f0] sm:$0xf] %v3204
        %3209 = vst.msk [vmem:[#allocation3 + $0x4f8] sm:$0xf] %vm686, %v3205
        %v3210 = vld [vmem:[#allocation2 + $0x8] sm:$0xff]
        %v3211 = vld [vmem:[#allocation2 + $0x10] sm:$0xf]
        %v3214 = vcombine.low %v3210, %v3210
        %v3215 = vcombine.low %v3211, %v3211
        %3216 = vrot.lane.b32.xlu0 %v3214, 45
        %v3217 = vpop.permute.xlu0 %3216
        %3218 = vrot.lane.b32.xlu0 %v3210, 45
        %v3219 = vpop.permute.xlu0 %3218
        %3220 = vrot.lane.b32.xlu0 %v3215, 45
        %v3221 = vpop.permute.xlu0 %3220
        %vm3222 = vcmask 367616
        %v3223 = vsel %vm3222, %v3217, %v3219
        %v3224 = vsel %vm3222, %v3219, %v3221
        %3227 = vst [vmem:[#allocation3 + $0x4f0] sm:$0xf0] %v3223
        %3228 = vst.msk [vmem:[#allocation3 + $0x4f8] sm:$0xf0] %vm700, %v3224
        %v3229 = vld [vmem:[#allocation2 + $0x8] sm:$0xff]
        %v3230 = vld [vmem:[#allocation2 + $0x10] sm:$0xf]
        %v3233 = vcombine.high %v3229, %v3229
        %3234 = vrot.lane.b32.xlu0 %v3229, 44
        %v3235 = vpop.permute.xlu0 %3234
        %3236 = vrot.lane.b32.xlu0 %v3233, 44
        %v3237 = vpop.permute.xlu0 %3236
        %3238 = vrot.lane.b32.xlu0 %v3230, 44
        %v3239 = vpop.permute.xlu0 %3238
        %v3240 = vsel %vm1264, %v3235, %v3237
        %v3241 = vsel %vm1264, %v3237, %v3239
        %3244 = vst [vmem:[#allocation3 + $0x500] sm:$0xf] %v3240
        %3245 = vst.msk [vmem:[#allocation3 + $0x508] sm:$0xf] %vm686, %v3241
        %v3246 = vld [vmem:[#allocation2 + $0x8] sm:$0xff]
        %v3247 = vld [vmem:[#allocation2 + $0x10] sm:$0xf]
        %v3250 = vcombine.low %v3246, %v3246
        %v3251 = vcombine.low %v3247, %v3247
        %3252 = vrot.lane.b32.xlu0 %v3250, 43
        %v3253 = vpop.permute.xlu0 %3252
        %3254 = vrot.lane.b32.xlu0 %v3246, 43
        %v3255 = vpop.permute.xlu0 %3254
        %3256 = vrot.lane.b32.xlu0 %v3251, 43
        %v3257 = vpop.permute.xlu0 %3256
        %v3258 = vsel %vm1282, %v3253, %v3255
        %v3259 = vsel %vm1282, %v3255, %v3257
        %3262 = vst [vmem:[#allocation3 + $0x500] sm:$0xf0] %v3258
        %3263 = vst.msk [vmem:[#allocation3 + $0x508] sm:$0xf0] %vm700, %v3259
        %v3264 = vld [vmem:[#allocation2 + $0x8] sm:$0xff]
        %v3265 = vld [vmem:[#allocation2 + $0x10] sm:$0xf]
        %v3268 = vcombine.high %v3264, %v3264
        %3269 = vrot.lane.b32.xlu0 %v3264, 42
        %v3270 = vpop.permute.xlu0 %3269
        %3271 = vrot.lane.b32.xlu0 %v3268, 42
        %v3272 = vpop.permute.xlu0 %3271
        %3273 = vrot.lane.b32.xlu0 %v3265, 42
        %v3274 = vpop.permute.xlu0 %3273
        %v3275 = vsel %vm1301, %v3270, %v3272
        %v3276 = vsel %vm1301, %v3272, %v3274
        %3279 = vst [vmem:[#allocation3 + $0x510] sm:$0xf] %v3275
        %3280 = vst.msk [vmem:[#allocation3 + $0x518] sm:$0xf] %vm686, %v3276
        %v3281 = vld [vmem:[#allocation2 + $0x8] sm:$0xff]
        %v3282 = vld [vmem:[#allocation2 + $0x10] sm:$0xf]
        %v3285 = vcombine.low %v3281, %v3281
        %v3286 = vcombine.low %v3282, %v3282
        %3287 = vrot.lane.b32.xlu0 %v3285, 41
        %v3288 = vpop.permute.xlu0 %3287
        %3289 = vrot.lane.b32.xlu0 %v3281, 41
        %v3290 = vpop.permute.xlu0 %3289
        %3291 = vrot.lane.b32.xlu0 %v3286, 41
        %v3292 = vpop.permute.xlu0 %3291
        %v3293 = vsel %vm1319, %v3288, %v3290
        %v3294 = vsel %vm1319, %v3290, %v3292
        %3297 = vst [vmem:[#allocation3 + $0x510] sm:$0xf0] %v3293
        %3298 = vst.msk [vmem:[#allocation3 + $0x518] sm:$0xf0] %vm700, %v3294
        %v3299 = vld [vmem:[#allocation2 + $0x8] sm:$0xff]
        %v3300 = vld [vmem:[#allocation2 + $0x10] sm:$0xf]
        %v3303 = vcombine.high %v3299, %v3299
        %3304 = vrot.lane.b32.xlu0 %v3299, 40
        %v3305 = vpop.permute.xlu0 %3304
        %3306 = vrot.lane.b32.xlu0 %v3303, 40
        %v3307 = vpop.permute.xlu0 %3306
        %3308 = vrot.lane.b32.xlu0 %v3300, 40
        %v3309 = vpop.permute.xlu0 %3308
        %v3310 = vsel %vm1338, %v3305, %v3307
        %v3311 = vsel %vm1338, %v3307, %v3309
        %3314 = vst [vmem:[#allocation3 + $0x520] sm:$0xf] %v3310
        %3315 = vst.msk [vmem:[#allocation3 + $0x528] sm:$0xf] %vm686, %v3311
        %v3316 = vld [vmem:[#allocation2 + $0x8] sm:$0xff]
        %v3317 = vld [vmem:[#allocation2 + $0x10] sm:$0xf]
        %v3320 = vcombine.low %v3316, %v3316
        %v3321 = vcombine.low %v3317, %v3317
        %3322 = vrot.lane.b32.xlu0 %v3320, 39
        %v3323 = vpop.permute.xlu0 %3322
        %3324 = vrot.lane.b32.xlu0 %v3316, 39
        %v3325 = vpop.permute.xlu0 %3324
        %3326 = vrot.lane.b32.xlu0 %v3321, 39
        %v3327 = vpop.permute.xlu0 %3326
        %v3328 = vsel %vm1356, %v3323, %v3325
        %v3329 = vsel %vm1356, %v3325, %v3327
        %3332 = vst [vmem:[#allocation3 + $0x520] sm:$0xf0] %v3328
        %3333 = vst.msk [vmem:[#allocation3 + $0x528] sm:$0xf0] %vm700, %v3329
        %v3334 = vld [vmem:[#allocation2 + $0x8] sm:$0xff]
        %v3335 = vld [vmem:[#allocation2 + $0x10] sm:$0xf]
        %v3338 = vcombine.high %v3334, %v3334
        %3339 = vrot.lane.b32.xlu0 %v3334, 38
        %v3340 = vpop.permute.xlu0 %3339
        %3341 = vrot.lane.b32.xlu0 %v3338, 38
        %v3342 = vpop.permute.xlu0 %3341
        %3343 = vrot.lane.b32.xlu0 %v3335, 38
        %v3344 = vpop.permute.xlu0 %3343
        %v3345 = vsel %vm1375, %v3340, %v3342
        %v3346 = vsel %vm1375, %v3342, %v3344
        %3349 = vst [vmem:[#allocation3 + $0x530] sm:$0xf] %v3345
        %3350 = vst.msk [vmem:[#allocation3 + $0x538] sm:$0xf] %vm686, %v3346
        %v3351 = vld [vmem:[#allocation2 + $0x8] sm:$0xff]
        %v3352 = vld [vmem:[#allocation2 + $0x10] sm:$0xf]
        %v3355 = vcombine.low %v3351, %v3351
        %v3356 = vcombine.low %v3352, %v3352
        %3357 = vrot.lane.b32.xlu0 %v3355, 37
        %v3358 = vpop.permute.xlu0 %3357
        %3359 = vrot.lane.b32.xlu0 %v3351, 37
        %v3360 = vpop.permute.xlu0 %3359
        %3361 = vrot.lane.b32.xlu0 %v3356, 37
        %v3362 = vpop.permute.xlu0 %3361
        %v3363 = vsel %vm1393, %v3358, %v3360
        %v3364 = vsel %vm1393, %v3360, %v3362
        %3367 = vst [vmem:[#allocation3 + $0x530] sm:$0xf0] %v3363
        %3368 = vst.msk [vmem:[#allocation3 + $0x538] sm:$0xf0] %vm700, %v3364
        %v3369 = vld [vmem:[#allocation2 + $0x8] sm:$0xff]
        %v3370 = vld [vmem:[#allocation2 + $0x10] sm:$0xf]
        %v3373 = vcombine.high %v3369, %v3369
        %3374 = vrot.lane.b32.xlu0 %v3369, 36
        %v3375 = vpop.permute.xlu0 %3374
        %3376 = vrot.lane.b32.xlu0 %v3373, 36
        %v3377 = vpop.permute.xlu0 %3376
        %3378 = vrot.lane.b32.xlu0 %v3370, 36
        %v3379 = vpop.permute.xlu0 %3378
        %v3380 = vsel %vm1412, %v3375, %v3377
        %v3381 = vsel %vm1412, %v3377, %v3379
        %3384 = vst [vmem:[#allocation3 + $0x540] sm:$0xf] %v3380
        %3385 = vst.msk [vmem:[#allocation3 + $0x548] sm:$0xf] %vm686, %v3381
        %v3386 = vld [vmem:[%s175] sm:$0xff]
        %v3387 = vld [vmem:[%s175 + $0x8] sm:$0xff]
        %v3388 = vld [vmem:[%s175 + $0x10] sm:$0xff]
        %v3389 = vld [vmem:[#allocation3] sm:$0xff]
        %v3390 = vld [vmem:[#allocation3 + $0x8] sm:$0xff]
        %v3391 = vld [vmem:[#allocation3 + $0x10] sm:$0xff]
        %v3392 = vld [vmem:[#allocation3 + $0x18] sm:$0xff]
        %v3393 = vld [vmem:[#allocation3 + $0x20] sm:$0xff]
        %v3394 = vld [vmem:[#allocation3 + $0x28] sm:$0xff]
        %v3395 = vld [vmem:[#allocation3 + $0x30] sm:$0xff]
        %v3396 = vld [vmem:[#allocation3 + $0x38] sm:$0xff]
        %v3397 = vld [vmem:[#allocation3 + $0x40] sm:$0xff]
        %v3398 = vld [vmem:[#allocation3 + $0x48] sm:$0xff]
        %v3399 = vld [vmem:[#allocation3 + $0x50] sm:$0xff]
        %v3400 = vld [vmem:[#allocation3 + $0x58] sm:$0xff]
        %v3401 = vld [vmem:[#allocation3 + $0x60] sm:$0xff]
        %v3402 = vld [vmem:[#allocation3 + $0x68] sm:$0xff]
        %v3403 = vld [vmem:[#allocation3 + $0x70] sm:$0xff]
        %v3404 = vld [vmem:[#allocation3 + $0x78] sm:$0xff]
        %v3405 = vld [vmem:[#allocation3 + $0x80] sm:$0xff]
        %v3406 = vld [vmem:[#allocation3 + $0x88] sm:$0xff]
        %v3407 = vld [vmem:[#allocation3 + $0x90] sm:$0xff]
        %v3408 = vld [vmem:[#allocation3 + $0x98] sm:$0xff]
        %v3409 = vld [vmem:[#allocation3 + $0xa0] sm:$0xff]
        %v3410 = vld [vmem:[#allocation3 + $0xa8] sm:$0xff]
        %v3411 = vld [vmem:[#allocation3 + $0xb0] sm:$0xff]
        %v3412 = vld [vmem:[#allocation3 + $0xb8] sm:$0xff]
        %v3413 = vld [vmem:[#allocation3 + $0xc0] sm:$0xff]
        %v3414 = vld [vmem:[#allocation3 + $0xc8] sm:$0xff]
        %v3415 = vld [vmem:[#allocation3 + $0xd0] sm:$0xff]
        %v3416 = vld [vmem:[#allocation3 + $0xd8] sm:$0xff]
        %v3417 = vld [vmem:[#allocation3 + $0xe0] sm:$0xff]
        %v3418 = vld [vmem:[#allocation3 + $0xe8] sm:$0xff]
        %v3419 = vld [vmem:[#allocation3 + $0xf0] sm:$0xff]
        %v3420 = vld [vmem:[#allocation3 + $0xf8] sm:$0xff]
        %v3421 = vld [vmem:[#allocation3 + $0x100] sm:$0xff]
        %v3422 = vld [vmem:[#allocation3 + $0x108] sm:$0xff]
        %v3423 = vld [vmem:[#allocation3 + $0x110] sm:$0xff]
        %v3424 = vld [vmem:[#allocation3 + $0x118] sm:$0xff]
        %v3425 = vld [vmem:[#allocation3 + $0x120] sm:$0xff]
        %v3426 = vld [vmem:[#allocation3 + $0x128] sm:$0xff]
        %v3427 = vld [vmem:[#allocation3 + $0x130] sm:$0xff]
        %v3428 = vld [vmem:[#allocation3 + $0x138] sm:$0xff]
        %v3429 = vld [vmem:[#allocation3 + $0x140] sm:$0xff]
        %v3430 = vld [vmem:[#allocation3 + $0x148] sm:$0xff]
        %v3431 = vld [vmem:[#allocation3 + $0x150] sm:$0xff]
        %v3432 = vld [vmem:[#allocation3 + $0x158] sm:$0xff]
        %v3433 = vld [vmem:[#allocation3 + $0x160] sm:$0xff]
        %v3434 = vld [vmem:[#allocation3 + $0x168] sm:$0xff]
        %v3435 = vld [vmem:[#allocation3 + $0x170] sm:$0xff]
        %v3436 = vld [vmem:[#allocation3 + $0x178] sm:$0xff]
        %v3437 = vld [vmem:[#allocation3 + $0x180] sm:$0xff]
        %v3438 = vld [vmem:[#allocation3 + $0x188] sm:$0xff]
        %v3439 = vld [vmem:[#allocation3 + $0x190] sm:$0xff]
        %v3440 = vld [vmem:[#allocation3 + $0x198] sm:$0xff]
        %v3441 = vld [vmem:[#allocation3 + $0x1a0] sm:$0xff]
        %v3442 = vld [vmem:[#allocation3 + $0x1a8] sm:$0xff]
        %v3443 = vld [vmem:[#allocation3 + $0x1b0] sm:$0xff]
        %v3444 = vld [vmem:[#allocation3 + $0x1b8] sm:$0xff]
        %v3445 = vld [vmem:[#allocation3 + $0x1c0] sm:$0xff]
        %v3446 = vld [vmem:[#allocation3 + $0x1c8] sm:$0xff]
        %v3447 = vld [vmem:[#allocation3 + $0x1d0] sm:$0xff]
        %v3448 = vld [vmem:[#allocation3 + $0x1d8] sm:$0xff]
        %v3449 = vld [vmem:[#allocation3 + $0x1e0] sm:$0xff]
        %v3450 = vld [vmem:[#allocation3 + $0x1e8] sm:$0xff]
        %v3451 = vld [vmem:[#allocation3 + $0x1f0] sm:$0xff]
        %v3452 = vld [vmem:[#allocation3 + $0x1f8] sm:$0xff]
        %v3453 = vld [vmem:[#allocation3 + $0x200] sm:$0xff]
        %v3454 = vld [vmem:[#allocation3 + $0x208] sm:$0xff]
        %v3455 = vld [vmem:[#allocation3 + $0x210] sm:$0xff]
        %v3456 = vld [vmem:[#allocation3 + $0x218] sm:$0xff]
        %v3457 = vld [vmem:[#allocation3 + $0x220] sm:$0xff]
        %v3458 = vld [vmem:[#allocation3 + $0x228] sm:$0xff]
        %v3459 = vld [vmem:[#allocation3 + $0x230] sm:$0xff]
        %v3460 = vld [vmem:[#allocation3 + $0x238] sm:$0xff]
        %v3461 = vld [vmem:[#allocation3 + $0x240] sm:$0xff]
        %v3462 = vld [vmem:[#allocation3 + $0x248] sm:$0xff]
        %v3463 = vld [vmem:[#allocation3 + $0x250] sm:$0xff]
        %v3464 = vld [vmem:[#allocation3 + $0x258] sm:$0xff]
        %v3465 = vld [vmem:[#allocation3 + $0x260] sm:$0xff]
        %v3466 = vld [vmem:[#allocation3 + $0x268] sm:$0xff]
        %v3467 = vld [vmem:[#allocation3 + $0x270] sm:$0xff]
        %v3468 = vld [vmem:[#allocation3 + $0x278] sm:$0xff]
        %v3469 = vld [vmem:[#allocation3 + $0x280] sm:$0xff]
        %v3470 = vld [vmem:[#allocation3 + $0x288] sm:$0xff]
        %v3471 = vld [vmem:[#allocation3 + $0x290] sm:$0xff]
        %v3472 = vld [vmem:[#allocation3 + $0x298] sm:$0xff]
        %v3473 = vld [vmem:[#allocation3 + $0x2a0] sm:$0xff]
        %v3474 = vld [vmem:[#allocation3 + $0x2a8] sm:$0xff]
        %v3475 = vld [vmem:[#allocation3 + $0x2b0] sm:$0xff]
        %v3476 = vld [vmem:[#allocation3 + $0x2b8] sm:$0xff]
        %v3477 = vld [vmem:[#allocation3 + $0x2c0] sm:$0xff]
        %v3478 = vld [vmem:[#allocation3 + $0x2c8] sm:$0xff]
        %v3479 = vld [vmem:[#allocation3 + $0x2d0] sm:$0xff]
        %v3480 = vld [vmem:[#allocation3 + $0x2d8] sm:$0xff]
        %v3481 = vld [vmem:[#allocation3 + $0x2e0] sm:$0xff]
        %v3482 = vld [vmem:[#allocation3 + $0x2e8] sm:$0xff]
        %v3483 = vld [vmem:[#allocation3 + $0x2f0] sm:$0xff]
        %v3484 = vld [vmem:[#allocation3 + $0x2f8] sm:$0xff]
        %v3485 = vld [vmem:[#allocation3 + $0x300] sm:$0xff]
        %v3486 = vld [vmem:[#allocation3 + $0x308] sm:$0xff]
        %v3487 = vld [vmem:[#allocation3 + $0x310] sm:$0xff]
        %v3488 = vld [vmem:[#allocation3 + $0x318] sm:$0xff]
        %v3489 = vld [vmem:[#allocation3 + $0x320] sm:$0xff]
        %v3490 = vld [vmem:[#allocation3 + $0x328] sm:$0xff]
        %v3491 = vld [vmem:[#allocation3 + $0x330] sm:$0xff]
        %v3492 = vld [vmem:[#allocation3 + $0x338] sm:$0xff]
        %v3493 = vld [vmem:[#allocation3 + $0x340] sm:$0xff]
        %v3494 = vld [vmem:[#allocation3 + $0x348] sm:$0xff]
        %v3495 = vld [vmem:[#allocation3 + $0x350] sm:$0xff]
        %v3496 = vld [vmem:[#allocation3 + $0x358] sm:$0xff]
        %v3497 = vld [vmem:[#allocation3 + $0x360] sm:$0xff]
        %v3498 = vld [vmem:[#allocation3 + $0x368] sm:$0xff]
        %v3499 = vld [vmem:[#allocation3 + $0x370] sm:$0xff]
        %v3500 = vld [vmem:[#allocation3 + $0x378] sm:$0xff]
        %v3501 = vld [vmem:[#allocation3 + $0x380] sm:$0xff]
        %v3502 = vld [vmem:[#allocation3 + $0x388] sm:$0xff]
        %v3503 = vld [vmem:[#allocation3 + $0x390] sm:$0xff]
        %v3504 = vld [vmem:[#allocation3 + $0x398] sm:$0xff]
        %v3505 = vld [vmem:[#allocation3 + $0x3a0] sm:$0xff]
        %v3506 = vld [vmem:[#allocation3 + $0x3a8] sm:$0xff]
        %v3507 = vld [vmem:[#allocation3 + $0x3b0] sm:$0xff]
        %v3508 = vld [vmem:[#allocation3 + $0x3b8] sm:$0xff]
        %v3509 = vld [vmem:[#allocation3 + $0x3c0] sm:$0xff]
        %v3510 = vld [vmem:[#allocation3 + $0x3c8] sm:$0xff]
        %v3511 = vld [vmem:[#allocation3 + $0x3d0] sm:$0xff]
        %v3512 = vld [vmem:[#allocation3 + $0x3d8] sm:$0xff]
        %v3513 = vld [vmem:[#allocation3 + $0x3e0] sm:$0xff]
        %v3514 = vld [vmem:[#allocation3 + $0x3e8] sm:$0xff]
        %v3515 = vld [vmem:[#allocation3 + $0x3f0] sm:$0xff]
        %v3516 = vld [vmem:[#allocation3 + $0x3f8] sm:$0xff]
        %v3517 = vld [vmem:[#allocation3 + $0x400] sm:$0xff]
        %v3518 = vld [vmem:[#allocation3 + $0x408] sm:$0xff]
        %v3519 = vld [vmem:[#allocation3 + $0x410] sm:$0xff]
        %v3520 = vld [vmem:[#allocation3 + $0x418] sm:$0xff]
        %v3521 = vld [vmem:[#allocation3 + $0x420] sm:$0xff]
        %v3522 = vld [vmem:[#allocation3 + $0x428] sm:$0xff]
        %v3523 = vld [vmem:[#allocation3 + $0x430] sm:$0xff]
        %v3524 = vld [vmem:[#allocation3 + $0x438] sm:$0xff]
        %v3525 = vld [vmem:[#allocation3 + $0x440] sm:$0xff]
        %v3526 = vld [vmem:[#allocation3 + $0x448] sm:$0xff]
        %v3527 = vld [vmem:[#allocation3 + $0x450] sm:$0xff]
        %v3528 = vld [vmem:[#allocation3 + $0x458] sm:$0xff]
        %v3529 = vld [vmem:[#allocation3 + $0x460] sm:$0xff]
        %v3530 = vld [vmem:[#allocation3 + $0x468] sm:$0xff]
        %v3531 = vld [vmem:[#allocation3 + $0x470] sm:$0xff]
        %v3532 = vld [vmem:[#allocation3 + $0x478] sm:$0xff]
        %v3533 = vld [vmem:[#allocation3 + $0x480] sm:$0xff]
        %v3534 = vld [vmem:[#allocation3 + $0x488] sm:$0xff]
        %v3535 = vld [vmem:[#allocation3 + $0x490] sm:$0xff]
        %v3536 = vld [vmem:[#allocation3 + $0x498] sm:$0xff]
        %v3537 = vld [vmem:[#allocation3 + $0x4a0] sm:$0xff]
        %v3538 = vld [vmem:[#allocation3 + $0x4a8] sm:$0xff]
        %v3539 = vld [vmem:[#allocation3 + $0x4b0] sm:$0xff]
        %v3540 = vld [vmem:[#allocation3 + $0x4b8] sm:$0xff]
        %v3541 = vld [vmem:[#allocation3 + $0x4c0] sm:$0xff]
        %v3542 = vld [vmem:[#allocation3 + $0x4c8] sm:$0xff]
        %v3543 = vld [vmem:[#allocation3 + $0x4d0] sm:$0xff]
        %v3544 = vld [vmem:[#allocation3 + $0x4d8] sm:$0xff]
        %v3545 = vld [vmem:[#allocation3 + $0x4e0] sm:$0xff]
        %v3546 = vld [vmem:[#allocation3 + $0x4e8] sm:$0xff]
        %v3547 = vld [vmem:[#allocation3 + $0x4f0] sm:$0xff]
        %v3548 = vld [vmem:[#allocation3 + $0x4f8] sm:$0xff]
        %v3549 = vld [vmem:[#allocation3 + $0x500] sm:$0xff]
        %v3550 = vld [vmem:[#allocation3 + $0x508] sm:$0xff]
        %v3551 = vld [vmem:[#allocation3 + $0x510] sm:$0xff]
        %v3552 = vld [vmem:[#allocation3 + $0x518] sm:$0xff]
        %v3553 = vld [vmem:[#allocation3 + $0x520] sm:$0xff]
        %v3554 = vld [vmem:[#allocation3 + $0x528] sm:$0xff]
        %v3555 = vld [vmem:[#allocation3 + $0x530] sm:$0xff]
        %v3556 = vld [vmem:[#allocation3 + $0x538] sm:$0xff]
        %v3557 = vld [vmem:[#allocation3 + $0x540] sm:$0xf]
        %v3558 = vld [vmem:[#allocation3 + $0x548] sm:$0xf]
        %v3562 = vcombine.high %v3386, %v3386
        %v3563 = vcombine.high %v3387, %v3387
        %v3564 = vcombine.high %v3388, %v3388
        %v3567 = vsel %vm1412, %v3564, 0
        %vm3569 = vcmask 1043456
        %v3571 = vsel %vm3569, %v3557, 0
        %v3574 = vsel %vm3569, %v3558, 0
        %3576 = vmatprep.subr.mxu0 %v3420
        %3577 = vmatpush1.msra.mxu0 %v3419
        %3578 = vmatprep.subr.mxu0 %v3418
        %3579 = vmatpush1.msra.mxu0 %v3417
        %3580 = vmatprep.subr.mxu0 %v3416
        %3581 = vmatpush1.msra.mxu0 %v3415
        %3582 = vmatprep.subr.mxu0 %v3414
        %3583 = vmatpush1.msra.mxu0 %v3413
        %3584 = vmatprep.subr.mxu0 %v3412
        %3585 = vmatpush1.msra.mxu0 %v3411
        %3586 = vmatprep.subr.mxu0 %v3410
        %3587 = vmatpush1.msra.mxu0 %v3409
        %3588 = vmatprep.subr.mxu0 %v3408
        %3589 = vmatpush1.msra.mxu0 %v3407
        %3590 = vmatprep.subr.mxu0 %v3406
        %3591 = vmatpush1.msra.mxu0 %v3405
        %3592 = vmatprep.subr.mxu0 %v3404
        %3593 = vmatpush1.msra.mxu0 %v3403
        %3594 = vmatprep.subr.mxu0 %v3402
        %3595 = vmatpush1.msra.mxu0 %v3401
        %3596 = vmatprep.subr.mxu0 %v3400
        %3597 = vmatpush1.msra.mxu0 %v3399
        %3598 = vmatprep.subr.mxu0 %v3398
        %3599 = vmatpush1.msra.mxu0 %v3397
        %3600 = vmatprep.subr.mxu0 %v3396
        %3601 = vmatpush1.msra.mxu0 %v3395
        %3602 = vmatprep.subr.mxu0 %v3394
        %3603 = vmatpush1.msra.mxu0 %v3393
        %3604 = vmatprep.subr.mxu0 %v3392
        %3605 = vmatpush1.msra.mxu0 %v3391
        %3606 = vmatprep.subr.mxu0 %v3390
        %3607 = vmatpush1.msra.mxu0 %v3389
        %3608 = vmatprep.subr.mxu0 %v3452
        %3609 = vmatpush2.msra.mxu0 %v3451
        %3610 = vmatprep.subr.mxu0 %v3450
        %3611 = vmatpush2.msra.mxu0 %v3449
        %3612 = vmatprep.subr.mxu0 %v3448
        %3613 = vmatpush2.msra.mxu0 %v3447
        %3614 = vmatprep.subr.mxu0 %v3446
        %3615 = vmatpush2.msra.mxu0 %v3445
        %3616 = vmatprep.subr.mxu0 %v3444
        %3617 = vmatpush2.msra.mxu0 %v3443
        %3618 = vmatprep.subr.mxu0 %v3442
        %3619 = vmatpush2.msra.mxu0 %v3441
        %3620 = vmatprep.subr.mxu0 %v3440
        %3621 = vmatpush2.msra.mxu0 %v3439
        %3622 = vmatprep.subr.mxu0 %v3438
        %3623 = vmatpush2.msra.mxu0 %v3437
        %3624 = vmatprep.subr.mxu0 %v3436
        %3625 = vmatpush2.msra.mxu0 %v3435
        %3626 = vmatprep.subr.mxu0 %v3434
        %3627 = vmatpush2.msra.mxu0 %v3433
        %3628 = vmatprep.subr.mxu0 %v3432
        %3629 = vmatpush2.msra.mxu0 %v3431
        %3630 = vmatprep.subr.mxu0 %v3430
        %3631 = vmatpush2.msra.mxu0 %v3429
        %3632 = vmatprep.subr.mxu0 %v3428
        %3633 = vmatpush2.msra.mxu0 %v3427
        %3634 = vmatprep.subr.mxu0 %v3426
        %3635 = vmatpush2.msra.mxu0 %v3425
        %3636 = vmatprep.subr.mxu0 %v3424
        %3637 = vmatpush2.msra.mxu0 %v3423
        %3638 = vmatprep.subr.mxu0 %v3422
        %3639 = vmatpush2.msra.mxu0 %v3421
        %3640 = vmatprep.mubr.f32.mxu0 %v3562
        %3641 = vmatmul.mubr.f32.gmra.mxu0 %v3386
        %v3642 = vpop.f32.mrf.mxu0
        %v3643 = vadd.f32 0.0, %v3642
        %v3644 = vpop.f32.mrf.mxu0
        %v3645 = vadd.f32 0.0, %v3644
        %3646 = vdwg.mxu0
        %3647 = vmatprep.subr.mxu0 %v3484
        %3648 = vmatpush1.msra.mxu0 %v3483
        %3649 = vmatprep.subr.mxu0 %v3482
        %3650 = vmatpush1.msra.mxu0 %v3481
        %3651 = vmatprep.subr.mxu0 %v3480
        %3652 = vmatpush1.msra.mxu0 %v3479
        %3653 = vmatprep.subr.mxu0 %v3478
        %3654 = vmatpush1.msra.mxu0 %v3477
        %3655 = vmatprep.subr.mxu0 %v3476
        %3656 = vmatpush1.msra.mxu0 %v3475
        %3657 = vmatprep.subr.mxu0 %v3474
        %3658 = vmatpush1.msra.mxu0 %v3473
        %3659 = vmatprep.subr.mxu0 %v3472
        %3660 = vmatpush1.msra.mxu0 %v3471
        %3661 = vmatprep.subr.mxu0 %v3470
        %3662 = vmatpush1.msra.mxu0 %v3469
        %3663 = vmatprep.subr.mxu0 %v3468
        %3664 = vmatpush1.msra.mxu0 %v3467
        %3665 = vmatprep.subr.mxu0 %v3466
        %3666 = vmatpush1.msra.mxu0 %v3465
        %3667 = vmatprep.subr.mxu0 %v3464
        %3668 = vmatpush1.msra.mxu0 %v3463
        %3669 = vmatprep.subr.mxu0 %v3462
        %3670 = vmatpush1.msra.mxu0 %v3461
        %3671 = vmatprep.subr.mxu0 %v3460
        %3672 = vmatpush1.msra.mxu0 %v3459
        %3673 = vmatprep.subr.mxu0 %v3458
        %3674 = vmatpush1.msra.mxu0 %v3457
        %3675 = vmatprep.subr.mxu0 %v3456
        %3676 = vmatpush1.msra.mxu0 %v3455
        %3677 = vmatprep.subr.mxu0 %v3454
        %3678 = vmatpush1.msra.mxu0 %v3453
        %3679 = vmatprep.subr.mxu0 %v3516
        %3680 = vmatpush2.msra.mxu0 %v3515
        %3681 = vmatprep.subr.mxu0 %v3514
        %3682 = vmatpush2.msra.mxu0 %v3513
        %3683 = vmatprep.subr.mxu0 %v3512
        %3684 = vmatpush2.msra.mxu0 %v3511
        %3685 = vmatprep.subr.mxu0 %v3510
        %3686 = vmatpush2.msra.mxu0 %v3509
        %3687 = vmatprep.subr.mxu0 %v3508
        %3688 = vmatpush2.msra.mxu0 %v3507
        %3689 = vmatprep.subr.mxu0 %v3506
        %3690 = vmatpush2.msra.mxu0 %v3505
        %3691 = vmatprep.subr.mxu0 %v3504
        %3692 = vmatpush2.msra.mxu0 %v3503
        %3693 = vmatprep.subr.mxu0 %v3502
        %3694 = vmatpush2.msra.mxu0 %v3501
        %3695 = vmatprep.subr.mxu0 %v3500
        %3696 = vmatpush2.msra.mxu0 %v3499
        %3697 = vmatprep.subr.mxu0 %v3498
        %3698 = vmatpush2.msra.mxu0 %v3497
        %3699 = vmatprep.subr.mxu0 %v3496
        %3700 = vmatpush2.msra.mxu0 %v3495
        %3701 = vmatprep.subr.mxu0 %v3494
        %3702 = vmatpush2.msra.mxu0 %v3493
        %3703 = vmatprep.subr.mxu0 %v3492
        %3704 = vmatpush2.msra.mxu0 %v3491
        %3705 = vmatprep.subr.mxu0 %v3490
        %3706 = vmatpush2.msra.mxu0 %v3489
        %3707 = vmatprep.subr.mxu0 %v3488
        %3708 = vmatpush2.msra.mxu0 %v3487
        %3709 = vmatprep.subr.mxu0 %v3486
        %3710 = vmatpush2.msra.mxu0 %v3485
        %3711 = vmatprep.mubr.f32.mxu0 %v3563
        %3712 = vmatmul.mubr.f32.gmra.mxu0 %v3387
        %v3713 = vpop.f32.mrf.mxu0
        %v3714 = vadd.f32 %v3643, %v3713
        %v3715 = vpop.f32.mrf.mxu0
        %v3716 = vadd.f32 %v3645, %v3715
        %3717 = vdwg.mxu0
        %3718 = vmatprep.subr.mxu0 %v3548
        %3719 = vmatpush1.msra.mxu0 %v3547
        %3720 = vmatprep.subr.mxu0 %v3546
        %3721 = vmatpush1.msra.mxu0 %v3545
        %3722 = vmatprep.subr.mxu0 %v3544
        %3723 = vmatpush1.msra.mxu0 %v3543
        %3724 = vmatprep.subr.mxu0 %v3542
        %3725 = vmatpush1.msra.mxu0 %v3541
        %3726 = vmatprep.subr.mxu0 %v3540
        %3727 = vmatpush1.msra.mxu0 %v3539
        %3728 = vmatprep.subr.mxu0 %v3538
        %3729 = vmatpush1.msra.mxu0 %v3537
        %3730 = vmatprep.subr.mxu0 %v3536
        %3731 = vmatpush1.msra.mxu0 %v3535
        %3732 = vmatprep.subr.mxu0 %v3534
        %3733 = vmatpush1.msra.mxu0 %v3533
        %3734 = vmatprep.subr.mxu0 %v3532
        %3735 = vmatpush1.msra.mxu0 %v3531
        %3736 = vmatprep.subr.mxu0 %v3530
        %3737 = vmatpush1.msra.mxu0 %v3529
        %3738 = vmatprep.subr.mxu0 %v3528
        %3739 = vmatpush1.msra.mxu0 %v3527
        %3740 = vmatprep.subr.mxu0 %v3526
        %3741 = vmatpush1.msra.mxu0 %v3525
        %3742 = vmatprep.subr.mxu0 %v3524
        %3743 = vmatpush1.msra.mxu0 %v3523
        %3744 = vmatprep.subr.mxu0 %v3522
        %3745 = vmatpush1.msra.mxu0 %v3521
        %3746 = vmatprep.subr.mxu0 %v3520
        %3747 = vmatpush1.msra.mxu0 %v3519
        %3748 = vmatprep.subr.mxu0 %v3518
        %3749 = vmatpush1.msra.mxu0 %v3517
        %3750 = vmatprep.subr.mxu0 0.0
        %3751 = vmatpush2.msra.mxu0 0.0
        %3752 = vmatprep.subr.mxu0 0.0
        %3753 = vmatpush2.msra.mxu0 0.0
        %3754 = vmatprep.subr.mxu0 0.0
        %3755 = vmatpush2.msra.mxu0 0.0
        %3756 = vmatprep.subr.mxu0 0.0
        %3757 = vmatpush2.msra.mxu0 0.0
        %3758 = vmatprep.subr.mxu0 0.0
        %3759 = vmatpush2.msra.mxu0 0.0
        %3760 = vmatprep.subr.mxu0 0.0
        %3761 = vmatpush2.msra.mxu0 0.0
        %3762 = vmatprep.subr.mxu0 0.0
        %3763 = vmatpush2.msra.mxu0 0.0
        %3764 = vmatprep.subr.mxu0 0.0
        %3765 = vmatpush2.msra.mxu0 0.0
        %3766 = vmatprep.subr.mxu0 0.0
        %3767 = vmatpush2.msra.mxu0 0.0
        %3768 = vmatprep.subr.mxu0 0.0
        %3769 = vmatpush2.msra.mxu0 0.0
        %3770 = vmatprep.subr.mxu0 0.0
        %3771 = vmatpush2.msra.mxu0 0.0
        %3772 = vmatprep.subr.mxu0 %v3574
        %3773 = vmatpush2.msra.mxu0 %v3571
        %3774 = vmatprep.subr.mxu0 %v3556
        %3775 = vmatpush2.msra.mxu0 %v3555
        %3776 = vmatprep.subr.mxu0 %v3554
        %3777 = vmatpush2.msra.mxu0 %v3553
        %3778 = vmatprep.subr.mxu0 %v3552
        %3779 = vmatpush2.msra.mxu0 %v3551
        %3780 = vmatprep.subr.mxu0 %v3550
        %3781 = vmatpush2.msra.mxu0 %v3549
        %3782 = vmatprep.mubr.f32.mxu0 %v3567
        %3783 = vmatmul.mubr.f32.gmra.mxu0 %v3388
        %v3784 = vpop.f32.mrf.mxu0
        %v3785 = vadd.f32 %v3714, %v3784
        %v3786 = vpop.f32.mrf.mxu0
        %v3787 = vadd.f32 %v3716, %v3786
        %3788 = vdwg.mxu0
        %vm3789 = vcmask 125952
        %3790 = vst.msk [vmem:[%s165] sm:$0xf] %vm3789, %v3785
        %3792 = vrot.lane.b32.xlu0 %v3785, 116
        %v3793 = vpop.permute.xlu0 %3792
        %vm3795 = vcmask 257152
        %3796 = vst.msk [vmem:[%s165] sm:$0xf] %vm3795, %v3793
        %3797 = vrot.lane.b32.xlu0 %v3785, 104
        %v3798 = vpop.permute.xlu0 %3797
        %vm3800 = vcmask 388352
        %3801 = vst.msk [vmem:[%s165] sm:$0xf] %vm3800, %v3798
        %3802 = vrot.lane.b32.xlu0 %v3785, 92
        %v3803 = vpop.permute.xlu0 %3802
        %vm3805 = vcmask 519552
        %3806 = vst.msk [vmem:[%s165] sm:$0xf] %vm3805, %v3803
        %3807 = vrot.lane.b32.xlu0 %v3785, 80
        %v3808 = vpop.permute.xlu0 %3807
        %vm3810 = vcmask 650752
        %3811 = vst.msk [vmem:[%s165] sm:$0xf] %vm3810, %v3808
        %3813 = vrot.lane.b32.xlu0 %v3787, 68
        %v3814 = vpop.permute.xlu0 %3813
        %vm3816 = vcmask 781952
        %3817 = vst.msk [vmem:[%s165] sm:$0xf] %vm3816, %v3814
        %3818 = vrot.lane.b32.xlu0 %v3787, 56
        %v3819 = vpop.permute.xlu0 %3818
        %vm3821 = vcmask 913152
        %3822 = vst.msk [vmem:[%s165] sm:$0xf] %vm3821, %v3819
        %3823 = vrot.lane.b32.xlu0 %v3787, 44
        %v3824 = vpop.permute.xlu0 %3823
        %vm3826 = vcmask 1044352
        %3827 = vst.msk [vmem:[%s165] sm:$0xf] %vm3826, %v3824
        %s3828 = sand.u32 %s90, 1
        %s3829 = scalar_lea.sflag [#allocation5], %s3828
        %s3830 = sand.u32 %s90, 1
        %s3831 = smul.addr %s3830, 4
        %s3832 = scalar_lea.vmem [#allocation4], %s3831
        // Predicated region
        $region29: #{tpu_custom_call.1} parent=27 // pred_check
          %p3833 = pneg %p100
        $region30: #{tpu_custom_call.1} parent=27 // pred_check_branch
          %3835 = sbr.rel (%p3833) target = $region32
        $region31: #{tpu_custom_call.1} parent=27 // pred_region
          %s3837 = ssub.s32 64, 64
          %3838 = vsyncadd %s3829, %s3837
          %s3839 = smul.addr %s20, 2
          %s3840 = sadd.s32 %s21, %s3839
          %s3841 = smul.addr %s3840, 64
          %s3842 = scalar_lea.hbm %s2, %s3841
          %s3844 = sshll.u32 %s3832, 4
          %s3845 = int_to_ptr.vmem [resolvable:$true] %s3844
          %3847 = dma.vmem_to_hbm [thread:$0]  %s3845, 64, %s3842, %s3829
        $region32: #{tpu_custom_call.1} parent=27 // pred_fallthru
          _
      $region28: #{tpu_custom_call.1} parent=5 // pred_fallthru
        _
      %p3848 = scmp.le.s32.totalorder 2, %s11
      // Predicated region
      $region33: #{tpu_custom_call.1} parent=5 // pred_check
        %p3849 = pneg %p3848
      $region34: #{tpu_custom_call.1} parent=5 // pred_check_branch
        %3851 = sbr.rel (%p3849) target = $region36
      $region35: #{tpu_custom_call.1} parent=5 // pred_region
        %s3852 = ssub.s32 %s11, 2
        // Predicated region
        $region37: #{tpu_custom_call.1} parent=35 // pred_check
          %p3853 = pneg %p106
        $region38: #{tpu_custom_call.1} parent=35 // pred_check_branch
          %3855 = sbr.rel (%p3853) target = $region40
        $region39: #{tpu_custom_call.1} parent=35 // pred_region
          %s3856 = sand.u32 %s91, 1
          %s3857 = scalar_lea.sflag [#allocation5], %s3856
          %s3858 = sand.u32 %s91, 1
          %s3859 = smul.addr %s3858, 4
          %s3860 = scalar_lea.vmem [#allocation4], %s3859
          %3861 = dma.done %s3857, 64
        $region40: #{tpu_custom_call.1} parent=35 // pred_fallthru
          _
      $region36: #{tpu_custom_call.1} parent=5 // pred_fallthru
        _
    $region6: #{tpu_custom_call.1} parent=1 // loop_footer
      %s15 = sadd.s32 1, %s11
    $region7: #{tpu_custom_call.1} parent=1 // loop_footer_branch
      %10 = sbr.rel target = $region3
    $region8: #{tpu_custom_call.1} parent=1 // loop_exit
      _
    %3862 = vsyncpa [#allocation5], 1
    %s3863 = scalar_lea.sflag [#allocation5], 1
    %3864 = vsyncpa %s3863, 1

</llo_original>
